<compile_context>
chip_gen: v7x
topology: tpu7x:2x2x1
jax: 0.10.0
libtpu: 0.0.40
codegen_flags: <defaults>
</compile_context>

<pallas_src>
import functools

import jax
import jax.numpy as jnp
import numpy as np
from jax import lax
from jax.experimental import pallas as pl
from jax.experimental.pallas import tpu as pltpu


# ------------------------------ Pallas kernel ------------------------------ #

def _fused_block_kernel(xcat_ref, wb1_ref, b1_ref, bd_ref, wb2_ref, b2_ref,
                        fc1_ref, fc2_ref, o_ref, x1_scr,
                        *, H, W, Wp, PCin, PC, NQ):
    """Whole ResidualSEBlock for one lane-packed group of P images.

    "Wide" layout: the zero-padded (Hp, Wp, P*Cin) image group is flattened to rows
    q = py*Wp + px with (image, channel) packed on the lane axis.  The wrapper already
    concatenated the 3 dx-shifted copies along lanes (xcat[r, dx-group] = x_padded[r+dx]),
    so each conv is just 3 row-window matmuls (one per dy), each with the dx taps folded
    into the contraction axis.  Rows with (q % Wp) >= W are garbage: they are masked for
    the SE pool and the conv2 staging, and dropped in the wrapper.
    """
    R1 = 3 * PCin            # conv1 contraction depth (dx-folded)
    R2 = 3 * PC              # conv2 contraction depth (dx-folded)
    L2 = NQ + 2 * Wp         # rows of the conv2 staging scratch

    row_ids = lax.broadcasted_iota(jnp.int32, (NQ, 1), 0)
    valid = (row_ids % Wp) < W                       # (NQ, 1) real-pixel mask
    validf = valid.astype(jnp.float32)

    # ---- conv1 (bn1 scale folded) + 1x1 downsample (bnd scale folded, cols [PC, 2PC)) ----
    acc1 = None
    for dy in range(3):
        d = jnp.dot(xcat_ref[dy * Wp:dy * Wp + NQ, :],          # bf16, (NQ, 3*PCin)
                    wb1_ref[dy * R1:(dy + 1) * R1, :],          # bf16, (3*PCin, 2*PC)
                    preferred_element_type=jnp.float32)
        acc1 = d if acc1 is None else acc1 + d
    out1 = jnp.maximum(acc1[:, :PC] + b1_ref[...], 0.0)         # (NQ, PC) f32
    ident = acc1[:, PC:] + bd_ref[...]                          # (NQ, PC) f32

    # ---- stage out1 (bf16, single cast) as conv2's dx-folded padded input ---------------
    # x1_scr[r, dx*PC:(dx+1)*PC] == padded-out1 row (r + dx); halo rows are zero.
    out1_bf = jnp.where(valid, out1, 0.0).astype(jnp.bfloat16)
    x1_scr[0:Wp + 1, :] = jnp.zeros((Wp + 1, R2), jnp.bfloat16)           # lower halo
    x1_scr[Wp + NQ - 1:L2, :] = jnp.zeros((Wp + 1, R2), jnp.bfloat16)     # upper halo
    for dx in range(3):
        x1_scr[Wp + 1 - dx:Wp + 1 - dx + NQ, dx * PC:(dx + 1) * PC] = out1_bf

    # ---- conv2 (bn2 scale folded): 3 deep MXU pushes -------------------------------------
    acc2 = None
    for dy in range(3):
        d = jnp.dot(x1_scr[dy * Wp:dy * Wp + NQ, :],            # bf16, (NQ, 3*PC)
                    wb2_ref[dy * R2:(dy + 1) * R2, :],          # bf16, (3*PC, PC)
                    preferred_element_type=jnp.float32)
        acc2 = d if acc2 is None else acc2 + d
    out2 = acc2 + b2_ref[...]                                   # (NQ, PC) f32

    # ---- SE gate: masked global avg pool + two tiny block-diagonal FCs (per image) -------
    pooled = jnp.sum(out2 * validf, axis=0, keepdims=True) * (1.0 / (H * W))   # (1, PC)
    h = jnp.maximum(jnp.dot(pooled, fc1_ref[...],
                            preferred_element_type=jnp.float32), 0.0)          # (1, P*Cr)
    gate = jax.nn.sigmoid(jnp.dot(h, fc2_ref[...],
                                  preferred_element_type=jnp.float32))         # (1, PC)

    # ---- SE scale + residual add + final ReLU (bf16, lane-dense store) -------------------
    o_ref[...] = jnp.maximum(out2 * gate + ident, 0.0).astype(o_ref.dtype)


# ------------------------------- JAX wrapper -------------------------------- #

def _fold_bn_scale(w_oihw, bn, eps=1e-5):
    """Fold BN scale into the conv weight; return scaled weight + additive shift."""
    g, b, m, v = bn
    s = g / jnp.sqrt(v + eps)
    return w_oihw * s[:, None, None, None], b - m * s


def _bdiag(m, P):
    """(I, O) -> (P*I, P*O) block diagonal: packed image p only maps to image p's lanes."""
    return jnp.kron(jnp.eye(P, dtype=m.dtype), m)


def residual_se_block(x_nchw, p):
    B, Cin, H, W = x_nchw.shape
    Cout = p["conv1_w"].shape[0]
    Cr = p["fc1_w"].shape[0]

    P = max(1, 128 // Cout)                        # images packed along lanes (4 @ Cout=32)
    Wp = max(W + 2, ((W + 2 + 7) // 8) * 8)        # padded row pitch, multiple of 8
    Hp = H + 2
    NQ = H * Wp                                    # wide output rows per group
    L1 = NQ + 2 * Wp                               # rows of the dx-folded wide input slab
    PCin, PC, PCr = P * Cin, P * Cout, P * Cr

    # ---- activations: NCHW -> NHWC -> pad batch to P -> spatial pad -> lane pack ---------
    x = jnp.transpose(x_nchw, (0, 2, 3, 1))
    if B % P:
        x = jnp.pad(x, ((0, P - B % P), (0, 0), (0, 0), (0, 0)))
    B2 = x.shape[0]
    G = B2 // P
    xp = jnp.pad(x, ((0, 0), (1, 1), (1, Wp - W - 1), (0, 0)))             # (B2, Hp, Wp, Cin)
    xg = xp.reshape(G, P, Hp, Wp, Cin).transpose(0, 2, 3, 1, 4).reshape(G, Hp * Wp, PCin)
    xg = jnp.pad(xg, ((0, 0), (0, 2), (0, 0)))                             # room for dx shifts
    # dx taps folded on the lane/contraction axis (3x duplication, a few KB per group).
    xcat = jnp.concatenate([xg[:, d:d + L1, :] for d in range(3)],
                           axis=-1).astype(jnp.bfloat16)                   # (G, L1, 3*PCin)

    # ---- weights: fold BN scale, block-diagonalize over P, fold dx along K ---------------
    w1s, sh1 = _fold_bn_scale(p["conv1_w"], p["bn1"])
    w2s, sh2 = _fold_bn_scale(p["conv2_w"], p["bn2"])
    wds, shd = _fold_bn_scale(p["down_w"], p["bnd"])

    wd_bd = _bdiag(wds[:, :, 0, 0].T, P)                                   # (PCin, PC)
    zeros_id = jnp.zeros((PCin, PC), w1s.dtype)
    blk1 = []
    for dy in range(3):
        rows = []
        for dx in range(3):
            conv_cols = _bdiag(w1s[:, :, dy, dx].T, P)                     # (PCin, PC)
            ident_cols = wd_bd if (dy == 1 and dx == 1) else zeros_id      # downsample fold
            rows.append(jnp.concatenate([conv_cols, ident_cols], axis=1))
        blk1.append(jnp.concatenate(rows, axis=0))                         # (3*PCin, 2*PC)
    wb1 = jnp.concatenate(blk1, axis=0).astype(jnp.bfloat16)               # (9*PCin, 2*PC)

    blk2 = []
    for dy in range(3):
        rows = [_bdiag(w2s[:, :, dy, dx].T, P) for dx in range(3)]
        blk2.append(jnp.concatenate(rows, axis=0))                         # (3*PC, PC)
    wb2 = jnp.concatenate(blk2, axis=0).astype(jnp.bfloat16)               # (9*PC, PC)

    b1 = jnp.tile(sh1, P)[None, :].astype(jnp.float32)                     # (1, PC)
    b2 = jnp.tile(sh2, P)[None, :].astype(jnp.float32)
    bd = jnp.tile(shd, P)[None, :].astype(jnp.float32)

    fc1p = _bdiag(p["fc1_w"].T.astype(jnp.float32), P)                     # (PC, PCr)
    fc2p = _bdiag(p["fc2_w"].T.astype(jnp.float32), P)                     # (PCr, PC)

    kernel = functools.partial(_fused_block_kernel, H=H, W=W, Wp=Wp,
                               PCin=PCin, PC=PC, NQ=NQ)
    out_wide = pl.pallas_call(
        kernel,
        out_shape=jax.ShapeDtypeStruct((G, NQ, PC), jnp.bfloat16),
        grid=(G,),
        in_specs=[
            pl.BlockSpec((None, L1, 3 * PCin), lambda g: (g, 0, 0)),       # packed wide input
            pl.BlockSpec((9 * PCin, 2 * PC), lambda g: (0, 0)),            # conv1 + downsample
            pl.BlockSpec((1, PC), lambda g: (0, 0)),                       # bn1 shift
            pl.BlockSpec((1, PC), lambda g: (0, 0)),                       # bnd shift
            pl.BlockSpec((9 * PC, PC), lambda g: (0, 0)),                  # conv2
            pl.BlockSpec((1, PC), lambda g: (0, 0)),                       # bn2 shift
            pl.BlockSpec((PC, PCr), lambda g: (0, 0)),                     # SE fc1 (blockdiag)
            pl.BlockSpec((PCr, PC), lambda g: (0, 0)),                     # SE fc2 (blockdiag)
        ],
        out_specs=pl.BlockSpec((None, NQ, PC), lambda g: (g, 0, 0)),
        scratch_shapes=[pltpu.VMEM((NQ + 2 * Wp, 3 * PC), jnp.bfloat16)],  # conv2 staging
        compiler_params=pltpu.CompilerParams(dimension_semantics=("parallel",)),
    )(xcat, wb1, b1, bd, wb2, b2, fc1p, fc2p)

    # (G, NQ, PC) -> (G, H, Wp, P, Cout) -> drop pad columns -> NCHW (bf16)
    out = out_wide.reshape(G, H, Wp, P, Cout)[:, :, :W, :, :]
    out = jnp.transpose(out, (0, 3, 4, 1, 2)).reshape(B2, Cout, H, W)[:B]
    return out


# ------------------------- reference (same numerics) ------------------------ #

def ref_forward(x, p):
    """Plain-XLA reference with the same inference-BN folding and bf16 conv operands
    (f32 accumulation / f32 elementwise), matching the kernel's precision path."""
    def fold(w, bn, eps=1e-5):
        g, b, m, v = bn
        s = g / jnp.sqrt(v + eps)
        return (w * s[:, None, None, None]).astype(jnp.bfloat16), b - m * s

    def conv(z, w, shift, pad):
        y = lax.conv_general_dilated(z.astype(jnp.bfloat16), w, (1, 1),
                                     [(pad, pad), (pad, pad)],
                                     dimension_numbers=("NCHW", "OIHW", "NCHW"),
                                     preferred_element_type=jnp.float32)
        return y + shift[None, :, None, None]

    w1, s1 = fold(p["conv1_w"], p["bn1"])
    w2, s2 = fold(p["conv2_w"], p["bn2"])
    wd, sd = fold(p["down_w"], p["bnd"])
    out1 = jnp.maximum(conv(x, w1, s1, 1), 0.0)
    out2 = conv(out1, w2, s2, 1)
    y = jnp.mean(out2, axis=(2, 3))
    y = jnp.maximum(jnp.dot(y, p["fc1_w"].T, precision=lax.Precision.HIGHEST), 0.0)
    y = jax.nn.sigmoid(jnp.dot(y, p["fc2_w"].T, precision=lax.Precision.HIGHEST))
    ident = conv(x, wd, sd, 0)
    return jnp.maximum(out2 * y[:, :, None, None] + ident, 0.0)


# ----------------------------------- main ----------------------------------- #

if __name__ == "__main__":
    B, Cin, Cout, H, W = 8, 16, 32, 8, 8   # B=8 -> 2 lane-packed groups -> grid=(2,) parallel
    reduction = 16
    Cr = Cout // reduction

    keys = jax.random.split(jax.random.PRNGKey(0), 10)
    x = jax.random.normal(keys[0], (B, Cin, H, W), jnp.float32)

    def bn_params(k, c):
        k1, k2, k3, k4 = jax.random.split(k, 4)
        return (jax.random.uniform(k1, (c,), minval=0.5, maxval=1.5),   # gamma
                jax.random.normal(k2, (c,)) * 0.1,                      # beta
                jax.random.normal(k3, (c,)) * 0.1,                      # running mean
                jax.random.uniform(k4, (c,), minval=0.5, maxval=1.5))   # running var

    params = {
        "conv1_w": jax.random.normal(keys[1], (Cout, Cin, 3, 3), jnp.float32) * 0.1,
        "conv2_w": jax.random.normal(keys[2], (Cout, Cout, 3, 3), jnp.float32) * 0.1,
        "down_w": jax.random.normal(keys[3], (Cout, Cin, 1, 1), jnp.float32) * 0.1,
        "fc1_w": jax.random.normal(keys[4], (Cr, Cout), jnp.float32) * 0.1,   # Linear(C, C//r), bias=False
        "fc2_w": jax.random.normal(keys[5], (Cout, Cr), jnp.float32) * 0.1,   # Linear(C//r, C), bias=False
        "bn1": bn_params(keys[6], Cout),
        "bn2": bn_params(keys[7], Cout),
        "bnd": bn_params(keys[8], Cout),
    }

    fwd = jax.jit(residual_se_block)
    out = jax.block_until_ready(fwd(x, params))
    ref = jax.block_until_ready(jax.jit(ref_forward)(x, params))
    assert out.shape == (B, Cout, H, W), out.shape
    # kernel emits bf16; compare against the f32 reference with bf16-appropriate tolerance.
    np.testing.assert_allclose(np.asarray(out.astype(jnp.float32)), np.asarray(ref),
                               rtol=1e-2, atol=1e-2)
    print("KERNEL_OK")
</pallas_src>

<mosaic_0001>
module attributes {stable_mosaic.version = 11 : i64} {
  func.func @_fused_block_kernel(%arg0: i32, %arg1: memref<1x160x192xbf16, #tpu.memory_space<vmem>>, %arg2: memref<576x256xbf16, #tpu.memory_space<vmem>>, %arg3: memref<1x128xf32, #tpu.memory_space<vmem>>, %arg4: memref<1x128xf32, #tpu.memory_space<vmem>>, %arg5: memref<1152x128xbf16, #tpu.memory_space<vmem>>, %arg6: memref<1x128xf32, #tpu.memory_space<vmem>>, %arg7: memref<128x8xf32, #tpu.memory_space<vmem>>, %arg8: memref<8x128xf32, #tpu.memory_space<vmem>>, %arg9: memref<1x128x128xbf16, #tpu.memory_space<vmem>>, %arg10: memref<160x384xbf16, #tpu.memory_space<vmem>>) attributes {dimension_semantics = [#tpu.dimension_semantics<parallel>], iteration_bounds = array<i64: 2>, scalar_prefetch = 0 : i64, scratch_operands = 1 : i64, tpu.core_type = #tpu.core_type<tc>, window_params = [{transform_indices = @transform_0, window_bounds = array<i64: 1, 160, 192>}, {pipeline_mode = #tpu.pipeline_mode<synchronous>, transform_indices = @transform_1, window_bounds = array<i64: 576, 256>}, {pipeline_mode = #tpu.pipeline_mode<synchronous>, transform_indices = @transform_2, window_bounds = array<i64: 1, 128>}, {pipeline_mode = #tpu.pipeline_mode<synchronous>, transform_indices = @transform_3, window_bounds = array<i64: 1, 128>}, {pipeline_mode = #tpu.pipeline_mode<synchronous>, transform_indices = @transform_4, window_bounds = array<i64: 1152, 128>}, {pipeline_mode = #tpu.pipeline_mode<synchronous>, transform_indices = @transform_5, window_bounds = array<i64: 1, 128>}, {pipeline_mode = #tpu.pipeline_mode<synchronous>, transform_indices = @transform_6, window_bounds = array<i64: 128, 8>}, {pipeline_mode = #tpu.pipeline_mode<synchronous>, transform_indices = @transform_7, window_bounds = array<i64: 8, 128>}, {transform_indices = @transform_8, window_bounds = array<i64: 1, 128, 128>}]} {
    %0 = tpu.iota {dimensions = array<i32: 0>} : vector<128x1xi32>
    %c16_i32 = arith.constant 16 : i32
    %c0_i32 = arith.constant 0 : i32
    %1 = arith.cmpi eq, %c16_i32, %c0_i32 : i32
    %c1_i32 = arith.constant 1 : i32
    %2 = arith.select %1, %c1_i32, %c16_i32 : i32
    %3 = vector.broadcast %2 : i32 to vector<128x1xi32>
    %4 = arith.remsi %0, %3 : vector<128x1xi32>
    %c0_i32_0 = arith.constant 0 : i32
    %5 = vector.broadcast %c0_i32_0 : i32 to vector<128x1xi32>
    %6 = arith.cmpi ne, %4, %5 : vector<128x1xi32>
    %c0_i32_1 = arith.constant 0 : i32
    %7 = vector.broadcast %c0_i32_1 : i32 to vector<128x1xi32>
    %8 = arith.cmpi slt, %4, %7 : vector<128x1xi32>
    %c0_i32_2 = arith.constant 0 : i32
    %9 = arith.cmpi slt, %2, %c0_i32_2 : i32
    %10 = vector.broadcast %9 : i1 to vector<128x1xi1>
    %11 = vector.broadcast %10 : vector<128x1xi1> to vector<128x1xi1>
    %12 = arith.xori %8, %11 : vector<128x1xi1>
    %13 = arith.andi %12, %6 : vector<128x1xi1>
    %14 = vector.broadcast %2 : i32 to vector<128x1xi32>
    %15 = arith.addi %4, %14 : vector<128x1xi32>
    %16 = arith.select %13, %15, %4 : vector<128x1xi1>, vector<128x1xi32>
    %c8_i32 = arith.constant 8 : i32
    %17 = vector.broadcast %c8_i32 : i32 to vector<128x1xi32>
    %18 = arith.cmpi slt, %16, %17 : vector<128x1xi32>
    %19 = arith.extui %18 : vector<128x1xi1> to vector<128x1xi32>
    %20 = arith.sitofp %19 : vector<128x1xi32> to vector<128x1xf32>
    %c0 = arith.constant 0 : index
    %c0_3 = arith.constant 0 : index
    %c0_4 = arith.constant 0 : index
    %21 = vector.load %arg1[%c0, %c0_3, %c0_4] : memref<1x160x192xbf16, #tpu.memory_space<vmem>>, vector<1x128x192xbf16>
    %22 = vector.shape_cast %21 : vector<1x128x192xbf16> to vector<128x192xbf16>
    %c0_5 = arith.constant 0 : index
    %c0_6 = arith.constant 0 : index
    %23 = vector.load %arg2[%c0_5, %c0_6] : memref<576x256xbf16, #tpu.memory_space<vmem>>, vector<192x256xbf16>
    %cst = arith.constant dense<0.000000e+00> : vector<128x256xf32>
    %24 = tpu.matmul %22, %23, %cst {dimension_numbers = #tpu.dot_dimension_numbers<[1], [0], [0], [1], [0, 0, 1, 1], [], []>} : vector<128x192xbf16>, vector<192x256xbf16>, vector<128x256xf32> -> vector<128x256xf32>
    %c0_7 = arith.constant 0 : index
    %c16 = arith.constant 16 : index
    %c0_8 = arith.constant 0 : index
    %25 = vector.load %arg1[%c0_7, %c16, %c0_8] : memref<1x160x192xbf16, #tpu.memory_space<vmem>>, vector<1x128x192xbf16>
    %26 = vector.shape_cast %25 : vector<1x128x192xbf16> to vector<128x192xbf16>
    %c192 = arith.constant 192 : index
    %c0_9 = arith.constant 0 : index
    %27 = vector.load %arg2[%c192, %c0_9] : memref<576x256xbf16, #tpu.memory_space<vmem>>, vector<192x256xbf16>
    %cst_10 = arith.constant dense<0.000000e+00> : vector<128x256xf32>
    %28 = tpu.matmul %26, %27, %cst_10 {dimension_numbers = #tpu.dot_dimension_numbers<[1], [0], [0], [1], [0, 0, 1, 1], [], []>} : vector<128x192xbf16>, vector<192x256xbf16>, vector<128x256xf32> -> vector<128x256xf32>
    %29 = arith.addf %24, %28 : vector<128x256xf32>
    %c0_11 = arith.constant 0 : index
    %c32 = arith.constant 32 : index
    %c0_12 = arith.constant 0 : index
    %30 = vector.load %arg1[%c0_11, %c32, %c0_12] : memref<1x160x192xbf16, #tpu.memory_space<vmem>>, vector<1x128x192xbf16>
    %31 = vector.shape_cast %30 : vector<1x128x192xbf16> to vector<128x192xbf16>
    %c384 = arith.constant 384 : index
    %c0_13 = arith.constant 0 : index
    %32 = vector.load %arg2[%c384, %c0_13] : memref<576x256xbf16, #tpu.memory_space<vmem>>, vector<192x256xbf16>
    %cst_14 = arith.constant dense<0.000000e+00> : vector<128x256xf32>
    %33 = tpu.matmul %31, %32, %cst_14 {dimension_numbers = #tpu.dot_dimension_numbers<[1], [0], [0], [1], [0, 0, 1, 1], [], []>} : vector<128x192xbf16>, vector<192x256xbf16>, vector<128x256xf32> -> vector<128x256xf32>
    %34 = arith.addf %29, %33 : vector<128x256xf32>
    %35 = vector.extract_strided_slice %34 {offsets = [0, 0], sizes = [128, 128], strides = [1, 1]} : vector<128x256xf32> to vector<128x128xf32>
    %c0_15 = arith.constant 0 : index
    %c0_16 = arith.constant 0 : index
    %36 = vector.load %arg3[%c0_15, %c0_16] : memref<1x128xf32, #tpu.memory_space<vmem>>, vector<1x128xf32>
    %37 = vector.broadcast %36 : vector<1x128xf32> to vector<128x128xf32>
    %38 = arith.addf %35, %37 : vector<128x128xf32>
    %cst_17 = arith.constant 0.000000e+00 : f32
    %39 = vector.broadcast %cst_17 : f32 to vector<128x128xf32>
    %40 = arith.maximumf %38, %39 : vector<128x128xf32>
    %41 = vector.extract_strided_slice %34 {offsets = [0, 128], sizes = [128, 128], strides = [1, 1]} : vector<128x256xf32> to vector<128x128xf32>
    %c0_18 = arith.constant 0 : index
    %c0_19 = arith.constant 0 : index
    %42 = vector.load %arg4[%c0_18, %c0_19] : memref<1x128xf32, #tpu.memory_space<vmem>>, vector<1x128xf32>
    %43 = vector.broadcast %42 : vector<1x128xf32> to vector<128x128xf32>
    %44 = arith.addf %41, %43 : vector<128x128xf32>
    %cst_20 = arith.constant 0.000000e+00 : f32
    %45 = vector.shape_cast %18 : vector<128x1xi1> to vector<128x1xi1>
    %46 = vector.broadcast %45 : vector<128x1xi1> to vector<128x128xi1>
    %47 = vector.broadcast %cst_20 : f32 to vector<128x128xf32>
    %48 = arith.select %46, %40, %47 : vector<128x128xi1>, vector<128x128xf32>
    %49 = arith.truncf %48 : vector<128x128xf32> to vector<128x128xbf16>
    %cst_21 = arith.constant 0.000000e+00 : bf16
    %50 = vector.broadcast %cst_21 : bf16 to vector<17x384xbf16>
    %c0_22 = arith.constant 0 : index
    %c0_23 = arith.constant 0 : index
    %51 = vector.load %arg10[%c0_22, %c0_23] : memref<160x384xbf16, #tpu.memory_space<vmem>>, vector<17x384xbf16>
    tpu.vector_store %arg10[%c0_22, %c0_23], %50 {strides = array<i32>} : memref<160x384xbf16, #tpu.memory_space<vmem>>, vector<17x384xbf16>,
    %cst_24 = arith.constant 0.000000e+00 : bf16
    %52 = vector.broadcast %cst_24 : bf16 to vector<17x384xbf16>
    %c143 = arith.constant 143 : index
    %c0_25 = arith.constant 0 : index
    %53 = vector.load %arg10[%c143, %c0_25] : memref<160x384xbf16, #tpu.memory_space<vmem>>, vector<17x384xbf16>
    tpu.vector_store %arg10[%c143, %c0_25], %52 {strides = array<i32>} : memref<160x384xbf16, #tpu.memory_space<vmem>>, vector<17x384xbf16>,
    %c17 = arith.constant 17 : index
    %c0_26 = arith.constant 0 : index
    %54 = vector.load %arg10[%c17, %c0_26] : memref<160x384xbf16, #tpu.memory_space<vmem>>, vector<128x128xbf16>
    tpu.vector_store %arg10[%c17, %c0_26], %49 {strides = array<i32>} : memref<160x384xbf16, #tpu.memory_space<vmem>>, vector<128x128xbf16>,
    %c16_27 = arith.constant 16 : index
    %c128 = arith.constant 128 : index
    %55 = vector.load %arg10[%c16_27, %c128] : memref<160x384xbf16, #tpu.memory_space<vmem>>, vector<128x128xbf16>
    tpu.vector_store %arg10[%c16_27, %c128], %49 {strides = array<i32>} : memref<160x384xbf16, #tpu.memory_space<vmem>>, vector<128x128xbf16>,
    %c15 = arith.constant 15 : index
    %c256 = arith.constant 256 : index
    %56 = vector.load %arg10[%c15, %c256] : memref<160x384xbf16, #tpu.memory_space<vmem>>, vector<128x128xbf16>
    tpu.vector_store %arg10[%c15, %c256], %49 {strides = array<i32>} : memref<160x384xbf16, #tpu.memory_space<vmem>>, vector<128x128xbf16>,
    %c0_28 = arith.constant 0 : index
    %c0_29 = arith.constant 0 : index
    %57 = vector.load %arg10[%c0_28, %c0_29] : memref<160x384xbf16, #tpu.memory_space<vmem>>, vector<128x384xbf16>
    %c0_30 = arith.constant 0 : index
    %c0_31 = arith.constant 0 : index
    %58 = vector.load %arg5[%c0_30, %c0_31] : memref<1152x128xbf16, #tpu.memory_space<vmem>>, vector<384x128xbf16>
    %cst_32 = arith.constant dense<0.000000e+00> : vector<128x128xf32>
    %59 = tpu.matmul %57, %58, %cst_32 {dimension_numbers = #tpu.dot_dimension_numbers<[1], [0], [0], [1], [0, 0, 1, 1], [], []>} : vector<128x384xbf16>, vector<384x128xbf16>, vector<128x128xf32> -> vector<128x128xf32>
    %c16_33 = arith.constant 16 : index
    %c0_34 = arith.constant 0 : index
    %60 = vector.load %arg10[%c16_33, %c0_34] : memref<160x384xbf16, #tpu.memory_space<vmem>>, vector<128x384xbf16>
    %c384_35 = arith.constant 384 : index
    %c0_36 = arith.constant 0 : index
    %61 = vector.load %arg5[%c384_35, %c0_36] : memref<1152x128xbf16, #tpu.memory_space<vmem>>, vector<384x128xbf16>
    %cst_37 = arith.constant dense<0.000000e+00> : vector<128x128xf32>
    %62 = tpu.matmul %60, %61, %cst_37 {dimension_numbers = #tpu.dot_dimension_numbers<[1], [0], [0], [1], [0, 0, 1, 1], [], []>} : vector<128x384xbf16>, vector<384x128xbf16>, vector<128x128xf32> -> vector<128x128xf32>
    %63 = arith.addf %59, %62 : vector<128x128xf32>
    %c32_38 = arith.constant 32 : index
    %c0_39 = arith.constant 0 : index
    %64 = vector.load %arg10[%c32_38, %c0_39] : memref<160x384xbf16, #tpu.memory_space<vmem>>, vector<128x384xbf16>
    %c768 = arith.constant 768 : index
    %c0_40 = arith.constant 0 : index
    %65 = vector.load %arg5[%c768, %c0_40] : memref<1152x128xbf16, #tpu.memory_space<vmem>>, vector<384x128xbf16>
    %cst_41 = arith.constant dense<0.000000e+00> : vector<128x128xf32>
    %66 = tpu.matmul %64, %65, %cst_41 {dimension_numbers = #tpu.dot_dimension_numbers<[1], [0], [0], [1], [0, 0, 1, 1], [], []>} : vector<128x384xbf16>, vector<384x128xbf16>, vector<128x128xf32> -> vector<128x128xf32>
    %67 = arith.addf %63, %66 : vector<128x128xf32>
    %c0_42 = arith.constant 0 : index
    %c0_43 = arith.constant 0 : index
    %68 = vector.load %arg6[%c0_42, %c0_43] : memref<1x128xf32, #tpu.memory_space<vmem>>, vector<1x128xf32>
    %69 = vector.broadcast %68 : vector<1x128xf32> to vector<128x128xf32>
    %70 = arith.addf %67, %69 : vector<128x128xf32>
    %71 = vector.broadcast %20 : vector<128x1xf32> to vector<128x128xf32>
    %72 = arith.mulf %70, %71 : vector<128x128xf32>
    %cst_44 = arith.constant dense<0.000000e+00> : vector<128xf32>
    %73 = vector.multi_reduction <add>, %72, %cst_44 [0] : vector<128x128xf32> to vector<128xf32>
    %74 = vector.shape_cast %73 : vector<128xf32> to vector<1x128xf32>
    %cst_45 = arith.constant 1.562500e-02 : f32
    %75 = vector.broadcast %cst_45 : f32 to vector<1x128xf32>
    %76 = arith.mulf %74, %75 : vector<1x128xf32>
    %c0_46 = arith.constant 0 : index
    %c0_47 = arith.constant 0 : index
    %77 = vector.load %arg7[%c0_46, %c0_47] : memref<128x8xf32, #tpu.memory_space<vmem>>, vector<128x8xf32>
    %cst_48 = arith.constant dense<0.000000e+00> : vector<1x8xf32>
    %78 = tpu.matmul %76, %77, %cst_48 {dimension_numbers = #tpu.dot_dimension_numbers<[1], [0], [0], [1], [0, 0, 1, 1], [], []>} : vector<1x128xf32>, vector<128x8xf32>, vector<1x8xf32> -> vector<1x8xf32>
    %cst_49 = arith.constant 0.000000e+00 : f32
    %79 = vector.broadcast %cst_49 : f32 to vector<1x8xf32>
    %80 = arith.maximumf %78, %79 : vector<1x8xf32>
    %c0_50 = arith.constant 0 : index
    %c0_51 = arith.constant 0 : index
    %81 = vector.load %arg8[%c0_50, %c0_51] : memref<8x128xf32, #tpu.memory_space<vmem>>, vector<8x128xf32>
    %cst_52 = arith.constant dense<0.000000e+00> : vector<1x128xf32>
    %82 = tpu.matmul %80, %81, %cst_52 {dimension_numbers = #tpu.dot_dimension_numbers<[1], [0], [0], [1], [0, 0, 1, 1], [], []>} : vector<1x8xf32>, vector<8x128xf32>, vector<1x128xf32> -> vector<1x128xf32>
    %83 = arith.negf %82 : vector<1x128xf32>
    %84 = math.exp %83 : vector<1x128xf32>
    %cst_53 = arith.constant 1.000000e+00 : f32
    %85 = vector.broadcast %cst_53 : f32 to vector<1x128xf32>
    %86 = arith.addf %85, %84 : vector<1x128xf32>
    %87 = arith.divf %85, %86 : vector<1x128xf32>
    %88 = vector.broadcast %87 : vector<1x128xf32> to vector<128x128xf32>
    %89 = arith.mulf %70, %88 : vector<128x128xf32>
    %90 = arith.addf %89, %44 : vector<128x128xf32>
    %cst_54 = arith.constant 0.000000e+00 : f32
    %91 = vector.broadcast %cst_54 : f32 to vector<128x128xf32>
    %92 = arith.maximumf %90, %91 : vector<128x128xf32>
    %93 = arith.truncf %92 : vector<128x128xf32> to vector<128x128xbf16>
    %c0_55 = arith.constant 0 : index
    %c0_56 = arith.constant 0 : index
    %c0_57 = arith.constant 0 : index
    %94 = vector.load %arg9[%c0_55, %c0_56, %c0_57] : memref<1x128x128xbf16, #tpu.memory_space<vmem>>, vector<1x128x128xbf16>
    %95 = vector.shape_cast %94 : vector<1x128x128xbf16> to vector<128x128xbf16>
    %96 = vector.shape_cast %93 : vector<128x128xbf16> to vector<1x128x128xbf16>
    tpu.vector_store %arg9[%c0_55, %c0_56, %c0_57], %96 {strides = array<i32>} : memref<1x128x128xbf16, #tpu.memory_space<vmem>>, vector<1x128x128xbf16>,
    return
  }
  func.func @transform_0(%arg0: i32) -> (i32, i32, i32) {
    %c0_i32 = arith.constant 0 : i32
    %c0_i32_0 = arith.constant 0 : i32
    %c0_i32_1 = arith.constant 0 : i32
    return %arg0, %c0_i32, %c0_i32_0 : i32, i32, i32
  }
  func.func @transform_1(%arg0: i32) -> (i32, i32) {
    %c0_i32 = arith.constant 0 : i32
    %c0_i32_0 = arith.constant 0 : i32
    %c0_i32_1 = arith.constant 0 : i32
    return %c0_i32, %c0_i32_0 : i32, i32
  }
  func.func @transform_2(%arg0: i32) -> (i32, i32) {
    %c0_i32 = arith.constant 0 : i32
    %c0_i32_0 = arith.constant 0 : i32
    %c0_i32_1 = arith.constant 0 : i32
    return %c0_i32, %c0_i32_0 : i32, i32
  }
  func.func @transform_3(%arg0: i32) -> (i32, i32) {
    %c0_i32 = arith.constant 0 : i32
    %c0_i32_0 = arith.constant 0 : i32
    %c0_i32_1 = arith.constant 0 : i32
    return %c0_i32, %c0_i32_0 : i32, i32
  }
  func.func @transform_4(%arg0: i32) -> (i32, i32) {
    %c0_i32 = arith.constant 0 : i32
    %c0_i32_0 = arith.constant 0 : i32
    %c0_i32_1 = arith.constant 0 : i32
    return %c0_i32, %c0_i32_0 : i32, i32
  }
  func.func @transform_5(%arg0: i32) -> (i32, i32) {
    %c0_i32 = arith.constant 0 : i32
    %c0_i32_0 = arith.constant 0 : i32
    %c0_i32_1 = arith.constant 0 : i32
    return %c0_i32, %c0_i32_0 : i32, i32
  }
  func.func @transform_6(%arg0: i32) -> (i32, i32) {
    %c0_i32 = arith.constant 0 : i32
    %c0_i32_0 = arith.constant 0 : i32
    %c0_i32_1 = arith.constant 0 : i32
    return %c0_i32, %c0_i32_0 : i32, i32
  }
  func.func @transform_7(%arg0: i32) -> (i32, i32) {
    %c0_i32 = arith.constant 0 : i32
    %c0_i32_0 = arith.constant 0 : i32
    %c0_i32_1 = arith.constant 0 : i32
    return %c0_i32, %c0_i32_0 : i32, i32
  }
  func.func @transform_8(%arg0: i32) -> (i32, i32, i32) {
    %c0_i32 = arith.constant 0 : i32
    %c0_i32_0 = arith.constant 0 : i32
    %c0_i32_1 = arith.constant 0 : i32
    return %arg0, %c0_i32, %c0_i32_0 : i32, i32, i32
  }
}

</mosaic_0001>

<llo_original>
// kernel: tile.18
$region0: #{tile.18}
  #allocation0 [shape = 's32[1]{0}', space=sflag, size = 0x4, scoped, tag = 'scoped memory for tile.18']
  %s0 = inlined_call_operand.vmem [shape: f32[32], index: 0, kind: input, shape index: {}]
  %s1 = inlined_call_operand.vmem [shape: f32[4,32], index: 1, kind: output, shape index: {}]
  // Predicated region
  $region2: #{tile.18} parent=0 // pred_check
    _
  $region3: #{tile.18} parent=0 // pred_check_branch
    %3 = sbr.rel (0) target = $region5
  $region4: #{tile.18} parent=0 // pred_region
    _
  $region5: #{tile.18} parent=0 // pred_fallthru
    _
  %v4 = vld [vmem:[%s0] ss:$0 sm:$0xff]
  %5 = vst [vmem:[%s1] sm:$0xf] %v4

// kernel: tile.19
$region0: #{tile.19}
  %s0 = inlined_call_operand.vmem [shape: f32[4,32], index: 0, kind: input, shape index: {}]
  %s1 = inlined_call_operand.vmem [shape: f32[1,128], index: 1, kind: output, shape index: {}]
  $region1: #{tile.19} parent=0
    #allocation0 [shape = 'u8[4096]{0}', space=vmem, size = 0x1000, scoped, tag = 'scoped mem for output reshape']
    #allocation1 [shape = 'u8[4096]{0}', space=vmem, size = 0x1000, scoped, tag = 'scoped mem for input reshape']
    %s3 = sshllo.u32 0, 4
    %v4 = vld [vmem:[%s0] sm:%s3]
    %5 = vst [vmem:[#allocation1] sm:%s3] %v4
    %v6 = vld [vmem:[#allocation1] sm:$0x1]
    %vm7 = vcmask 261120
    %8 = vst.msk [vmem:[#allocation0] sm:$0x1] %vm7, %v6
    %s9 = scalar_lea.vmem [#allocation1], 3
    %v10 = vld [vmem:[%s9] sm:$0x1]
    %11 = vrot.lane.b32.xlu0 %v10, 96
    %v12 = vpop.permute.xlu0 %11
    %vm13 = vcmask 1048320
    %14 = vst.msk [vmem:[#allocation0] sm:$0x1] %vm13, %v12
    %s15 = scalar_lea.vmem [#allocation1], 2
    %v16 = vld [vmem:[%s15] sm:$0x1]
    %17 = vrot.lane.b32.xlu0 %v16, 64
    %v18 = vpop.permute.xlu0 %17
    %vm19 = vcmask 785920
    %20 = vst.msk [vmem:[#allocation0] sm:$0x1] %vm19, %v18
    %s21 = scalar_lea.vmem [#allocation1], 1
    %v22 = vld [vmem:[%s21] sm:$0x1]
    %23 = vrot.lane.b32.xlu0 %v22, 32
    %v24 = vpop.permute.xlu0 %23
    %vm25 = vcmask 523520
    %26 = vst.msk [vmem:[#allocation0] sm:$0x1] %vm25, %v24
    %s28 = sshllo.u32 0, 1
    %v30 = vld [vmem:[#allocation0] sm:%s28]
    %s31 = sshllo.u32 0, 1
    %32 = vst [vmem:[%s1] sm:%s31] %v30

// kernel: residual_se_block.1
$region0: #{residual_se_block.1}
  #allocation0 [shape = 'u32[]', space=smem, size = 0x4, offset = 0x4, fixed_abs, tag = 'smem constant byte address 0x4 - core index']
  #allocation1 [shape = 'u32[144,128]{1,0:T(1,128)}', space=vmem, size = 0x12000, scoped, tag = 'internal scratch']
  #allocation2 [shape = 'bf16[160,384]{1,0:T(16,128)(2,1)}', space=vmem, size = 0x1e000, scoped, tag = 'scratch operand']
  %s0 = inlined_call_operand.vmem [shape: bf16[2,160,192], index: 0, kind: input, shape index: {}]
  %s1 = inlined_call_operand.vmem [shape: bf16[576,256], index: 1, kind: input, shape index: {}]
  %s2 = inlined_call_operand.vmem [shape: f32[1,128], index: 2, kind: input, shape index: {}]
  %s3 = inlined_call_operand.vmem [shape: f32[1,128], index: 3, kind: input, shape index: {}]
  %s4 = inlined_call_operand.vmem [shape: bf16[1152,128], index: 4, kind: input, shape index: {}]
  %s5 = inlined_call_operand.vmem [shape: f32[1,128], index: 5, kind: input, shape index: {}]
  %s6 = inlined_call_operand.vmem [shape: f32[128,8], index: 6, kind: input, shape index: {}]
  %s7 = inlined_call_operand.vmem [shape: f32[8,128], index: 7, kind: input, shape index: {}]
  %s8 = inlined_call_operand.vmem [shape: bf16[2,128,128], index: 8, kind: output, shape index: {}]
  %s9 = sld [smem:[#allocation0]]
  $region65: #{residual_se_block.1} parent=0
    _
  %s11 = ssub.s32 1, %s9
  %s12 = scalar_select 0, %s11, %s9
  loop: start=0, step=1, limit=4
  $region2: #{residual_se_block.1} parent=0 // loop_pre_header
    _
  $region3: #{residual_se_block.1} parent=0 // loop_header
    %s14 = sphi 0, %s18
    %p15 = scmp.ge.s32.totalorder %s14, 4
    %s24 = sphi 0, %s26
    %s27 = sphi 0, %s24
    %s28 = sphi 0, %s27
    %s44 = sphi 0, %s28
    %s48 = sphi 0, %s48
    %s50 = sphi 0, %s48
    %s51 = sphi 0, %s50
    %s65 = sphi 0, %s51
    %s69 = sphi 0, %s69
    %s71 = sphi 0, %s69
    %s72 = sphi 0, %s71
    %s86 = sphi 0, %s72
    %s90 = sphi 0, %s90
    %s92 = sphi 0, %s90
    %s93 = sphi 0, %s92
    %s107 = sphi 0, %s93
    %s111 = sphi 0, %s111
    %s113 = sphi 0, %s111
    %s114 = sphi 0, %s113
    %s128 = sphi 0, %s114
    %s132 = sphi 0, %s132
    %s134 = sphi 0, %s132
    %s135 = sphi 0, %s134
    %s149 = sphi 0, %s135
    %s153 = sphi 0, %s153
    %s155 = sphi 0, %s153
    %s156 = sphi 0, %s155
    %s170 = sphi 0, %s156
    %s174 = sphi 0, %s174
    %s176 = sphi 0, %s174
    %s177 = sphi 0, %s176
    %s191 = sphi 0, %s177
    %s197 = sphi 0, %s199
    %s200 = sphi 0, %s197
    %s201 = sphi 0, %s200
    %s217 = sphi 0, %s201
  $region4: #{residual_se_block.1} parent=0 // loop_header_branch
    %17 = sbr.rel (%p15) target = $region8
  $region5: #{residual_se_block.1} parent=0 // loop_body
    %s19 = ssub.s32 %s14, 1
    %s20 = ssub.s32 %s14, 2
    %s21 = sadd.s32 %s14, 1
    %s22 = ssub.s32 %s14, %s21
    %p23 = scmp.eq.s32.totalorder %s22, 0
    %s25 = sadd.s32 %s24, 1
    %s26 = scalar_select %p23, %s24, %s25
    %p29 = pneg %p23
    %p30 = scmp.eq.s32.totalorder %s14, 1
    %p31 = por %p29, %p30
    %p32 = scmp.ne.s32.totalorder %s24, %s27
    %p33 = scmp.eq.s32.totalorder %s14, 0
    %p34 = por %p32, %p33
    %p35 = scmp.ne.s32.totalorder %s24, %s27
    %p36 = scmp.eq.s32.totalorder %s19, 1
    %p37 = por %p35, %p36
    %p38 = scmp.ne.s32.totalorder %s27, %s28
    %p39 = scmp.eq.s32.totalorder %s19, 0
    %p40 = por %p38, %p39
    %p41 = scmp.ne.s32.totalorder %s27, %s28
    %p42 = scmp.eq.s32.totalorder %s20, 1
    %p43 = por %p41, %p42
    %p45 = scmp.ne.s32.totalorder %s28, %s44
    %p46 = scmp.eq.s32.totalorder %s20, 0
    %p47 = por %p45, %p46
    %s49 = sadd.s32 %s48, 1
    %p52 = scmp.eq.s32.totalorder %s14, 1
    %p53 = scmp.ne.s32.totalorder %s48, %s50
    %p54 = scmp.eq.s32.totalorder %s14, 0
    %p55 = por %p53, %p54
    %p56 = scmp.ne.s32.totalorder %s48, %s50
    %p57 = scmp.eq.s32.totalorder %s19, 1
    %p58 = por %p56, %p57
    %p59 = scmp.ne.s32.totalorder %s50, %s51
    %p60 = scmp.eq.s32.totalorder %s19, 0
    %p61 = por %p59, %p60
    %p62 = scmp.ne.s32.totalorder %s50, %s51
    %p63 = scmp.eq.s32.totalorder %s20, 1
    %p64 = por %p62, %p63
    %p66 = scmp.ne.s32.totalorder %s51, %s65
    %p67 = scmp.eq.s32.totalorder %s20, 0
    %p68 = por %p66, %p67
    %s70 = sadd.s32 %s69, 1
    %p73 = scmp.eq.s32.totalorder %s14, 1
    %p74 = scmp.ne.s32.totalorder %s69, %s71
    %p75 = scmp.eq.s32.totalorder %s14, 0
    %p76 = por %p74, %p75
    %p77 = scmp.ne.s32.totalorder %s69, %s71
    %p78 = scmp.eq.s32.totalorder %s19, 1
    %p79 = por %p77, %p78
    %p80 = scmp.ne.s32.totalorder %s71, %s72
    %p81 = scmp.eq.s32.totalorder %s19, 0
    %p82 = por %p80, %p81
    %p83 = scmp.ne.s32.totalorder %s71, %s72
    %p84 = scmp.eq.s32.totalorder %s20, 1
    %p85 = por %p83, %p84
    %p87 = scmp.ne.s32.totalorder %s72, %s86
    %p88 = scmp.eq.s32.totalorder %s20, 0
    %p89 = por %p87, %p88
    %s91 = sadd.s32 %s90, 1
    %p94 = scmp.eq.s32.totalorder %s14, 1
    %p95 = scmp.ne.s32.totalorder %s90, %s92
    %p96 = scmp.eq.s32.totalorder %s14, 0
    %p97 = por %p95, %p96
    %p98 = scmp.ne.s32.totalorder %s90, %s92
    %p99 = scmp.eq.s32.totalorder %s19, 1
    %p100 = por %p98, %p99
    %p101 = scmp.ne.s32.totalorder %s92, %s93
    %p102 = scmp.eq.s32.totalorder %s19, 0
    %p103 = por %p101, %p102
    %p104 = scmp.ne.s32.totalorder %s92, %s93
    %p105 = scmp.eq.s32.totalorder %s20, 1
    %p106 = por %p104, %p105
    %p108 = scmp.ne.s32.totalorder %s93, %s107
    %p109 = scmp.eq.s32.totalorder %s20, 0
    %p110 = por %p108, %p109
    %s112 = sadd.s32 %s111, 1
    %p115 = scmp.eq.s32.totalorder %s14, 1
    %p116 = scmp.ne.s32.totalorder %s111, %s113
    %p117 = scmp.eq.s32.totalorder %s14, 0
    %p118 = por %p116, %p117
    %p119 = scmp.ne.s32.totalorder %s111, %s113
    %p120 = scmp.eq.s32.totalorder %s19, 1
    %p121 = por %p119, %p120
    %p122 = scmp.ne.s32.totalorder %s113, %s114
    %p123 = scmp.eq.s32.totalorder %s19, 0
    %p124 = por %p122, %p123
    %p125 = scmp.ne.s32.totalorder %s113, %s114
    %p126 = scmp.eq.s32.totalorder %s20, 1
    %p127 = por %p125, %p126
    %p129 = scmp.ne.s32.totalorder %s114, %s128
    %p130 = scmp.eq.s32.totalorder %s20, 0
    %p131 = por %p129, %p130
    %s133 = sadd.s32 %s132, 1
    %p136 = scmp.eq.s32.totalorder %s14, 1
    %p137 = scmp.ne.s32.totalorder %s132, %s134
    %p138 = scmp.eq.s32.totalorder %s14, 0
    %p139 = por %p137, %p138
    %p140 = scmp.ne.s32.totalorder %s132, %s134
    %p141 = scmp.eq.s32.totalorder %s19, 1
    %p142 = por %p140, %p141
    %p143 = scmp.ne.s32.totalorder %s134, %s135
    %p144 = scmp.eq.s32.totalorder %s19, 0
    %p145 = por %p143, %p144
    %p146 = scmp.ne.s32.totalorder %s134, %s135
    %p147 = scmp.eq.s32.totalorder %s20, 1
    %p148 = por %p146, %p147
    %p150 = scmp.ne.s32.totalorder %s135, %s149
    %p151 = scmp.eq.s32.totalorder %s20, 0
    %p152 = por %p150, %p151
    %s154 = sadd.s32 %s153, 1
    %p157 = scmp.eq.s32.totalorder %s14, 1
    %p158 = scmp.ne.s32.totalorder %s153, %s155
    %p159 = scmp.eq.s32.totalorder %s14, 0
    %p160 = por %p158, %p159
    %p161 = scmp.ne.s32.totalorder %s153, %s155
    %p162 = scmp.eq.s32.totalorder %s19, 1
    %p163 = por %p161, %p162
    %p164 = scmp.ne.s32.totalorder %s155, %s156
    %p165 = scmp.eq.s32.totalorder %s19, 0
    %p166 = por %p164, %p165
    %p167 = scmp.ne.s32.totalorder %s155, %s156
    %p168 = scmp.eq.s32.totalorder %s20, 1
    %p169 = por %p167, %p168
    %p171 = scmp.ne.s32.totalorder %s156, %s170
    %p172 = scmp.eq.s32.totalorder %s20, 0
    %p173 = por %p171, %p172
    %s175 = sadd.s32 %s174, 1
    %p178 = scmp.eq.s32.totalorder %s14, 1
    %p179 = scmp.ne.s32.totalorder %s174, %s176
    %p180 = scmp.eq.s32.totalorder %s14, 0
    %p181 = por %p179, %p180
    %p182 = scmp.ne.s32.totalorder %s174, %s176
    %p183 = scmp.eq.s32.totalorder %s19, 1
    %p184 = por %p182, %p183
    %p185 = scmp.ne.s32.totalorder %s176, %s177
    %p186 = scmp.eq.s32.totalorder %s19, 0
    %p187 = por %p185, %p186
    %p188 = scmp.ne.s32.totalorder %s176, %s177
    %p189 = scmp.eq.s32.totalorder %s20, 1
    %p190 = por %p188, %p189
    %p192 = scmp.ne.s32.totalorder %s177, %s191
    %p193 = scmp.eq.s32.totalorder %s20, 0
    %p194 = por %p192, %p193
    %s195 = ssub.s32 %s14, %s21
    %p196 = scmp.eq.s32.totalorder %s195, 0
    %s198 = sadd.s32 %s197, 1
    %s199 = scalar_select %p196, %s197, %s198
    %p202 = pneg %p196
    %p203 = scmp.eq.s32.totalorder %s14, 1
    %p204 = por %p202, %p203
    %p205 = scmp.ne.s32.totalorder %s197, %s200
    %p206 = scmp.eq.s32.totalorder %s14, 0
    %p207 = por %p205, %p206
    %p208 = scmp.ne.s32.totalorder %s197, %s200
    %p209 = scmp.eq.s32.totalorder %s19, 1
    %p210 = por %p208, %p209
    %p211 = scmp.ne.s32.totalorder %s200, %s201
    %p212 = scmp.eq.s32.totalorder %s19, 0
    %p213 = por %p211, %p212
    %p214 = scmp.ne.s32.totalorder %s200, %s201
    %p215 = scmp.eq.s32.totalorder %s20, 1
    %p216 = por %p214, %p215
    %p218 = scmp.ne.s32.totalorder %s201, %s217
    %p219 = scmp.eq.s32.totalorder %s20, 0
    %p220 = por %p218, %p219
    %p221 = scmp.le.s32.totalorder 1, %s14
    %p222 = scmp.lt.s32.totalorder %s14, 3
    %p223 = pnand %p221, %p222
    %p224 = pneg %p223
    // Predicated region
    $region9: #{residual_se_block.1} parent=5 // pred_check
      _
    $region10: #{residual_se_block.1} parent=5 // pred_check_branch
      %226 = sbr.rel (%p223) target = $region12
    $region11: #{residual_se_block.1} parent=5 // pred_region
      %s227 = ssub.s32 %s14, 1
      // Predicated region
      $region13: #{residual_se_block.1} parent=11 // pred_check
        %p228 = pneg %p61
      $region14: #{residual_se_block.1} parent=11 // pred_check_branch
        %230 = sbr.rel (%p228) target = $region16
      $region15: #{residual_se_block.1} parent=11 // pred_region
        _
      $region16: #{residual_se_block.1} parent=11 // pred_fallthru
        _
      // Predicated region
      $region17: #{residual_se_block.1} parent=11 // pred_check
        %p231 = pneg %p82
      $region18: #{residual_se_block.1} parent=11 // pred_check_branch
        %233 = sbr.rel (%p231) target = $region20
      $region19: #{residual_se_block.1} parent=11 // pred_region
        _
      $region20: #{residual_se_block.1} parent=11 // pred_fallthru
        _
      // Predicated region
      $region21: #{residual_se_block.1} parent=11 // pred_check
        %p234 = pneg %p103
      $region22: #{residual_se_block.1} parent=11 // pred_check_branch
        %236 = sbr.rel (%p234) target = $region24
      $region23: #{residual_se_block.1} parent=11 // pred_region
        _
      $region24: #{residual_se_block.1} parent=11 // pred_fallthru
        _
      // Predicated region
      $region25: #{residual_se_block.1} parent=11 // pred_check
        %p237 = pneg %p124
      $region26: #{residual_se_block.1} parent=11 // pred_check_branch
        %239 = sbr.rel (%p237) target = $region28
      $region27: #{residual_se_block.1} parent=11 // pred_region
        _
      $region28: #{residual_se_block.1} parent=11 // pred_fallthru
        _
      // Predicated region
      $region29: #{residual_se_block.1} parent=11 // pred_check
        %p240 = pneg %p145
      $region30: #{residual_se_block.1} parent=11 // pred_check_branch
        %242 = sbr.rel (%p240) target = $region32
      $region31: #{residual_se_block.1} parent=11 // pred_region
        _
      $region32: #{residual_se_block.1} parent=11 // pred_fallthru
        _
      // Predicated region
      $region33: #{residual_se_block.1} parent=11 // pred_check
        %p243 = pneg %p166
      $region34: #{residual_se_block.1} parent=11 // pred_check_branch
        %245 = sbr.rel (%p243) target = $region36
      $region35: #{residual_se_block.1} parent=11 // pred_region
        _
      $region36: #{residual_se_block.1} parent=11 // pred_fallthru
        _
      // Predicated region
      $region37: #{residual_se_block.1} parent=11 // pred_check
        %p246 = pneg %p187
      $region38: #{residual_se_block.1} parent=11 // pred_check_branch
        %248 = sbr.rel (%p246) target = $region40
      $region39: #{residual_se_block.1} parent=11 // pred_region
        _
      $region40: #{residual_se_block.1} parent=11 // pred_fallthru
        _
    $region12: #{residual_se_block.1} parent=5 // pred_fallthru
      _
    %p249 = scmp.lt.s32.totalorder %s14, 2
    // Predicated region
    $region41: #{residual_se_block.1} parent=5 // pred_check
      %p250 = pneg %p249
    $region42: #{residual_se_block.1} parent=5 // pred_check_branch
      %252 = sbr.rel (%p250) target = $region44
    $region43: #{residual_se_block.1} parent=5 // pred_region
      // Predicated region
      $region45: #{residual_se_block.1} parent=43 // pred_check
        %p253 = pneg %p34
      $region46: #{residual_se_block.1} parent=43 // pred_check_branch
        %255 = sbr.rel (%p253) target = $region48
      $region47: #{residual_se_block.1} parent=43 // pred_region
        %p256 = scmp.lt.s32.totalorder %s14, 1
        %s257 = scalar_select %p256, %s14, 1
        %s258 = smul.addr %s257, 40
        %s259 = smul.addr %s258, 4
        %s260 = scalar_lea.vmem %s0, %s259
      $region48: #{residual_se_block.1} parent=43 // pred_fallthru
        _
    $region44: #{residual_se_block.1} parent=5 // pred_fallthru
      _
    %p261 = scmp.le.s32.totalorder 1, %s14
    %p262 = scmp.lt.s32.totalorder %s14, 3
    %p263 = pnand %p261, %p262
    %p264 = pneg %p263
    // Predicated region
    $region49: #{residual_se_block.1} parent=5 // pred_check
      _
    $region50: #{residual_se_block.1} parent=5 // pred_check_branch
      %266 = sbr.rel (%p263) target = $region52
    $region51: #{residual_se_block.1} parent=5 // pred_region
      %s267 = ssub.s32 %s14, 1
      %p268 = scmp.lt.s32.totalorder %s19, 1
      %s269 = scalar_select %p268, %s19, 1
      %s270 = smul.addr %s269, 40
      %s271 = smul.addr %s270, 4
      %s272 = scalar_lea.vmem %s0, %s271
      %p273 = pneg %p40
      %p274 = pneg %p37
      %p275 = pneg %p61
      %p276 = pneg %p58
      %p277 = pneg %p82
      %p278 = pneg %p79
      %p279 = pneg %p103
      %p280 = pneg %p100
      %p281 = pneg %p124
      %p282 = pneg %p121
      %p283 = pneg %p145
      %p284 = pneg %p142
      %p285 = pneg %p166
      %p286 = pneg %p163
      %p287 = pneg %p187
      %p288 = pneg %p184
      %p289 = pneg %p213
      %p290 = pneg %p210
      %p291 = scmp.lt.s32.totalorder %s19, 1
      %s292 = scalar_select %p291, %s19, 1
      %s293 = smul.addr %s292, 16
      %s294 = smul.addr %s293, 4
      %s295 = scalar_lea.vmem %s8, %s294
      %p296 = scmp.lt.s32.totalorder %s19, 1
      %s297 = scalar_select %p296, %s19, 1
      %s298 = smul.addr %s297, 40
      %s299 = smul.addr %s298, 4
      %s300 = scalar_lea.vmem %s0, %s299
      %p301 = scmp.lt.s32.totalorder %s19, 1
      %s302 = scalar_select %p301, %s19, 1
      %s303 = smul.addr %s302, 16
      %s304 = smul.addr %s303, 4
      %s305 = scalar_lea.vmem %s8, %s304
      %v307 = vlaneseq
      %v308 = vshrl.u32 %v307, 7
      %v309 = vadd.s32 %v308, 8
      %v310 = vadd.s32 %v308, 16
      %v311 = vadd.s32 %v308, 24
      %v312 = vadd.s32 %v308, 32
      %v313 = vadd.s32 %v308, 40
      %v314 = vadd.s32 %v308, 48
      %v315 = vadd.s32 %v308, 56
      %v316 = vadd.s32 %v308, 64
      %v317 = vadd.s32 %v308, 72
      %v318 = vadd.s32 %v308, 80
      %v319 = vadd.s32 %v308, 88
      %v320 = vadd.s32 %v308, 96
      %v321 = vadd.s32 %v308, 104
      %v322 = vadd.s32 %v308, 112
      %v323 = vadd.s32 %v308, 120
      %vm324 = vcmp.lt.s32.totalorder %v308, 0
      %v325 = vsub.s32 0, %v308
      %v326 = vsel %vm324, %v325, %v308
      %v327 = vshrl.u32 %v326, 4
      %v328 = vand.u32 %v326, 15
      %v329 = vsub.s32 0, %v328
      %v330 = vsel %vm324, %v329, %v328
      %vm331 = vcmp.lt.s32.totalorder %v309, 0
      %v332 = vsub.s32 0, %v309
      %v333 = vsel %vm331, %v332, %v309
      %v334 = vshrl.u32 %v333, 4
      %v335 = vand.u32 %v333, 15
      %v336 = vsub.s32 0, %v335
      %v337 = vsel %vm331, %v336, %v335
      %vm338 = vcmp.lt.s32.totalorder %v310, 0
      %v339 = vsub.s32 0, %v310
      %v340 = vsel %vm338, %v339, %v310
      %v341 = vshrl.u32 %v340, 4
      %v342 = vand.u32 %v340, 15
      %v343 = vsub.s32 0, %v342
      %v344 = vsel %vm338, %v343, %v342
      %vm345 = vcmp.lt.s32.totalorder %v311, 0
      %v346 = vsub.s32 0, %v311
      %v347 = vsel %vm345, %v346, %v311
      %v348 = vshrl.u32 %v347, 4
      %v349 = vand.u32 %v347, 15
      %v350 = vsub.s32 0, %v349
      %v351 = vsel %vm345, %v350, %v349
      %vm352 = vcmp.lt.s32.totalorder %v312, 0
      %v353 = vsub.s32 0, %v312
      %v354 = vsel %vm352, %v353, %v312
      %v355 = vshrl.u32 %v354, 4
      %v356 = vand.u32 %v354, 15
      %v357 = vsub.s32 0, %v356
      %v358 = vsel %vm352, %v357, %v356
      %vm359 = vcmp.lt.s32.totalorder %v313, 0
      %v360 = vsub.s32 0, %v313
      %v361 = vsel %vm359, %v360, %v313
      %v362 = vshrl.u32 %v361, 4
      %v363 = vand.u32 %v361, 15
      %v364 = vsub.s32 0, %v363
      %v365 = vsel %vm359, %v364, %v363
      %vm366 = vcmp.lt.s32.totalorder %v314, 0
      %v367 = vsub.s32 0, %v314
      %v368 = vsel %vm366, %v367, %v314
      %v369 = vshrl.u32 %v368, 4
      %v370 = vand.u32 %v368, 15
      %v371 = vsub.s32 0, %v370
      %v372 = vsel %vm366, %v371, %v370
      %vm373 = vcmp.lt.s32.totalorder %v315, 0
      %v374 = vsub.s32 0, %v315
      %v375 = vsel %vm373, %v374, %v315
      %v376 = vshrl.u32 %v375, 4
      %v377 = vand.u32 %v375, 15
      %v378 = vsub.s32 0, %v377
      %v379 = vsel %vm373, %v378, %v377
      %vm380 = vcmp.lt.s32.totalorder %v316, 0
      %v381 = vsub.s32 0, %v316
      %v382 = vsel %vm380, %v381, %v316
      %v383 = vshrl.u32 %v382, 4
      %v384 = vand.u32 %v382, 15
      %v385 = vsub.s32 0, %v384
      %v386 = vsel %vm380, %v385, %v384
      %vm387 = vcmp.lt.s32.totalorder %v317, 0
      %v388 = vsub.s32 0, %v317
      %v389 = vsel %vm387, %v388, %v317
      %v390 = vshrl.u32 %v389, 4
      %v391 = vand.u32 %v389, 15
      %v392 = vsub.s32 0, %v391
      %v393 = vsel %vm387, %v392, %v391
      %vm394 = vcmp.lt.s32.totalorder %v318, 0
      %v395 = vsub.s32 0, %v318
      %v396 = vsel %vm394, %v395, %v318
      %v397 = vshrl.u32 %v396, 4
      %v398 = vand.u32 %v396, 15
      %v399 = vsub.s32 0, %v398
      %v400 = vsel %vm394, %v399, %v398
      %vm401 = vcmp.lt.s32.totalorder %v319, 0
      %v402 = vsub.s32 0, %v319
      %v403 = vsel %vm401, %v402, %v319
      %v404 = vshrl.u32 %v403, 4
      %v405 = vand.u32 %v403, 15
      %v406 = vsub.s32 0, %v405
      %v407 = vsel %vm401, %v406, %v405
      %vm408 = vcmp.lt.s32.totalorder %v320, 0
      %v409 = vsub.s32 0, %v320
      %v410 = vsel %vm408, %v409, %v320
      %v411 = vshrl.u32 %v410, 4
      %v412 = vand.u32 %v410, 15
      %v413 = vsub.s32 0, %v412
      %v414 = vsel %vm408, %v413, %v412
      %vm415 = vcmp.lt.s32.totalorder %v321, 0
      %v416 = vsub.s32 0, %v321
      %v417 = vsel %vm415, %v416, %v321
      %v418 = vshrl.u32 %v417, 4
      %v419 = vand.u32 %v417, 15
      %v420 = vsub.s32 0, %v419
      %v421 = vsel %vm415, %v420, %v419
      %vm422 = vcmp.lt.s32.totalorder %v322, 0
      %v423 = vsub.s32 0, %v322
      %v424 = vsel %vm422, %v423, %v322
      %v425 = vshrl.u32 %v424, 4
      %v426 = vand.u32 %v424, 15
      %v427 = vsub.s32 0, %v426
      %v428 = vsel %vm422, %v427, %v426
      %vm429 = vcmp.lt.s32.totalorder %v323, 0
      %v430 = vsub.s32 0, %v323
      %v431 = vsel %vm429, %v430, %v323
      %v432 = vshrl.u32 %v431, 4
      %v433 = vand.u32 %v431, 15
      %v434 = vsub.s32 0, %v433
      %v435 = vsel %vm429, %v434, %v433
      %vm436 = vcmp.ne.s32.totalorder %v330, 0
      %vm437 = vcmp.ne.s32.totalorder %v337, 0
      %vm438 = vcmp.ne.s32.totalorder %v344, 0
      %vm439 = vcmp.ne.s32.totalorder %v351, 0
      %vm440 = vcmp.ne.s32.totalorder %v358, 0
      %vm441 = vcmp.ne.s32.totalorder %v365, 0
      %vm442 = vcmp.ne.s32.totalorder %v372, 0
      %vm443 = vcmp.ne.s32.totalorder %v379, 0
      %vm444 = vcmp.ne.s32.totalorder %v386, 0
      %vm445 = vcmp.ne.s32.totalorder %v393, 0
      %vm446 = vcmp.ne.s32.totalorder %v400, 0
      %vm447 = vcmp.ne.s32.totalorder %v407, 0
      %vm448 = vcmp.ne.s32.totalorder %v414, 0
      %vm449 = vcmp.ne.s32.totalorder %v421, 0
      %vm450 = vcmp.ne.s32.totalorder %v428, 0
      %vm451 = vcmp.ne.s32.totalorder %v435, 0
      %vm452 = vcmp.lt.s32.totalorder %v330, 0
      %vm453 = vcmp.lt.s32.totalorder %v337, 0
      %vm454 = vcmp.lt.s32.totalorder %v344, 0
      %vm455 = vcmp.lt.s32.totalorder %v351, 0
      %vm456 = vcmp.lt.s32.totalorder %v358, 0
      %vm457 = vcmp.lt.s32.totalorder %v365, 0
      %vm458 = vcmp.lt.s32.totalorder %v372, 0
      %vm459 = vcmp.lt.s32.totalorder %v379, 0
      %vm460 = vcmp.lt.s32.totalorder %v386, 0
      %vm461 = vcmp.lt.s32.totalorder %v393, 0
      %vm462 = vcmp.lt.s32.totalorder %v400, 0
      %vm463 = vcmp.lt.s32.totalorder %v407, 0
      %vm464 = vcmp.lt.s32.totalorder %v414, 0
      %vm465 = vcmp.lt.s32.totalorder %v421, 0
      %vm466 = vcmp.lt.s32.totalorder %v428, 0
      %vm467 = vcmp.lt.s32.totalorder %v435, 0
      %vm468 = vmand %vm452, %vm436
      %vm469 = vmand %vm453, %vm437
      %vm470 = vmand %vm454, %vm438
      %vm471 = vmand %vm455, %vm439
      %vm472 = vmand %vm456, %vm440
      %vm473 = vmand %vm457, %vm441
      %vm474 = vmand %vm458, %vm442
      %vm475 = vmand %vm459, %vm443
      %vm476 = vmand %vm460, %vm444
      %vm477 = vmand %vm461, %vm445
      %vm478 = vmand %vm462, %vm446
      %vm479 = vmand %vm463, %vm447
      %vm480 = vmand %vm464, %vm448
      %vm481 = vmand %vm465, %vm449
      %vm482 = vmand %vm466, %vm450
      %vm483 = vmand %vm467, %vm451
      %v484 = vadd.s32 %v330, 16
      %v485 = vadd.s32 %v337, 16
      %v486 = vadd.s32 %v344, 16
      %v487 = vadd.s32 %v351, 16
      %v488 = vadd.s32 %v358, 16
      %v489 = vadd.s32 %v365, 16
      %v490 = vadd.s32 %v372, 16
      %v491 = vadd.s32 %v379, 16
      %v492 = vadd.s32 %v386, 16
      %v493 = vadd.s32 %v393, 16
      %v494 = vadd.s32 %v400, 16
      %v495 = vadd.s32 %v407, 16
      %v496 = vadd.s32 %v414, 16
      %v497 = vadd.s32 %v421, 16
      %v498 = vadd.s32 %v428, 16
      %v499 = vadd.s32 %v435, 16
      %v500 = vsel %vm468, %v484, %v330
      %v501 = vsel %vm469, %v485, %v337
      %v502 = vsel %vm470, %v486, %v344
      %v503 = vsel %vm471, %v487, %v351
      %v504 = vsel %vm472, %v488, %v358
      %v505 = vsel %vm473, %v489, %v365
      %v506 = vsel %vm474, %v490, %v372
      %v507 = vsel %vm475, %v491, %v379
      %v508 = vsel %vm476, %v492, %v386
      %v509 = vsel %vm477, %v493, %v393
      %v510 = vsel %vm478, %v494, %v400
      %v511 = vsel %vm479, %v495, %v407
      %v512 = vsel %vm480, %v496, %v414
      %v513 = vsel %vm481, %v497, %v421
      %v514 = vsel %vm482, %v498, %v428
      %v515 = vsel %vm483, %v499, %v435
      %vm516 = vcmp.lt.s32.totalorder %v500, 8
      %vm517 = vcmp.lt.s32.totalorder %v501, 8
      %vm518 = vcmp.lt.s32.totalorder %v502, 8
      %vm519 = vcmp.lt.s32.totalorder %v503, 8
      %vm520 = vcmp.lt.s32.totalorder %v504, 8
      %vm521 = vcmp.lt.s32.totalorder %v505, 8
      %vm522 = vcmp.lt.s32.totalorder %v506, 8
      %vm523 = vcmp.lt.s32.totalorder %v507, 8
      %vm524 = vcmp.lt.s32.totalorder %v508, 8
      %vm525 = vcmp.lt.s32.totalorder %v509, 8
      %vm526 = vcmp.lt.s32.totalorder %v510, 8
      %vm527 = vcmp.lt.s32.totalorder %v511, 8
      %vm528 = vcmp.lt.s32.totalorder %v512, 8
      %vm529 = vcmp.lt.s32.totalorder %v513, 8
      %vm530 = vcmp.lt.s32.totalorder %v514, 8
      %vm531 = vcmp.lt.s32.totalorder %v515, 8
      %v532 = vsel %vm516, 1, 0
      %v533 = vsel %vm517, 1, 0
      %v534 = vsel %vm518, 1, 0
      %v535 = vsel %vm519, 1, 0
      %v536 = vsel %vm520, 1, 0
      %v537 = vsel %vm521, 1, 0
      %v538 = vsel %vm522, 1, 0
      %v539 = vsel %vm523, 1, 0
      %v540 = vsel %vm524, 1, 0
      %v541 = vsel %vm525, 1, 0
      %v542 = vsel %vm526, 1, 0
      %v543 = vsel %vm527, 1, 0
      %v544 = vsel %vm528, 1, 0
      %v545 = vsel %vm529, 1, 0
      %v546 = vsel %vm530, 1, 0
      %v547 = vsel %vm531, 1, 0
      %v548 = vcvt.s32.f32 %v532
      %v549 = vcvt.s32.f32 %v533
      %v550 = vcvt.s32.f32 %v534
      %v551 = vcvt.s32.f32 %v535
      %v552 = vcvt.s32.f32 %v536
      %v553 = vcvt.s32.f32 %v537
      %v554 = vcvt.s32.f32 %v538
      %v555 = vcvt.s32.f32 %v539
      %v556 = vcvt.s32.f32 %v540
      %v557 = vcvt.s32.f32 %v541
      %v558 = vcvt.s32.f32 %v542
      %v559 = vcvt.s32.f32 %v543
      %v560 = vcvt.s32.f32 %v544
      %v561 = vcvt.s32.f32 %v545
      %v562 = vcvt.s32.f32 %v546
      %v563 = vcvt.s32.f32 %v547
      %v564 = vld [vmem:[%s300] sm:$0xff]
      %v565 = vld [vmem:[%s300 + $0x8] sm:$0xff]
      %v566 = vld [vmem:[%s300 + $0x10] sm:$0xff]
      %v567 = vld [vmem:[%s300 + $0x18] sm:$0xff]
      %v568 = vld [vmem:[%s300 + $0x20] sm:$0xff]
      %v569 = vld [vmem:[%s300 + $0x28] sm:$0xff]
      %v570 = vld [vmem:[%s300 + $0x30] sm:$0xff]
      %v571 = vld [vmem:[%s300 + $0x38] sm:$0xff]
      %v572 = vld [vmem:[%s300 + $0x40] sm:$0xff]
      %v573 = vld [vmem:[%s300 + $0x48] sm:$0xff]
      %v574 = vld [vmem:[%s300 + $0x50] sm:$0xff]
      %v575 = vld [vmem:[%s300 + $0x58] sm:$0xff]
      %v576 = vld [vmem:[%s300 + $0x60] sm:$0xff]
      %v577 = vld [vmem:[%s300 + $0x68] sm:$0xff]
      %v578 = vld [vmem:[%s300 + $0x70] sm:$0xff]
      %v579 = vld [vmem:[%s300 + $0x78] sm:$0xff]
      %v580 = vld [vmem:[%s1] sm:$0xff]
      %v581 = vld [vmem:[%s1 + $0x8] sm:$0xff]
      %v582 = vld [vmem:[%s1 + $0x10] sm:$0xff]
      %v583 = vld [vmem:[%s1 + $0x18] sm:$0xff]
      %v584 = vld [vmem:[%s1 + $0x20] sm:$0xff]
      %v585 = vld [vmem:[%s1 + $0x28] sm:$0xff]
      %v586 = vld [vmem:[%s1 + $0x30] sm:$0xff]
      %v587 = vld [vmem:[%s1 + $0x38] sm:$0xff]
      %v588 = vld [vmem:[%s1 + $0x40] sm:$0xff]
      %v589 = vld [vmem:[%s1 + $0x48] sm:$0xff]
      %v590 = vld [vmem:[%s1 + $0x50] sm:$0xff]
      %v591 = vld [vmem:[%s1 + $0x58] sm:$0xff]
      %v592 = vld [vmem:[%s1 + $0x60] sm:$0xff]
      %v593 = vld [vmem:[%s1 + $0x68] sm:$0xff]
      %v594 = vld [vmem:[%s1 + $0x70] sm:$0xff]
      %v595 = vld [vmem:[%s1 + $0x78] sm:$0xff]
      %v596 = vld [vmem:[%s1 + $0x80] sm:$0xff]
      %v597 = vld [vmem:[%s1 + $0x88] sm:$0xff]
      %v598 = vld [vmem:[%s1 + $0x90] sm:$0xff]
      %v599 = vld [vmem:[%s1 + $0x98] sm:$0xff]
      %v600 = vld [vmem:[%s1 + $0xa0] sm:$0xff]
      %v601 = vld [vmem:[%s1 + $0xa8] sm:$0xff]
      %v602 = vld [vmem:[%s1 + $0xb0] sm:$0xff]
      %v603 = vld [vmem:[%s1 + $0xb8] sm:$0xff]
      %v604 = vld [vmem:[%s300 + $0x80] sm:$0xff]
      %v605 = vld [vmem:[%s300 + $0x88] sm:$0xff]
      %v606 = vld [vmem:[%s1 + $0xc0] sm:$0xff]
      %v607 = vld [vmem:[%s1 + $0xc8] sm:$0xff]
      %v608 = vld [vmem:[%s1 + $0xd0] sm:$0xff]
      %v609 = vld [vmem:[%s1 + $0xd8] sm:$0xff]
      %v610 = vld [vmem:[%s1 + $0xe0] sm:$0xff]
      %v611 = vld [vmem:[%s1 + $0xe8] sm:$0xff]
      %v612 = vld [vmem:[%s1 + $0xf0] sm:$0xff]
      %v613 = vld [vmem:[%s1 + $0xf8] sm:$0xff]
      %v614 = vld [vmem:[%s1 + $0x100] sm:$0xff]
      %v615 = vld [vmem:[%s1 + $0x108] sm:$0xff]
      %v616 = vld [vmem:[%s1 + $0x110] sm:$0xff]
      %v617 = vld [vmem:[%s1 + $0x118] sm:$0xff]
      %v618 = vld [vmem:[%s1 + $0x120] sm:$0xff]
      %v619 = vld [vmem:[%s1 + $0x128] sm:$0xff]
      %v620 = vld [vmem:[%s1 + $0x130] sm:$0xff]
      %v621 = vld [vmem:[%s1 + $0x138] sm:$0xff]
      %v622 = vld [vmem:[%s1 + $0x140] sm:$0xff]
      %v623 = vld [vmem:[%s1 + $0x148] sm:$0xff]
      %v624 = vld [vmem:[%s1 + $0x150] sm:$0xff]
      %v625 = vld [vmem:[%s1 + $0x158] sm:$0xff]
      %v626 = vld [vmem:[%s1 + $0x160] sm:$0xff]
      %v627 = vld [vmem:[%s1 + $0x168] sm:$0xff]
      %v628 = vld [vmem:[%s1 + $0x170] sm:$0xff]
      %v629 = vld [vmem:[%s1 + $0x178] sm:$0xff]
      %v646 = vunpack.c.l.b16 %v566
      %v647 = vunpack.c.h.b16 %v566
      %v648 = vunpack.c.l.b16 %v567
      %v649 = vunpack.c.h.b16 %v567
      %v650 = vunpack.c.l.b16 %v568
      %v651 = vunpack.c.h.b16 %v568
      %v652 = vunpack.c.l.b16 %v569
      %v653 = vunpack.c.h.b16 %v569
      %v654 = vunpack.c.l.b16 %v570
      %v655 = vunpack.c.h.b16 %v570
      %v656 = vunpack.c.l.b16 %v571
      %v657 = vunpack.c.h.b16 %v571
      %v658 = vunpack.c.l.b16 %v572
      %v659 = vunpack.c.h.b16 %v572
      %v660 = vunpack.c.l.b16 %v573
      %v661 = vunpack.c.h.b16 %v573
      %v662 = vunpack.c.l.b16 %v574
      %v663 = vunpack.c.h.b16 %v574
      %v664 = vunpack.c.l.b16 %v575
      %v665 = vunpack.c.h.b16 %v575
      %v666 = vunpack.c.l.b16 %v576
      %v667 = vunpack.c.h.b16 %v576
      %v668 = vunpack.c.l.b16 %v577
      %v669 = vunpack.c.h.b16 %v577
      %v670 = vunpack.c.l.b16 %v578
      %v671 = vunpack.c.h.b16 %v578
      %v672 = vunpack.c.l.b16 %v579
      %v673 = vunpack.c.h.b16 %v579
      %v674 = vunpack.c.l.b16 %v604
      %v675 = vunpack.c.h.b16 %v604
      %v676 = vunpack.c.l.b16 %v605
      %v677 = vunpack.c.h.b16 %v605
      %v678 = vpack.c.b16 %v648, %v646
      %v679 = vpack.c.b16 %v649, %v647
      %v680 = vpack.c.b16 %v652, %v650
      %v681 = vpack.c.b16 %v653, %v651
      %v682 = vpack.c.b16 %v656, %v654
      %v683 = vpack.c.b16 %v657, %v655
      %v684 = vpack.c.b16 %v660, %v658
      %v685 = vpack.c.b16 %v661, %v659
      %v686 = vpack.c.b16 %v664, %v662
      %v687 = vpack.c.b16 %v665, %v663
      %v688 = vpack.c.b16 %v668, %v666
      %v689 = vpack.c.b16 %v669, %v667
      %v690 = vpack.c.b16 %v672, %v670
      %v691 = vpack.c.b16 %v673, %v671
      %v692 = vpack.c.b16 %v676, %v674
      %v693 = vpack.c.b16 %v677, %v675
      %v726 = vunpack.c.l.b16 %v606
      %v727 = vunpack.c.h.b16 %v606
      %v728 = vunpack.c.l.b16 %v607
      %v729 = vunpack.c.h.b16 %v607
      %v730 = vunpack.c.l.b16 %v608
      %v731 = vunpack.c.h.b16 %v608
      %v732 = vunpack.c.l.b16 %v609
      %v733 = vunpack.c.h.b16 %v609
      %v734 = vunpack.c.l.b16 %v610
      %v735 = vunpack.c.h.b16 %v610
      %v736 = vunpack.c.l.b16 %v611
      %v737 = vunpack.c.h.b16 %v611
      %v738 = vunpack.c.l.b16 %v612
      %v739 = vunpack.c.h.b16 %v612
      %v740 = vunpack.c.l.b16 %v613
      %v741 = vunpack.c.h.b16 %v613
      %v742 = vunpack.c.l.b16 %v614
      %v743 = vunpack.c.h.b16 %v614
      %v744 = vunpack.c.l.b16 %v615
      %v745 = vunpack.c.h.b16 %v615
      %v746 = vunpack.c.l.b16 %v616
      %v747 = vunpack.c.h.b16 %v616
      %v748 = vunpack.c.l.b16 %v617
      %v749 = vunpack.c.h.b16 %v617
      %v750 = vunpack.c.l.b16 %v618
      %v751 = vunpack.c.h.b16 %v618
      %v752 = vunpack.c.l.b16 %v619
      %v753 = vunpack.c.h.b16 %v619
      %v754 = vunpack.c.l.b16 %v620
      %v755 = vunpack.c.h.b16 %v620
      %v756 = vunpack.c.l.b16 %v621
      %v757 = vunpack.c.h.b16 %v621
      %v758 = vunpack.c.l.b16 %v622
      %v759 = vunpack.c.h.b16 %v622
      %v760 = vunpack.c.l.b16 %v623
      %v761 = vunpack.c.h.b16 %v623
      %v762 = vunpack.c.l.b16 %v624
      %v763 = vunpack.c.h.b16 %v624
      %v764 = vunpack.c.l.b16 %v625
      %v765 = vunpack.c.h.b16 %v625
      %v766 = vunpack.c.l.b16 %v626
      %v767 = vunpack.c.h.b16 %v626
      %v768 = vunpack.c.l.b16 %v627
      %v769 = vunpack.c.h.b16 %v627
      %v770 = vunpack.c.l.b16 %v628
      %v771 = vunpack.c.h.b16 %v628
      %v772 = vunpack.c.l.b16 %v629
      %v773 = vunpack.c.h.b16 %v629
      %v774 = vpack.c.b16 %v728, %v726
      %v775 = vpack.c.b16 %v729, %v727
      %v776 = vpack.c.b16 %v732, %v730
      %v777 = vpack.c.b16 %v733, %v731
      %v778 = vpack.c.b16 %v736, %v734
      %v779 = vpack.c.b16 %v737, %v735
      %v780 = vpack.c.b16 %v740, %v738
      %v781 = vpack.c.b16 %v741, %v739
      %v782 = vpack.c.b16 %v744, %v742
      %v783 = vpack.c.b16 %v745, %v743
      %v784 = vpack.c.b16 %v748, %v746
      %v785 = vpack.c.b16 %v749, %v747
      %v786 = vpack.c.b16 %v752, %v750
      %v787 = vpack.c.b16 %v753, %v751
      %v788 = vpack.c.b16 %v756, %v754
      %v789 = vpack.c.b16 %v757, %v755
      %v790 = vpack.c.b16 %v760, %v758
      %v791 = vpack.c.b16 %v761, %v759
      %v792 = vpack.c.b16 %v764, %v762
      %v793 = vpack.c.b16 %v765, %v763
      %v794 = vpack.c.b16 %v768, %v766
      %v795 = vpack.c.b16 %v769, %v767
      %v796 = vpack.c.b16 %v772, %v770
      %v797 = vpack.c.b16 %v773, %v771
      %vm822 = vcmask 523264
      %v824 = vsel %vm822, %v679, 0
      %v827 = vsel %vm822, %v681, 0
      %v830 = vsel %vm822, %v683, 0
      %v833 = vsel %vm822, %v685, 0
      %v836 = vsel %vm822, %v687, 0
      %v839 = vsel %vm822, %v689, 0
      %v842 = vsel %vm822, %v691, 0
      %v845 = vsel %vm822, %v693, 0
      %847 = vmatprep.subr.bf16.mxu0 %v775
      %848 = vmatpush1.bf16.msra.mxu0 %v774
      %849 = vmatprep.subr.bf16.mxu0 %v777
      %850 = vmatpush1.bf16.msra.mxu0 %v776
      %851 = vmatprep.subr.bf16.mxu0 %v779
      %852 = vmatpush1.bf16.msra.mxu0 %v778
      %853 = vmatprep.subr.bf16.mxu0 %v781
      %854 = vmatpush1.bf16.msra.mxu0 %v780
      %855 = vmatprep.subr.bf16.mxu0 %v783
      %856 = vmatpush1.bf16.msra.mxu0 %v782
      %857 = vmatprep.subr.bf16.mxu0 %v785
      %858 = vmatpush1.bf16.msra.mxu0 %v784
      %859 = vmatprep.subr.bf16.mxu0 %v787
      %860 = vmatpush1.bf16.msra.mxu0 %v786
      %861 = vmatprep.subr.bf16.mxu0 %v789
      %862 = vmatpush1.bf16.msra.mxu0 %v788
      %863 = vmatprep.subr.bf16.mxu0 %v791
      %864 = vmatpush1.bf16.msra.mxu0 %v790
      %865 = vmatprep.subr.bf16.mxu0 %v793
      %866 = vmatpush1.bf16.msra.mxu0 %v792
      %867 = vmatprep.subr.bf16.mxu0 %v795
      %868 = vmatpush1.bf16.msra.mxu0 %v794
      %869 = vmatprep.subr.bf16.mxu0 %v797
      %870 = vmatpush1.bf16.msra.mxu0 %v796
      %871 = vmatprep.subr.bf16.mxu0 0
      %872 = vmatpush1.bf16.msra.mxu0 0
      %873 = vmatprep.subr.bf16.mxu0 0
      %874 = vmatpush1.bf16.msra.mxu0 0
      %875 = vmatprep.subr.bf16.mxu0 0
      %876 = vmatpush1.bf16.msra.mxu0 0
      %877 = vmatprep.subr.bf16.mxu0 0
      %878 = vmatpush1.bf16.msra.mxu0 0
      %879 = vmatprep.mubr.bf16.mxu0 %v824
      %880 = vmatmul.mubr.bf16.gmra.mrb[0].mxu0 %v678
      %v881 = vpop.f32.mrb[0].mxu0
      %v882 = vadd.f32 0.0, %v881
      %v883 = vpop.f32.mrb[0].mxu0
      %v884 = vadd.f32 0.0, %v883
      %v885 = vpop.f32.mrb[0].mxu0
      %v886 = vadd.f32 0.0, %v885
      %v887 = vpop.f32.mrb[0].mxu0
      %v888 = vadd.f32 0.0, %v887
      %889 = vmatprep.mubr.bf16.mxu0 %v827
      %890 = vmatmul.mubr.bf16.gmra.mrb[0].mxu0 %v680
      %v891 = vpop.f32.mrb[0].mxu0
      %v892 = vadd.f32 0.0, %v891
      %v893 = vpop.f32.mrb[0].mxu0
      %v894 = vadd.f32 0.0, %v893
      %v895 = vpop.f32.mrb[0].mxu0
      %v896 = vadd.f32 0.0, %v895
      %v897 = vpop.f32.mrb[0].mxu0
      %v898 = vadd.f32 0.0, %v897
      %899 = vmatprep.mubr.bf16.mxu0 %v830
      %900 = vmatmul.mubr.bf16.gmra.mrb[0].mxu0 %v682
      %v901 = vpop.f32.mrb[0].mxu0
      %v902 = vadd.f32 0.0, %v901
      %v903 = vpop.f32.mrb[0].mxu0
      %v904 = vadd.f32 0.0, %v903
      %v905 = vpop.f32.mrb[0].mxu0
      %v906 = vadd.f32 0.0, %v905
      %v907 = vpop.f32.mrb[0].mxu0
      %v908 = vadd.f32 0.0, %v907
      %909 = vmatprep.mubr.bf16.mxu0 %v833
      %910 = vmatmul.mubr.bf16.gmra.mrb[0].mxu0 %v684
      %v911 = vpop.f32.mrb[0].mxu0
      %v912 = vadd.f32 0.0, %v911
      %v913 = vpop.f32.mrb[0].mxu0
      %v914 = vadd.f32 0.0, %v913
      %v915 = vpop.f32.mrb[0].mxu0
      %v916 = vadd.f32 0.0, %v915
      %v917 = vpop.f32.mrb[0].mxu0
      %v918 = vadd.f32 0.0, %v917
      %919 = vmatprep.mubr.bf16.mxu0 %v836
      %920 = vmatmul.mubr.bf16.gmra.mrb[0].mxu0 %v686
      %v921 = vpop.f32.mrb[0].mxu0
      %v922 = vadd.f32 0.0, %v921
      %v923 = vpop.f32.mrb[0].mxu0
      %v924 = vadd.f32 0.0, %v923
      %v925 = vpop.f32.mrb[0].mxu0
      %v926 = vadd.f32 0.0, %v925
      %v927 = vpop.f32.mrb[0].mxu0
      %v928 = vadd.f32 0.0, %v927
      %929 = vmatprep.mubr.bf16.mxu0 %v839
      %930 = vmatmul.mubr.bf16.gmra.mrb[0].mxu0 %v688
      %v931 = vpop.f32.mrb[0].mxu0
      %v932 = vadd.f32 0.0, %v931
      %v933 = vpop.f32.mrb[0].mxu0
      %v934 = vadd.f32 0.0, %v933
      %v935 = vpop.f32.mrb[0].mxu0
      %v936 = vadd.f32 0.0, %v935
      %v937 = vpop.f32.mrb[0].mxu0
      %v938 = vadd.f32 0.0, %v937
      %939 = vmatprep.mubr.bf16.mxu0 %v842
      %940 = vmatmul.mubr.bf16.gmra.mrb[0].mxu0 %v690
      %v941 = vpop.f32.mrb[0].mxu0
      %v942 = vadd.f32 0.0, %v941
      %v943 = vpop.f32.mrb[0].mxu0
      %v944 = vadd.f32 0.0, %v943
      %v945 = vpop.f32.mrb[0].mxu0
      %v946 = vadd.f32 0.0, %v945
      %v947 = vpop.f32.mrb[0].mxu0
      %v948 = vadd.f32 0.0, %v947
      %949 = vmatprep.mubr.bf16.mxu0 %v845
      %950 = vmatmul.mubr.bf16.gmra.mrb[0].mxu0 %v692
      %v951 = vpop.f32.mrb[0].mxu0
      %v952 = vadd.f32 0.0, %v951
      %v953 = vpop.f32.mrb[0].mxu0
      %v954 = vadd.f32 0.0, %v953
      %v955 = vpop.f32.mrb[0].mxu0
      %v956 = vadd.f32 0.0, %v955
      %v957 = vpop.f32.mrb[0].mxu0
      %v958 = vadd.f32 0.0, %v957
      %959 = vdwg.mxu0
      %v962 = vunpack.c.l.b16 %v564
      %v963 = vunpack.c.h.b16 %v564
      %v964 = vunpack.c.l.b16 %v565
      %v965 = vunpack.c.h.b16 %v565
      %v966 = vpack.c.b16 %v964, %v962
      %v967 = vpack.c.b16 %v965, %v963
      %v993 = vunpack.c.l.b16 %v580
      %v994 = vunpack.c.h.b16 %v580
      %v995 = vunpack.c.l.b16 %v581
      %v996 = vunpack.c.h.b16 %v581
      %v997 = vunpack.c.l.b16 %v582
      %v998 = vunpack.c.h.b16 %v582
      %v999 = vunpack.c.l.b16 %v583
      %v1000 = vunpack.c.h.b16 %v583
      %v1001 = vunpack.c.l.b16 %v584
      %v1002 = vunpack.c.h.b16 %v584
      %v1003 = vunpack.c.l.b16 %v585
      %v1004 = vunpack.c.h.b16 %v585
      %v1005 = vunpack.c.l.b16 %v586
      %v1006 = vunpack.c.h.b16 %v586
      %v1007 = vunpack.c.l.b16 %v587
      %v1008 = vunpack.c.h.b16 %v587
      %v1009 = vunpack.c.l.b16 %v588
      %v1010 = vunpack.c.h.b16 %v588
      %v1011 = vunpack.c.l.b16 %v589
      %v1012 = vunpack.c.h.b16 %v589
      %v1013 = vunpack.c.l.b16 %v590
      %v1014 = vunpack.c.h.b16 %v590
      %v1015 = vunpack.c.l.b16 %v591
      %v1016 = vunpack.c.h.b16 %v591
      %v1017 = vunpack.c.l.b16 %v592
      %v1018 = vunpack.c.h.b16 %v592
      %v1019 = vunpack.c.l.b16 %v593
      %v1020 = vunpack.c.h.b16 %v593
      %v1021 = vunpack.c.l.b16 %v594
      %v1022 = vunpack.c.h.b16 %v594
      %v1023 = vunpack.c.l.b16 %v595
      %v1024 = vunpack.c.h.b16 %v595
      %v1025 = vunpack.c.l.b16 %v596
      %v1026 = vunpack.c.h.b16 %v596
      %v1027 = vunpack.c.l.b16 %v597
      %v1028 = vunpack.c.h.b16 %v597
      %v1029 = vunpack.c.l.b16 %v598
      %v1030 = vunpack.c.h.b16 %v598
      %v1031 = vunpack.c.l.b16 %v599
      %v1032 = vunpack.c.h.b16 %v599
      %v1033 = vunpack.c.l.b16 %v600
      %v1034 = vunpack.c.h.b16 %v600
      %v1035 = vunpack.c.l.b16 %v601
      %v1036 = vunpack.c.h.b16 %v601
      %v1037 = vunpack.c.l.b16 %v602
      %v1038 = vunpack.c.h.b16 %v602
      %v1039 = vunpack.c.l.b16 %v603
      %v1040 = vunpack.c.h.b16 %v603
      %v1041 = vpack.c.b16 %v995, %v993
      %v1042 = vpack.c.b16 %v996, %v994
      %v1043 = vpack.c.b16 %v999, %v997
      %v1044 = vpack.c.b16 %v1000, %v998
      %v1045 = vpack.c.b16 %v1003, %v1001
      %v1046 = vpack.c.b16 %v1004, %v1002
      %v1047 = vpack.c.b16 %v1007, %v1005
      %v1048 = vpack.c.b16 %v1008, %v1006
      %v1049 = vpack.c.b16 %v1011, %v1009
      %v1050 = vpack.c.b16 %v1012, %v1010
      %v1051 = vpack.c.b16 %v1015, %v1013
      %v1052 = vpack.c.b16 %v1016, %v1014
      %v1053 = vpack.c.b16 %v1019, %v1017
      %v1054 = vpack.c.b16 %v1020, %v1018
      %v1055 = vpack.c.b16 %v1023, %v1021
      %v1056 = vpack.c.b16 %v1024, %v1022
      %v1057 = vpack.c.b16 %v1027, %v1025
      %v1058 = vpack.c.b16 %v1028, %v1026
      %v1059 = vpack.c.b16 %v1031, %v1029
      %v1060 = vpack.c.b16 %v1032, %v1030
      %v1061 = vpack.c.b16 %v1035, %v1033
      %v1062 = vpack.c.b16 %v1036, %v1034
      %v1063 = vpack.c.b16 %v1039, %v1037
      %v1064 = vpack.c.b16 %v1040, %v1038
      %v1090 = vsel %vm822, %v967, 0
      %1092 = vmatprep.subr.bf16.mxu0 %v1042
      %1093 = vmatpush1.bf16.msra.mxu0 %v1041
      %1094 = vmatprep.subr.bf16.mxu0 %v1044
      %1095 = vmatpush1.bf16.msra.mxu0 %v1043
      %1096 = vmatprep.subr.bf16.mxu0 %v1046
      %1097 = vmatpush1.bf16.msra.mxu0 %v1045
      %1098 = vmatprep.subr.bf16.mxu0 %v1048
      %1099 = vmatpush1.bf16.msra.mxu0 %v1047
      %1100 = vmatprep.subr.bf16.mxu0 %v1050
      %1101 = vmatpush1.bf16.msra.mxu0 %v1049
      %1102 = vmatprep.subr.bf16.mxu0 %v1052
      %1103 = vmatpush1.bf16.msra.mxu0 %v1051
      %1104 = vmatprep.subr.bf16.mxu0 %v1054
      %1105 = vmatpush1.bf16.msra.mxu0 %v1053
      %1106 = vmatprep.subr.bf16.mxu0 %v1056
      %1107 = vmatpush1.bf16.msra.mxu0 %v1055
      %1108 = vmatprep.subr.bf16.mxu0 %v1058
      %1109 = vmatpush1.bf16.msra.mxu0 %v1057
      %1110 = vmatprep.subr.bf16.mxu0 %v1060
      %1111 = vmatpush1.bf16.msra.mxu0 %v1059
      %1112 = vmatprep.subr.bf16.mxu0 %v1062
      %1113 = vmatpush1.bf16.msra.mxu0 %v1061
      %1114 = vmatprep.subr.bf16.mxu0 %v1064
      %1115 = vmatpush1.bf16.msra.mxu0 %v1063
      %1116 = vmatprep.subr.bf16.mxu0 0
      %1117 = vmatpush1.bf16.msra.mxu0 0
      %1118 = vmatprep.subr.bf16.mxu0 0
      %1119 = vmatpush1.bf16.msra.mxu0 0
      %1120 = vmatprep.subr.bf16.mxu0 0
      %1121 = vmatpush1.bf16.msra.mxu0 0
      %1122 = vmatprep.subr.bf16.mxu0 0
      %1123 = vmatpush1.bf16.msra.mxu0 0
      %1124 = vmatprep.mubr.bf16.mxu0 %v1090
      %1125 = vmatmul.mubr.bf16.gmra.mrb[0].mxu0 %v966
      %v1126 = vpop.f32.mrb[0].mxu0
      %v1127 = vadd.f32 %v882, %v1126
      %v1128 = vpop.f32.mrb[0].mxu0
      %v1129 = vadd.f32 %v884, %v1128
      %v1130 = vpop.f32.mrb[0].mxu0
      %v1131 = vadd.f32 %v886, %v1130
      %v1132 = vpop.f32.mrb[0].mxu0
      %v1133 = vadd.f32 %v888, %v1132
      %1134 = vmatprep.mubr.bf16.mxu0 %v824
      %1135 = vmatmul.mubr.bf16.gmra.mrb[0].mxu0 %v678
      %v1136 = vpop.f32.mrb[0].mxu0
      %v1137 = vadd.f32 %v892, %v1136
      %v1138 = vpop.f32.mrb[0].mxu0
      %v1139 = vadd.f32 %v894, %v1138
      %v1140 = vpop.f32.mrb[0].mxu0
      %v1141 = vadd.f32 %v896, %v1140
      %v1142 = vpop.f32.mrb[0].mxu0
      %v1143 = vadd.f32 %v898, %v1142
      %1144 = vmatprep.mubr.bf16.mxu0 %v827
      %1145 = vmatmul.mubr.bf16.gmra.mrb[0].mxu0 %v680
      %v1146 = vpop.f32.mrb[0].mxu0
      %v1147 = vadd.f32 %v902, %v1146
      %v1148 = vpop.f32.mrb[0].mxu0
      %v1149 = vadd.f32 %v904, %v1148
      %v1150 = vpop.f32.mrb[0].mxu0
      %v1151 = vadd.f32 %v906, %v1150
      %v1152 = vpop.f32.mrb[0].mxu0
      %v1153 = vadd.f32 %v908, %v1152
      %1154 = vmatprep.mubr.bf16.mxu0 %v830
      %1155 = vmatmul.mubr.bf16.gmra.mrb[0].mxu0 %v682
      %v1156 = vpop.f32.mrb[0].mxu0
      %v1157 = vadd.f32 %v912, %v1156
      %v1158 = vpop.f32.mrb[0].mxu0
      %v1159 = vadd.f32 %v914, %v1158
      %v1160 = vpop.f32.mrb[0].mxu0
      %v1161 = vadd.f32 %v916, %v1160
      %v1162 = vpop.f32.mrb[0].mxu0
      %v1163 = vadd.f32 %v918, %v1162
      %1164 = vmatprep.mubr.bf16.mxu0 %v833
      %1165 = vmatmul.mubr.bf16.gmra.mrb[0].mxu0 %v684
      %v1166 = vpop.f32.mrb[0].mxu0
      %v1167 = vadd.f32 %v922, %v1166
      %v1168 = vpop.f32.mrb[0].mxu0
      %v1169 = vadd.f32 %v924, %v1168
      %v1170 = vpop.f32.mrb[0].mxu0
      %v1171 = vadd.f32 %v926, %v1170
      %v1172 = vpop.f32.mrb[0].mxu0
      %v1173 = vadd.f32 %v928, %v1172
      %1174 = vmatprep.mubr.bf16.mxu0 %v836
      %1175 = vmatmul.mubr.bf16.gmra.mrb[0].mxu0 %v686
      %v1176 = vpop.f32.mrb[0].mxu0
      %v1177 = vadd.f32 %v932, %v1176
      %v1178 = vpop.f32.mrb[0].mxu0
      %v1179 = vadd.f32 %v934, %v1178
      %v1180 = vpop.f32.mrb[0].mxu0
      %v1181 = vadd.f32 %v936, %v1180
      %v1182 = vpop.f32.mrb[0].mxu0
      %v1183 = vadd.f32 %v938, %v1182
      %1184 = vmatprep.mubr.bf16.mxu0 %v839
      %1185 = vmatmul.mubr.bf16.gmra.mrb[0].mxu0 %v688
      %v1186 = vpop.f32.mrb[0].mxu0
      %v1187 = vadd.f32 %v942, %v1186
      %v1188 = vpop.f32.mrb[0].mxu0
      %v1189 = vadd.f32 %v944, %v1188
      %v1190 = vpop.f32.mrb[0].mxu0
      %v1191 = vadd.f32 %v946, %v1190
      %v1192 = vpop.f32.mrb[0].mxu0
      %v1193 = vadd.f32 %v948, %v1192
      %1194 = vmatprep.mubr.bf16.mxu0 %v842
      %1195 = vmatmul.mubr.bf16.gmra.mrb[0].mxu0 %v690
      %v1196 = vpop.f32.mrb[0].mxu0
      %v1197 = vadd.f32 %v952, %v1196
      %v1198 = vpop.f32.mrb[0].mxu0
      %v1199 = vadd.f32 %v954, %v1198
      %v1200 = vpop.f32.mrb[0].mxu0
      %v1201 = vadd.f32 %v956, %v1200
      %v1202 = vpop.f32.mrb[0].mxu0
      %v1203 = vadd.f32 %v958, %v1202
      %1204 = vdwg.mxu0
      %v1205 = vld [vmem:[%s300 + $0x20] sm:$0xff]
      %v1206 = vld [vmem:[%s300 + $0x28] sm:$0xff]
      %v1207 = vld [vmem:[%s300 + $0x30] sm:$0xff]
      %v1208 = vld [vmem:[%s300 + $0x38] sm:$0xff]
      %v1209 = vld [vmem:[%s300 + $0x40] sm:$0xff]
      %v1210 = vld [vmem:[%s300 + $0x48] sm:$0xff]
      %v1211 = vld [vmem:[%s300 + $0x50] sm:$0xff]
      %v1212 = vld [vmem:[%s300 + $0x58] sm:$0xff]
      %v1213 = vld [vmem:[%s300 + $0x60] sm:$0xff]
      %v1214 = vld [vmem:[%s300 + $0x68] sm:$0xff]
      %v1215 = vld [vmem:[%s300 + $0x70] sm:$0xff]
      %v1216 = vld [vmem:[%s300 + $0x78] sm:$0xff]
      %v1217 = vld [vmem:[%s300 + $0x80] sm:$0xff]
      %v1218 = vld [vmem:[%s300 + $0x88] sm:$0xff]
      %v1219 = vld [vmem:[%s300 + $0x90] sm:$0xff]
      %v1220 = vld [vmem:[%s300 + $0x98] sm:$0xff]
      %v1221 = vld [vmem:[%s1 + $0x180] sm:$0xff]
      %v1222 = vld [vmem:[%s1 + $0x188] sm:$0xff]
      %v1223 = vld [vmem:[%s1 + $0x190] sm:$0xff]
      %v1224 = vld [vmem:[%s1 + $0x198] sm:$0xff]
      %v1225 = vld [vmem:[%s1 + $0x1a0] sm:$0xff]
      %v1226 = vld [vmem:[%s1 + $0x1a8] sm:$0xff]
      %v1227 = vld [vmem:[%s1 + $0x1b0] sm:$0xff]
      %v1228 = vld [vmem:[%s1 + $0x1b8] sm:$0xff]
      %v1229 = vld [vmem:[%s1 + $0x1c0] sm:$0xff]
      %v1230 = vld [vmem:[%s1 + $0x1c8] sm:$0xff]
      %v1231 = vld [vmem:[%s1 + $0x1d0] sm:$0xff]
      %v1232 = vld [vmem:[%s1 + $0x1d8] sm:$0xff]
      %v1233 = vld [vmem:[%s1 + $0x1e0] sm:$0xff]
      %v1234 = vld [vmem:[%s1 + $0x1e8] sm:$0xff]
      %v1235 = vld [vmem:[%s1 + $0x1f0] sm:$0xff]
      %v1236 = vld [vmem:[%s1 + $0x1f8] sm:$0xff]
      %v1237 = vld [vmem:[%s1 + $0x200] sm:$0xff]
      %v1238 = vld [vmem:[%s1 + $0x208] sm:$0xff]
      %v1239 = vld [vmem:[%s1 + $0x210] sm:$0xff]
      %v1240 = vld [vmem:[%s1 + $0x218] sm:$0xff]
      %v1241 = vld [vmem:[%s1 + $0x220] sm:$0xff]
      %v1242 = vld [vmem:[%s1 + $0x228] sm:$0xff]
      %v1243 = vld [vmem:[%s1 + $0x230] sm:$0xff]
      %v1244 = vld [vmem:[%s1 + $0x238] sm:$0xff]
      %v1261 = vunpack.c.l.b16 %v1205
      %v1262 = vunpack.c.h.b16 %v1205
      %v1263 = vunpack.c.l.b16 %v1206
      %v1264 = vunpack.c.h.b16 %v1206
      %v1265 = vunpack.c.l.b16 %v1207
      %v1266 = vunpack.c.h.b16 %v1207
      %v1267 = vunpack.c.l.b16 %v1208
      %v1268 = vunpack.c.h.b16 %v1208
      %v1269 = vunpack.c.l.b16 %v1209
      %v1270 = vunpack.c.h.b16 %v1209
      %v1271 = vunpack.c.l.b16 %v1210
      %v1272 = vunpack.c.h.b16 %v1210
      %v1273 = vunpack.c.l.b16 %v1211
      %v1274 = vunpack.c.h.b16 %v1211
      %v1275 = vunpack.c.l.b16 %v1212
      %v1276 = vunpack.c.h.b16 %v1212
      %v1277 = vunpack.c.l.b16 %v1213
      %v1278 = vunpack.c.h.b16 %v1213
      %v1279 = vunpack.c.l.b16 %v1214
      %v1280 = vunpack.c.h.b16 %v1214
      %v1281 = vunpack.c.l.b16 %v1215
      %v1282 = vunpack.c.h.b16 %v1215
      %v1283 = vunpack.c.l.b16 %v1216
      %v1284 = vunpack.c.h.b16 %v1216
      %v1285 = vunpack.c.l.b16 %v1217
      %v1286 = vunpack.c.h.b16 %v1217
      %v1287 = vunpack.c.l.b16 %v1218
      %v1288 = vunpack.c.h.b16 %v1218
      %v1289 = vunpack.c.l.b16 %v1219
      %v1290 = vunpack.c.h.b16 %v1219
      %v1291 = vunpack.c.l.b16 %v1220
      %v1292 = vunpack.c.h.b16 %v1220
      %v1293 = vpack.c.b16 %v1263, %v1261
      %v1294 = vpack.c.b16 %v1264, %v1262
      %v1295 = vpack.c.b16 %v1267, %v1265
      %v1296 = vpack.c.b16 %v1268, %v1266
      %v1297 = vpack.c.b16 %v1271, %v1269
      %v1298 = vpack.c.b16 %v1272, %v1270
      %v1299 = vpack.c.b16 %v1275, %v1273
      %v1300 = vpack.c.b16 %v1276, %v1274
      %v1301 = vpack.c.b16 %v1279, %v1277
      %v1302 = vpack.c.b16 %v1280, %v1278
      %v1303 = vpack.c.b16 %v1283, %v1281
      %v1304 = vpack.c.b16 %v1284, %v1282
      %v1305 = vpack.c.b16 %v1287, %v1285
      %v1306 = vpack.c.b16 %v1288, %v1286
      %v1307 = vpack.c.b16 %v1291, %v1289
      %v1308 = vpack.c.b16 %v1292, %v1290
      %v1341 = vunpack.c.l.b16 %v1221
      %v1342 = vunpack.c.h.b16 %v1221
      %v1343 = vunpack.c.l.b16 %v1222
      %v1344 = vunpack.c.h.b16 %v1222
      %v1345 = vunpack.c.l.b16 %v1223
      %v1346 = vunpack.c.h.b16 %v1223
      %v1347 = vunpack.c.l.b16 %v1224
      %v1348 = vunpack.c.h.b16 %v1224
      %v1349 = vunpack.c.l.b16 %v1225
      %v1350 = vunpack.c.h.b16 %v1225
      %v1351 = vunpack.c.l.b16 %v1226
      %v1352 = vunpack.c.h.b16 %v1226
      %v1353 = vunpack.c.l.b16 %v1227
      %v1354 = vunpack.c.h.b16 %v1227
      %v1355 = vunpack.c.l.b16 %v1228
      %v1356 = vunpack.c.h.b16 %v1228
      %v1357 = vunpack.c.l.b16 %v1229
      %v1358 = vunpack.c.h.b16 %v1229
      %v1359 = vunpack.c.l.b16 %v1230
      %v1360 = vunpack.c.h.b16 %v1230
      %v1361 = vunpack.c.l.b16 %v1231
      %v1362 = vunpack.c.h.b16 %v1231
      %v1363 = vunpack.c.l.b16 %v1232
      %v1364 = vunpack.c.h.b16 %v1232
      %v1365 = vunpack.c.l.b16 %v1233
      %v1366 = vunpack.c.h.b16 %v1233
      %v1367 = vunpack.c.l.b16 %v1234
      %v1368 = vunpack.c.h.b16 %v1234
      %v1369 = vunpack.c.l.b16 %v1235
      %v1370 = vunpack.c.h.b16 %v1235
      %v1371 = vunpack.c.l.b16 %v1236
      %v1372 = vunpack.c.h.b16 %v1236
      %v1373 = vunpack.c.l.b16 %v1237
      %v1374 = vunpack.c.h.b16 %v1237
      %v1375 = vunpack.c.l.b16 %v1238
      %v1376 = vunpack.c.h.b16 %v1238
      %v1377 = vunpack.c.l.b16 %v1239
      %v1378 = vunpack.c.h.b16 %v1239
      %v1379 = vunpack.c.l.b16 %v1240
      %v1380 = vunpack.c.h.b16 %v1240
      %v1381 = vunpack.c.l.b16 %v1241
      %v1382 = vunpack.c.h.b16 %v1241
      %v1383 = vunpack.c.l.b16 %v1242
      %v1384 = vunpack.c.h.b16 %v1242
      %v1385 = vunpack.c.l.b16 %v1243
      %v1386 = vunpack.c.h.b16 %v1243
      %v1387 = vunpack.c.l.b16 %v1244
      %v1388 = vunpack.c.h.b16 %v1244
      %v1389 = vpack.c.b16 %v1343, %v1341
      %v1390 = vpack.c.b16 %v1344, %v1342
      %v1391 = vpack.c.b16 %v1347, %v1345
      %v1392 = vpack.c.b16 %v1348, %v1346
      %v1393 = vpack.c.b16 %v1351, %v1349
      %v1394 = vpack.c.b16 %v1352, %v1350
      %v1395 = vpack.c.b16 %v1355, %v1353
      %v1396 = vpack.c.b16 %v1356, %v1354
      %v1397 = vpack.c.b16 %v1359, %v1357
      %v1398 = vpack.c.b16 %v1360, %v1358
      %v1399 = vpack.c.b16 %v1363, %v1361
      %v1400 = vpack.c.b16 %v1364, %v1362
      %v1401 = vpack.c.b16 %v1367, %v1365
      %v1402 = vpack.c.b16 %v1368, %v1366
      %v1403 = vpack.c.b16 %v1371, %v1369
      %v1404 = vpack.c.b16 %v1372, %v1370
      %v1405 = vpack.c.b16 %v1375, %v1373
      %v1406 = vpack.c.b16 %v1376, %v1374
      %v1407 = vpack.c.b16 %v1379, %v1377
      %v1408 = vpack.c.b16 %v1380, %v1378
      %v1409 = vpack.c.b16 %v1383, %v1381
      %v1410 = vpack.c.b16 %v1384, %v1382
      %v1411 = vpack.c.b16 %v1387, %v1385
      %v1412 = vpack.c.b16 %v1388, %v1386
      %v1438 = vsel %vm822, %v1294, 0
      %v1441 = vsel %vm822, %v1296, 0
      %v1444 = vsel %vm822, %v1298, 0
      %v1447 = vsel %vm822, %v1300, 0
      %v1450 = vsel %vm822, %v1302, 0
      %v1453 = vsel %vm822, %v1304, 0
      %v1456 = vsel %vm822, %v1306, 0
      %v1459 = vsel %vm822, %v1308, 0
      %1461 = vmatprep.subr.bf16.mxu0 %v1390
      %1462 = vmatpush1.bf16.msra.mxu0 %v1389
      %1463 = vmatprep.subr.bf16.mxu0 %v1392
      %1464 = vmatpush1.bf16.msra.mxu0 %v1391
      %1465 = vmatprep.subr.bf16.mxu0 %v1394
      %1466 = vmatpush1.bf16.msra.mxu0 %v1393
      %1467 = vmatprep.subr.bf16.mxu0 %v1396
      %1468 = vmatpush1.bf16.msra.mxu0 %v1395
      %1469 = vmatprep.subr.bf16.mxu0 %v1398
      %1470 = vmatpush1.bf16.msra.mxu0 %v1397
      %1471 = vmatprep.subr.bf16.mxu0 %v1400
      %1472 = vmatpush1.bf16.msra.mxu0 %v1399
      %1473 = vmatprep.subr.bf16.mxu0 %v1402
      %1474 = vmatpush1.bf16.msra.mxu0 %v1401
      %1475 = vmatprep.subr.bf16.mxu0 %v1404
      %1476 = vmatpush1.bf16.msra.mxu0 %v1403
      %1477 = vmatprep.subr.bf16.mxu0 %v1406
      %1478 = vmatpush1.bf16.msra.mxu0 %v1405
      %1479 = vmatprep.subr.bf16.mxu0 %v1408
      %1480 = vmatpush1.bf16.msra.mxu0 %v1407
      %1481 = vmatprep.subr.bf16.mxu0 %v1410
      %1482 = vmatpush1.bf16.msra.mxu0 %v1409
      %1483 = vmatprep.subr.bf16.mxu0 %v1412
      %1484 = vmatpush1.bf16.msra.mxu0 %v1411
      %1485 = vmatprep.subr.bf16.mxu0 0
      %1486 = vmatpush1.bf16.msra.mxu0 0
      %1487 = vmatprep.subr.bf16.mxu0 0
      %1488 = vmatpush1.bf16.msra.mxu0 0
      %1489 = vmatprep.subr.bf16.mxu0 0
      %1490 = vmatpush1.bf16.msra.mxu0 0
      %1491 = vmatprep.subr.bf16.mxu0 0
      %1492 = vmatpush1.bf16.msra.mxu0 0
      %1493 = vmatprep.mubr.bf16.mxu0 %v1438
      %1494 = vmatmul.mubr.bf16.gmra.mrb[0].mxu0 %v1293
      %v1495 = vpop.f32.mrb[0].mxu0
      %v1496 = vadd.f32 0.0, %v1495
      %v1497 = vpop.f32.mrb[0].mxu0
      %v1498 = vadd.f32 0.0, %v1497
      %v1499 = vpop.f32.mrb[0].mxu0
      %v1500 = vadd.f32 0.0, %v1499
      %v1501 = vpop.f32.mrb[0].mxu0
      %v1502 = vadd.f32 0.0, %v1501
      %1503 = vmatprep.mubr.bf16.mxu0 %v1441
      %1504 = vmatmul.mubr.bf16.gmra.mrb[0].mxu0 %v1295
      %v1505 = vpop.f32.mrb[0].mxu0
      %v1506 = vadd.f32 0.0, %v1505
      %v1507 = vpop.f32.mrb[0].mxu0
      %v1508 = vadd.f32 0.0, %v1507
      %v1509 = vpop.f32.mrb[0].mxu0
      %v1510 = vadd.f32 0.0, %v1509
      %v1511 = vpop.f32.mrb[0].mxu0
      %v1512 = vadd.f32 0.0, %v1511
      %1513 = vmatprep.mubr.bf16.mxu0 %v1444
      %1514 = vmatmul.mubr.bf16.gmra.mrb[0].mxu0 %v1297
      %v1515 = vpop.f32.mrb[0].mxu0
      %v1516 = vadd.f32 0.0, %v1515
      %v1517 = vpop.f32.mrb[0].mxu0
      %v1518 = vadd.f32 0.0, %v1517
      %v1519 = vpop.f32.mrb[0].mxu0
      %v1520 = vadd.f32 0.0, %v1519
      %v1521 = vpop.f32.mrb[0].mxu0
      %v1522 = vadd.f32 0.0, %v1521
      %1523 = vmatprep.mubr.bf16.mxu0 %v1447
      %1524 = vmatmul.mubr.bf16.gmra.mrb[0].mxu0 %v1299
      %v1525 = vpop.f32.mrb[0].mxu0
      %v1526 = vadd.f32 0.0, %v1525
      %v1527 = vpop.f32.mrb[0].mxu0
      %v1528 = vadd.f32 0.0, %v1527
      %v1529 = vpop.f32.mrb[0].mxu0
      %v1530 = vadd.f32 0.0, %v1529
      %v1531 = vpop.f32.mrb[0].mxu0
      %v1532 = vadd.f32 0.0, %v1531
      %1533 = vmatprep.mubr.bf16.mxu0 %v1450
      %1534 = vmatmul.mubr.bf16.gmra.mrb[0].mxu0 %v1301
      %v1535 = vpop.f32.mrb[0].mxu0
      %v1536 = vadd.f32 0.0, %v1535
      %v1537 = vpop.f32.mrb[0].mxu0
      %v1538 = vadd.f32 0.0, %v1537
      %v1539 = vpop.f32.mrb[0].mxu0
      %v1540 = vadd.f32 0.0, %v1539
      %v1541 = vpop.f32.mrb[0].mxu0
      %v1542 = vadd.f32 0.0, %v1541
      %1543 = vmatprep.mubr.bf16.mxu0 %v1453
      %1544 = vmatmul.mubr.bf16.gmra.mrb[0].mxu0 %v1303
      %v1545 = vpop.f32.mrb[0].mxu0
      %v1546 = vadd.f32 0.0, %v1545
      %v1547 = vpop.f32.mrb[0].mxu0
      %v1548 = vadd.f32 0.0, %v1547
      %v1549 = vpop.f32.mrb[0].mxu0
      %v1550 = vadd.f32 0.0, %v1549
      %v1551 = vpop.f32.mrb[0].mxu0
      %v1552 = vadd.f32 0.0, %v1551
      %1553 = vmatprep.mubr.bf16.mxu0 %v1456
      %1554 = vmatmul.mubr.bf16.gmra.mrb[0].mxu0 %v1305
      %v1555 = vpop.f32.mrb[0].mxu0
      %v1556 = vadd.f32 0.0, %v1555
      %v1557 = vpop.f32.mrb[0].mxu0
      %v1558 = vadd.f32 0.0, %v1557
      %v1559 = vpop.f32.mrb[0].mxu0
      %v1560 = vadd.f32 0.0, %v1559
      %v1561 = vpop.f32.mrb[0].mxu0
      %v1562 = vadd.f32 0.0, %v1561
      %1563 = vmatprep.mubr.bf16.mxu0 %v1459
      %1564 = vmatmul.mubr.bf16.gmra.mrb[0].mxu0 %v1307
      %v1565 = vpop.f32.mrb[0].mxu0
      %v1566 = vadd.f32 0.0, %v1565
      %v1567 = vpop.f32.mrb[0].mxu0
      %v1568 = vadd.f32 0.0, %v1567
      %v1569 = vpop.f32.mrb[0].mxu0
      %v1570 = vadd.f32 0.0, %v1569
      %v1571 = vpop.f32.mrb[0].mxu0
      %v1572 = vadd.f32 0.0, %v1571
      %1573 = vdwg.mxu0
      %v1574 = vadd.f32 %v1127, %v1496
      %v1575 = vadd.f32 %v1129, %v1498
      %v1576 = vadd.f32 %v1131, %v1500
      %v1577 = vadd.f32 %v1133, %v1502
      %v1578 = vadd.f32 %v1137, %v1506
      %v1579 = vadd.f32 %v1139, %v1508
      %v1580 = vadd.f32 %v1141, %v1510
      %v1581 = vadd.f32 %v1143, %v1512
      %v1582 = vadd.f32 %v1147, %v1516
      %v1583 = vadd.f32 %v1149, %v1518
      %v1584 = vadd.f32 %v1151, %v1520
      %v1585 = vadd.f32 %v1153, %v1522
      %v1586 = vadd.f32 %v1157, %v1526
      %v1587 = vadd.f32 %v1159, %v1528
      %v1588 = vadd.f32 %v1161, %v1530
      %v1589 = vadd.f32 %v1163, %v1532
      %v1590 = vadd.f32 %v1167, %v1536
      %v1591 = vadd.f32 %v1169, %v1538
      %v1592 = vadd.f32 %v1171, %v1540
      %v1593 = vadd.f32 %v1173, %v1542
      %v1594 = vadd.f32 %v1177, %v1546
      %v1595 = vadd.f32 %v1179, %v1548
      %v1596 = vadd.f32 %v1181, %v1550
      %v1597 = vadd.f32 %v1183, %v1552
      %v1598 = vadd.f32 %v1187, %v1556
      %v1599 = vadd.f32 %v1189, %v1558
      %v1600 = vadd.f32 %v1191, %v1560
      %v1601 = vadd.f32 %v1193, %v1562
      %v1602 = vadd.f32 %v1197, %v1566
      %v1603 = vadd.f32 %v1199, %v1568
      %v1604 = vadd.f32 %v1201, %v1570
      %v1605 = vadd.f32 %v1203, %v1572
      %v1606 = vld [vmem:[%s2] sm:$0x1]
      %v1608 = vlaneseq
      %v1609 = vshrl.u32 %v1608, 7
      %v1610 = vsub.s32 0, %v1609
      %v1611 = vrot.slane %v1606, %v1610
      %v1613 = vadd.f32 %v1574, %v1611
      %v1614 = vadd.f32 %v1576, %v1611
      %v1615 = vadd.f32 %v1578, %v1611
      %v1616 = vadd.f32 %v1580, %v1611
      %v1617 = vadd.f32 %v1582, %v1611
      %v1618 = vadd.f32 %v1584, %v1611
      %v1619 = vadd.f32 %v1586, %v1611
      %v1620 = vadd.f32 %v1588, %v1611
      %v1621 = vadd.f32 %v1590, %v1611
      %v1622 = vadd.f32 %v1592, %v1611
      %v1623 = vadd.f32 %v1594, %v1611
      %v1624 = vadd.f32 %v1596, %v1611
      %v1625 = vadd.f32 %v1598, %v1611
      %v1626 = vadd.f32 %v1600, %v1611
      %v1627 = vadd.f32 %v1602, %v1611
      %v1628 = vadd.f32 %v1604, %v1611
      %v1629 = vmax.f32 %v1613, 0.0
      %v1630 = vmax.f32 %v1614, 0.0
      %v1631 = vmax.f32 %v1615, 0.0
      %v1632 = vmax.f32 %v1616, 0.0
      %v1633 = vmax.f32 %v1617, 0.0
      %v1634 = vmax.f32 %v1618, 0.0
      %v1635 = vmax.f32 %v1619, 0.0
      %v1636 = vmax.f32 %v1620, 0.0
      %v1637 = vmax.f32 %v1621, 0.0
      %v1638 = vmax.f32 %v1622, 0.0
      %v1639 = vmax.f32 %v1623, 0.0
      %v1640 = vmax.f32 %v1624, 0.0
      %v1641 = vmax.f32 %v1625, 0.0
      %v1642 = vmax.f32 %v1626, 0.0
      %v1643 = vmax.f32 %v1627, 0.0
      %v1644 = vmax.f32 %v1628, 0.0
      %v1645 = vld [vmem:[%s3] sm:$0x1]
      %v1647 = vlaneseq
      %v1648 = vshrl.u32 %v1647, 7
      %v1649 = vsub.s32 0, %v1648
      %v1650 = vrot.slane %v1645, %v1649
      %v1652 = vadd.f32 %v1575, %v1650
      %v1653 = vadd.f32 %v1577, %v1650
      %v1654 = vadd.f32 %v1579, %v1650
      %v1655 = vadd.f32 %v1581, %v1650
      %v1656 = vadd.f32 %v1583, %v1650
      %v1657 = vadd.f32 %v1585, %v1650
      %v1658 = vadd.f32 %v1587, %v1650
      %v1659 = vadd.f32 %v1589, %v1650
      %v1660 = vadd.f32 %v1591, %v1650
      %v1661 = vadd.f32 %v1593, %v1650
      %v1662 = vadd.f32 %v1595, %v1650
      %v1663 = vadd.f32 %v1597, %v1650
      %v1664 = vadd.f32 %v1599, %v1650
      %v1665 = vadd.f32 %v1601, %v1650
      %v1666 = vadd.f32 %v1603, %v1650
      %v1667 = vadd.f32 %v1605, %v1650
      %vm1668 = vcmp.eq.s32.totalorder %v532, 1
      %vm1669 = vcmp.eq.s32.totalorder %v533, 1
      %vm1670 = vcmp.eq.s32.totalorder %v534, 1
      %vm1671 = vcmp.eq.s32.totalorder %v535, 1
      %vm1672 = vcmp.eq.s32.totalorder %v536, 1
      %vm1673 = vcmp.eq.s32.totalorder %v537, 1
      %vm1674 = vcmp.eq.s32.totalorder %v538, 1
      %vm1675 = vcmp.eq.s32.totalorder %v539, 1
      %vm1676 = vcmp.eq.s32.totalorder %v540, 1
      %vm1677 = vcmp.eq.s32.totalorder %v541, 1
      %vm1678 = vcmp.eq.s32.totalorder %v542, 1
      %vm1679 = vcmp.eq.s32.totalorder %v543, 1
      %vm1680 = vcmp.eq.s32.totalorder %v544, 1
      %vm1681 = vcmp.eq.s32.totalorder %v545, 1
      %vm1682 = vcmp.eq.s32.totalorder %v546, 1
      %vm1683 = vcmp.eq.s32.totalorder %v547, 1
      %v1684 = vsel %vm1668, %v1629, 0.0
      %v1685 = vsel %vm1669, %v1630, 0.0
      %v1686 = vsel %vm1670, %v1631, 0.0
      %v1687 = vsel %vm1671, %v1632, 0.0
      %v1688 = vsel %vm1672, %v1633, 0.0
      %v1689 = vsel %vm1673, %v1634, 0.0
      %v1690 = vsel %vm1674, %v1635, 0.0
      %v1691 = vsel %vm1675, %v1636, 0.0
      %v1692 = vsel %vm1676, %v1637, 0.0
      %v1693 = vsel %vm1677, %v1638, 0.0
      %v1694 = vsel %vm1678, %v1639, 0.0
      %v1695 = vsel %vm1679, %v1640, 0.0
      %v1696 = vsel %vm1680, %v1641, 0.0
      %v1697 = vsel %vm1681, %v1642, 0.0
      %v1698 = vsel %vm1682, %v1643, 0.0
      %v1699 = vsel %vm1683, %v1644, 0.0
      %v1700 = vpack.c.bf16 %v1685, %v1684
      %v1701 = vpack.c.bf16 %v1687, %v1686
      %v1702 = vpack.c.bf16 %v1689, %v1688
      %v1703 = vpack.c.bf16 %v1691, %v1690
      %v1704 = vpack.c.bf16 %v1693, %v1692
      %v1705 = vpack.c.bf16 %v1695, %v1694
      %v1706 = vpack.c.bf16 %v1697, %v1696
      %v1707 = vpack.c.bf16 %v1699, %v1698
      %1708 = vst [vmem:[#allocation2] sm:$0xff] 0
      %1709 = vst [vmem:[#allocation2 + $0x8] sm:$0xff] 0
      %1710 = vst [vmem:[#allocation2 + $0x10] sm:$0xff] 0
      %vm1711 = vcmask 1040384
      %vm1712 = vsmask.f32 256
      %vm1713 = vmand %vm1711, %vm1712
      %v1714 = vld [vmem:[#allocation2 + $0x18] sm:$0x1]
      %v1715 = vsel %vm1713, 0, %v1714
      %1716 = vst [vmem:[#allocation2 + $0x18] sm:$0x1] %v1715
      %v1717 = vld [vmem:[#allocation2 + $0x20] sm:$0x1]
      %v1718 = vsel %vm1713, 0, %v1717
      %1719 = vst [vmem:[#allocation2 + $0x20] sm:$0x1] %v1718
      %v1720 = vld [vmem:[#allocation2 + $0x28] sm:$0x1]
      %v1721 = vsel %vm1713, 0, %v1720
      %1722 = vst [vmem:[#allocation2 + $0x28] sm:$0x1] %v1721
      %vm1723 = vcmask 1047559
      %vm1724 = vsmask.f32 7966
      %vm1725 = vmand %vm1723, %vm1724
      %v1726 = vld [vmem:[#allocation2 + $0xc0] sm:$0x80]
      %v1727 = vsel %vm1725, 0, %v1726
      %1728 = vst [vmem:[#allocation2 + $0xc0] sm:$0x80] %v1727
      %v1729 = vld [vmem:[#allocation2 + $0xc8] sm:$0x80]
      %v1730 = vsel %vm1725, 0, %v1729
      %1731 = vst [vmem:[#allocation2 + $0xc8] sm:$0x80] %v1730
      %v1732 = vld [vmem:[#allocation2 + $0xd0] sm:$0x80]
      %v1733 = vsel %vm1725, 0, %v1732
      %1734 = vst [vmem:[#allocation2 + $0xd0] sm:$0x80] %v1733
      %1735 = vst [vmem:[#allocation2 + $0xd8] sm:$0xff] 0
      %1736 = vst [vmem:[#allocation2 + $0xe0] sm:$0xff] 0
      %1737 = vst [vmem:[#allocation2 + $0xe8] sm:$0xff] 0
      %v1739 = vshrl.u32 %v1700, 16
      %v1741 = vrot.slane %v1739, 7
      %v1742 = vshll.u32 %v1700, 16
      %v1744 = vor.u32 %v1741, %v1742
      %v1746 = vshrl.u32 %v1701, 16
      %v1748 = vrot.slane %v1746, 7
      %v1749 = vshll.u32 %v1701, 16
      %v1751 = vor.u32 %v1748, %v1749
      %v1752 = vsel %vm1712, %v1741, %v1751
      %v1754 = vshrl.u32 %v1702, 16
      %v1756 = vrot.slane %v1754, 7
      %v1757 = vshll.u32 %v1702, 16
      %v1759 = vor.u32 %v1756, %v1757
      %v1760 = vsel %vm1712, %v1748, %v1759
      %v1762 = vshrl.u32 %v1703, 16
      %v1764 = vrot.slane %v1762, 7
      %v1765 = vshll.u32 %v1703, 16
      %v1767 = vor.u32 %v1764, %v1765
      %v1768 = vsel %vm1712, %v1756, %v1767
      %v1770 = vshrl.u32 %v1704, 16
      %v1772 = vrot.slane %v1770, 7
      %v1773 = vshll.u32 %v1704, 16
      %v1775 = vor.u32 %v1772, %v1773
      %v1776 = vsel %vm1712, %v1764, %v1775
      %v1778 = vshrl.u32 %v1705, 16
      %v1780 = vrot.slane %v1778, 7
      %v1781 = vshll.u32 %v1705, 16
      %v1783 = vor.u32 %v1780, %v1781
      %v1784 = vsel %vm1712, %v1772, %v1783
      %v1786 = vshrl.u32 %v1706, 16
      %v1788 = vrot.slane %v1786, 7
      %v1789 = vshll.u32 %v1706, 16
      %v1791 = vor.u32 %v1788, %v1789
      %v1792 = vsel %vm1712, %v1780, %v1791
      %v1794 = vshrl.u32 %v1707, 16
      %v1796 = vrot.slane %v1794, 7
      %v1797 = vshll.u32 %v1707, 16
      %v1799 = vor.u32 %v1796, %v1797
      %v1800 = vsel %vm1712, %v1788, %v1799
      %vm1810 = vcmask 1047552
      %vm1811 = vsmask.f32 7938
      %vm1812 = vmand %vm1810, %vm1811
      %v1813 = vld [vmem:[#allocation2 + $0x18] sm:$0xff]
      %v1814 = vsel %vm1812, %v1744, %v1813
      %1815 = vst [vmem:[#allocation2 + $0x18] sm:$0xff] %v1814
      %1816 = vst [vmem:[#allocation2 + $0x30] sm:$0xff] %v1752
      %1817 = vst [vmem:[#allocation2 + $0x48] sm:$0xff] %v1760
      %1818 = vst [vmem:[#allocation2 + $0x60] sm:$0xff] %v1768
      %1819 = vst [vmem:[#allocation2 + $0x78] sm:$0xff] %v1776
      %1820 = vst [vmem:[#allocation2 + $0x90] sm:$0xff] %v1784
      %1821 = vst [vmem:[#allocation2 + $0xa8] sm:$0xff] %v1792
      %1822 = vst [vmem:[#allocation2 + $0xc0] sm:$0xff] %v1800
      %v1823 = vld [vmem:[#allocation2 + $0xd8] sm:$0x1]
      %v1824 = vsel %vm1713, %v1796, %v1823
      %1825 = vst [vmem:[#allocation2 + $0xd8] sm:$0x1] %v1824
      %1826 = vst [vmem:[#allocation2 + $0x20] sm:$0xff] %v1700
      %1827 = vst [vmem:[#allocation2 + $0x38] sm:$0xff] %v1701
      %1828 = vst [vmem:[#allocation2 + $0x50] sm:$0xff] %v1702
      %1829 = vst [vmem:[#allocation2 + $0x68] sm:$0xff] %v1703
      %1830 = vst [vmem:[#allocation2 + $0x80] sm:$0xff] %v1704
      %1831 = vst [vmem:[#allocation2 + $0x98] sm:$0xff] %v1705
      %1832 = vst [vmem:[#allocation2 + $0xb0] sm:$0xff] %v1706
      %1833 = vst [vmem:[#allocation2 + $0xc8] sm:$0xff] %v1707
      %vm1834 = vsmask.f32 7424
      %v1835 = vrot.slane %v1742, 1
      %v1836 = vor.u32 %v1739, %v1835
      %v1837 = vrot.slane %v1749, 1
      %v1838 = vsel %vm1834, %v1836, %v1837
      %v1839 = vor.u32 %v1746, %v1837
      %v1840 = vrot.slane %v1757, 1
      %v1841 = vsel %vm1834, %v1839, %v1840
      %v1842 = vor.u32 %v1754, %v1840
      %v1843 = vrot.slane %v1765, 1
      %v1844 = vsel %vm1834, %v1842, %v1843
      %v1845 = vor.u32 %v1762, %v1843
      %v1846 = vrot.slane %v1773, 1
      %v1847 = vsel %vm1834, %v1845, %v1846
      %v1848 = vor.u32 %v1770, %v1846
      %v1849 = vrot.slane %v1781, 1
      %v1850 = vsel %vm1834, %v1848, %v1849
      %v1851 = vor.u32 %v1778, %v1849
      %v1852 = vrot.slane %v1789, 1
      %v1853 = vsel %vm1834, %v1851, %v1852
      %v1854 = vor.u32 %v1786, %v1852
      %v1855 = vrot.slane %v1797, 1
      %v1856 = vsel %vm1834, %v1854, %v1855
      %v1857 = vor.u32 %v1794, %v1855
      %v1867 = vld [vmem:[#allocation2 + $0x10] sm:$0x80]
      %v1868 = vsel %vm1725, %v1835, %v1867
      %1869 = vst [vmem:[#allocation2 + $0x10] sm:$0x80] %v1868
      %1870 = vst [vmem:[#allocation2 + $0x28] sm:$0xff] %v1838
      %1871 = vst [vmem:[#allocation2 + $0x40] sm:$0xff] %v1841
      %1872 = vst [vmem:[#allocation2 + $0x58] sm:$0xff] %v1844
      %1873 = vst [vmem:[#allocation2 + $0x70] sm:$0xff] %v1847
      %1874 = vst [vmem:[#allocation2 + $0x88] sm:$0xff] %v1850
      %1875 = vst [vmem:[#allocation2 + $0xa0] sm:$0xff] %v1853
      %1876 = vst [vmem:[#allocation2 + $0xb8] sm:$0xff] %v1856
      %vm1877 = vmand %vm1810, %vm1834
      %v1878 = vld [vmem:[#allocation2 + $0xd0] sm:$0xff]
      %v1879 = vsel %vm1877, %v1857, %v1878
      %1880 = vst [vmem:[#allocation2 + $0xd0] sm:$0xff] %v1879
      %v1881 = vld [vmem:[#allocation2] sm:$0xff]
      %v1882 = vld [vmem:[#allocation2 + $0x8] sm:$0xff]
      %v1883 = vld [vmem:[#allocation2 + $0x10] sm:$0xff]
      %v1884 = vld [vmem:[#allocation2 + $0x18] sm:$0xff]
      %v1885 = vld [vmem:[#allocation2 + $0x20] sm:$0xff]
      %v1886 = vld [vmem:[#allocation2 + $0x28] sm:$0xff]
      %v1887 = vld [vmem:[#allocation2 + $0x30] sm:$0xff]
      %v1888 = vld [vmem:[#allocation2 + $0x38] sm:$0xff]
      %v1889 = vld [vmem:[#allocation2 + $0x40] sm:$0xff]
      %v1890 = vld [vmem:[#allocation2 + $0x48] sm:$0xff]
      %v1891 = vld [vmem:[#allocation2 + $0x50] sm:$0xff]
      %v1892 = vld [vmem:[#allocation2 + $0x58] sm:$0xff]
      %v1893 = vld [vmem:[#allocation2 + $0x60] sm:$0xff]
      %v1894 = vld [vmem:[#allocation2 + $0x68] sm:$0xff]
      %v1895 = vld [vmem:[#allocation2 + $0x70] sm:$0xff]
      %v1896 = vld [vmem:[#allocation2 + $0x78] sm:$0xff]
      %v1897 = vld [vmem:[#allocation2 + $0x80] sm:$0xff]
      %v1898 = vld [vmem:[#allocation2 + $0x88] sm:$0xff]
      %v1899 = vld [vmem:[#allocation2 + $0x90] sm:$0xff]
      %v1900 = vld [vmem:[#allocation2 + $0x98] sm:$0xff]
      %v1901 = vld [vmem:[#allocation2 + $0xa0] sm:$0xff]
      %v1902 = vld [vmem:[#allocation2 + $0xa8] sm:$0xff]
      %v1903 = vld [vmem:[#allocation2 + $0xb0] sm:$0xff]
      %v1904 = vld [vmem:[#allocation2 + $0xb8] sm:$0xff]
      %v1905 = vld [vmem:[%s4] sm:$0xf]
      %v1906 = vld [vmem:[%s4 + $0x4] sm:$0xf]
      %v1907 = vld [vmem:[%s4 + $0x8] sm:$0xf]
      %v1908 = vld [vmem:[%s4 + $0xc] sm:$0xf]
      %v1909 = vld [vmem:[%s4 + $0x10] sm:$0xf]
      %v1910 = vld [vmem:[%s4 + $0x14] sm:$0xf]
      %v1911 = vld [vmem:[%s4 + $0x18] sm:$0xf]
      %v1912 = vld [vmem:[%s4 + $0x1c] sm:$0xf]
      %v1913 = vld [vmem:[%s4 + $0x20] sm:$0xf]
      %v1914 = vld [vmem:[%s4 + $0x24] sm:$0xf]
      %v1915 = vld [vmem:[%s4 + $0x28] sm:$0xf]
      %v1916 = vld [vmem:[%s4 + $0x2c] sm:$0xf]
      %v1917 = vld [vmem:[%s4 + $0x30] sm:$0xf]
      %v1918 = vld [vmem:[%s4 + $0x34] sm:$0xf]
      %v1919 = vld [vmem:[%s4 + $0x38] sm:$0xf]
      %v1920 = vld [vmem:[%s4 + $0x3c] sm:$0xf]
      %v1921 = vld [vmem:[%s4 + $0x40] sm:$0xf]
      %v1922 = vld [vmem:[%s4 + $0x44] sm:$0xf]
      %v1923 = vld [vmem:[%s4 + $0x48] sm:$0xf]
      %v1924 = vld [vmem:[%s4 + $0x4c] sm:$0xf]
      %v1925 = vld [vmem:[%s4 + $0x50] sm:$0xf]
      %v1926 = vld [vmem:[%s4 + $0x54] sm:$0xf]
      %v1927 = vld [vmem:[%s4 + $0x58] sm:$0xf]
      %v1928 = vld [vmem:[%s4 + $0x5c] sm:$0xf]
      %v1929 = vld [vmem:[%s4 + $0x60] sm:$0xf]
      %v1930 = vld [vmem:[%s4 + $0x64] sm:$0xf]
      %v1931 = vld [vmem:[%s4 + $0x68] sm:$0xf]
      %v1932 = vld [vmem:[%s4 + $0x6c] sm:$0xf]
      %v1933 = vld [vmem:[%s4 + $0x70] sm:$0xf]
      %v1934 = vld [vmem:[%s4 + $0x74] sm:$0xf]
      %v1935 = vld [vmem:[%s4 + $0x78] sm:$0xf]
      %v1936 = vld [vmem:[%s4 + $0x7c] sm:$0xf]
      %v1937 = vld [vmem:[%s4 + $0x80] sm:$0xf]
      %v1938 = vld [vmem:[%s4 + $0x84] sm:$0xf]
      %v1939 = vld [vmem:[%s4 + $0x88] sm:$0xf]
      %v1940 = vld [vmem:[%s4 + $0x8c] sm:$0xf]
      %v1941 = vld [vmem:[%s4 + $0x90] sm:$0xf]
      %v1942 = vld [vmem:[%s4 + $0x94] sm:$0xf]
      %v1943 = vld [vmem:[%s4 + $0x98] sm:$0xf]
      %v1944 = vld [vmem:[%s4 + $0x9c] sm:$0xf]
      %v1945 = vld [vmem:[%s4 + $0xa0] sm:$0xf]
      %v1946 = vld [vmem:[%s4 + $0xa4] sm:$0xf]
      %v1947 = vld [vmem:[%s4 + $0xa8] sm:$0xf]
      %v1948 = vld [vmem:[%s4 + $0xac] sm:$0xf]
      %v1949 = vld [vmem:[%s4 + $0xb0] sm:$0xf]
      %v1950 = vld [vmem:[%s4 + $0xb4] sm:$0xf]
      %v1951 = vld [vmem:[%s4 + $0xb8] sm:$0xf]
      %v1952 = vld [vmem:[%s4 + $0xbc] sm:$0xf]
      %v1953 = vld [vmem:[#allocation2 + $0xc0] sm:$0xff]
      %v1954 = vld [vmem:[#allocation2 + $0xc8] sm:$0xff]
      %v1955 = vld [vmem:[#allocation2 + $0xd0] sm:$0xff]
      %v1956 = vld [vmem:[%s4 + $0xc0] sm:$0xf]
      %v1957 = vld [vmem:[%s4 + $0xc4] sm:$0xf]
      %v1958 = vld [vmem:[%s4 + $0xc8] sm:$0xf]
      %v1959 = vld [vmem:[%s4 + $0xcc] sm:$0xf]
      %v1960 = vld [vmem:[%s4 + $0xd0] sm:$0xf]
      %v1961 = vld [vmem:[%s4 + $0xd4] sm:$0xf]
      %v1962 = vld [vmem:[%s4 + $0xd8] sm:$0xf]
      %v1963 = vld [vmem:[%s4 + $0xdc] sm:$0xf]
      %v1964 = vld [vmem:[%s4 + $0xe0] sm:$0xf]
      %v1965 = vld [vmem:[%s4 + $0xe4] sm:$0xf]
      %v1966 = vld [vmem:[%s4 + $0xe8] sm:$0xf]
      %v1967 = vld [vmem:[%s4 + $0xec] sm:$0xf]
      %v1968 = vld [vmem:[%s4 + $0xf0] sm:$0xf]
      %v1969 = vld [vmem:[%s4 + $0xf4] sm:$0xf]
      %v1970 = vld [vmem:[%s4 + $0xf8] sm:$0xf]
      %v1971 = vld [vmem:[%s4 + $0xfc] sm:$0xf]
      %v1972 = vld [vmem:[%s4 + $0x100] sm:$0xf]
      %v1973 = vld [vmem:[%s4 + $0x104] sm:$0xf]
      %v1974 = vld [vmem:[%s4 + $0x108] sm:$0xf]
      %v1975 = vld [vmem:[%s4 + $0x10c] sm:$0xf]
      %v1976 = vld [vmem:[%s4 + $0x110] sm:$0xf]
      %v1977 = vld [vmem:[%s4 + $0x114] sm:$0xf]
      %v1978 = vld [vmem:[%s4 + $0x118] sm:$0xf]
      %v1979 = vld [vmem:[%s4 + $0x11c] sm:$0xf]
      %v1980 = vld [vmem:[%s4 + $0x120] sm:$0xf]
      %v1981 = vld [vmem:[%s4 + $0x124] sm:$0xf]
      %v1982 = vld [vmem:[%s4 + $0x128] sm:$0xf]
      %v1983 = vld [vmem:[%s4 + $0x12c] sm:$0xf]
      %v1984 = vld [vmem:[%s4 + $0x130] sm:$0xf]
      %v1985 = vld [vmem:[%s4 + $0x134] sm:$0xf]
      %v1986 = vld [vmem:[%s4 + $0x138] sm:$0xf]
      %v1987 = vld [vmem:[%s4 + $0x13c] sm:$0xf]
      %v1988 = vld [vmem:[%s4 + $0x140] sm:$0xf]
      %v1989 = vld [vmem:[%s4 + $0x144] sm:$0xf]
      %v1990 = vld [vmem:[%s4 + $0x148] sm:$0xf]
      %v1991 = vld [vmem:[%s4 + $0x14c] sm:$0xf]
      %v1992 = vld [vmem:[%s4 + $0x150] sm:$0xf]
      %v1993 = vld [vmem:[%s4 + $0x154] sm:$0xf]
      %v1994 = vld [vmem:[%s4 + $0x158] sm:$0xf]
      %v1995 = vld [vmem:[%s4 + $0x15c] sm:$0xf]
      %v1996 = vld [vmem:[%s4 + $0x160] sm:$0xf]
      %v1997 = vld [vmem:[%s4 + $0x164] sm:$0xf]
      %v1998 = vld [vmem:[%s4 + $0x168] sm:$0xf]
      %v1999 = vld [vmem:[%s4 + $0x16c] sm:$0xf]
      %v2000 = vld [vmem:[%s4 + $0x170] sm:$0xf]
      %v2001 = vld [vmem:[%s4 + $0x174] sm:$0xf]
      %v2002 = vld [vmem:[%s4 + $0x178] sm:$0xf]
      %v2003 = vld [vmem:[%s4 + $0x17c] sm:$0xf]
      %v2052 = vunpack.c.l.b16 %v1956
      %v2053 = vunpack.c.l.b16 %v1957
      %v2054 = vunpack.c.l.b16 %v1958
      %v2055 = vunpack.c.l.b16 %v1959
      %v2056 = vunpack.c.l.b16 %v1960
      %v2057 = vunpack.c.l.b16 %v1961
      %v2058 = vunpack.c.l.b16 %v1962
      %v2059 = vunpack.c.l.b16 %v1963
      %v2060 = vunpack.c.l.b16 %v1964
      %v2061 = vunpack.c.l.b16 %v1965
      %v2062 = vunpack.c.l.b16 %v1966
      %v2063 = vunpack.c.l.b16 %v1967
      %v2064 = vunpack.c.l.b16 %v1968
      %v2065 = vunpack.c.l.b16 %v1969
      %v2066 = vunpack.c.l.b16 %v1970
      %v2067 = vunpack.c.l.b16 %v1971
      %v2068 = vunpack.c.l.b16 %v1972
      %v2069 = vunpack.c.l.b16 %v1973
      %v2070 = vunpack.c.l.b16 %v1974
      %v2071 = vunpack.c.l.b16 %v1975
      %v2072 = vunpack.c.l.b16 %v1976
      %v2073 = vunpack.c.l.b16 %v1977
      %v2074 = vunpack.c.l.b16 %v1978
      %v2075 = vunpack.c.l.b16 %v1979
      %v2076 = vunpack.c.l.b16 %v1980
      %v2077 = vunpack.c.l.b16 %v1981
      %v2078 = vunpack.c.l.b16 %v1982
      %v2079 = vunpack.c.l.b16 %v1983
      %v2080 = vunpack.c.l.b16 %v1984
      %v2081 = vunpack.c.l.b16 %v1985
      %v2082 = vunpack.c.l.b16 %v1986
      %v2083 = vunpack.c.l.b16 %v1987
      %v2084 = vunpack.c.l.b16 %v1988
      %v2085 = vunpack.c.l.b16 %v1989
      %v2086 = vunpack.c.l.b16 %v1990
      %v2087 = vunpack.c.l.b16 %v1991
      %v2088 = vunpack.c.l.b16 %v1992
      %v2089 = vunpack.c.l.b16 %v1993
      %v2090 = vunpack.c.l.b16 %v1994
      %v2091 = vunpack.c.l.b16 %v1995
      %v2092 = vunpack.c.l.b16 %v1996
      %v2093 = vunpack.c.l.b16 %v1997
      %v2094 = vunpack.c.l.b16 %v1998
      %v2095 = vunpack.c.l.b16 %v1999
      %v2096 = vunpack.c.l.b16 %v2000
      %v2097 = vunpack.c.l.b16 %v2001
      %v2098 = vunpack.c.l.b16 %v2002
      %v2099 = vunpack.c.l.b16 %v2003
      %v2100 = vpack.c.b16 %v2053, %v2052
      %v2101 = vpack.c.b16 %v2055, %v2054
      %v2102 = vpack.c.b16 %v2057, %v2056
      %v2103 = vpack.c.b16 %v2059, %v2058
      %v2104 = vpack.c.b16 %v2061, %v2060
      %v2105 = vpack.c.b16 %v2063, %v2062
      %v2106 = vpack.c.b16 %v2065, %v2064
      %v2107 = vpack.c.b16 %v2067, %v2066
      %v2108 = vpack.c.b16 %v2069, %v2068
      %v2109 = vpack.c.b16 %v2071, %v2070
      %v2110 = vpack.c.b16 %v2073, %v2072
      %v2111 = vpack.c.b16 %v2075, %v2074
      %v2112 = vpack.c.b16 %v2077, %v2076
      %v2113 = vpack.c.b16 %v2079, %v2078
      %v2114 = vpack.c.b16 %v2081, %v2080
      %v2115 = vpack.c.b16 %v2083, %v2082
      %v2116 = vpack.c.b16 %v2085, %v2084
      %v2117 = vpack.c.b16 %v2087, %v2086
      %v2118 = vpack.c.b16 %v2089, %v2088
      %v2119 = vpack.c.b16 %v2091, %v2090
      %v2120 = vpack.c.b16 %v2093, %v2092
      %v2121 = vpack.c.b16 %v2095, %v2094
      %v2122 = vpack.c.b16 %v2097, %v2096
      %v2123 = vpack.c.b16 %v2099, %v2098
      %2148 = vmatprep.subr.bf16.mxu0 0
      %2149 = vmatpush1.bf16.msra.mxu0 %v2100
      %2150 = vmatprep.subr.bf16.mxu0 0
      %2151 = vmatpush1.bf16.msra.mxu0 %v2101
      %2152 = vmatprep.subr.bf16.mxu0 0
      %2153 = vmatpush1.bf16.msra.mxu0 %v2102
      %2154 = vmatprep.subr.bf16.mxu0 0
      %2155 = vmatpush1.bf16.msra.mxu0 %v2103
      %2156 = vmatprep.subr.bf16.mxu0 0
      %2157 = vmatpush1.bf16.msra.mxu0 %v2104
      %2158 = vmatprep.subr.bf16.mxu0 0
      %2159 = vmatpush1.bf16.msra.mxu0 %v2105
      %2160 = vmatprep.subr.bf16.mxu0 0
      %2161 = vmatpush1.bf16.msra.mxu0 %v2106
      %2162 = vmatprep.subr.bf16.mxu0 0
      %2163 = vmatpush1.bf16.msra.mxu0 %v2107
      %2164 = vmatprep.subr.bf16.mxu0 0
      %2165 = vmatpush1.bf16.msra.mxu0 %v2108
      %2166 = vmatprep.subr.bf16.mxu0 0
      %2167 = vmatpush1.bf16.msra.mxu0 %v2109
      %2168 = vmatprep.subr.bf16.mxu0 0
      %2169 = vmatpush1.bf16.msra.mxu0 %v2110
      %2170 = vmatprep.subr.bf16.mxu0 0
      %2171 = vmatpush1.bf16.msra.mxu0 %v2111
      %2172 = vmatprep.subr.bf16.mxu0 0
      %2173 = vmatpush1.bf16.msra.mxu0 %v2112
      %2174 = vmatprep.subr.bf16.mxu0 0
      %2175 = vmatpush1.bf16.msra.mxu0 %v2113
      %2176 = vmatprep.subr.bf16.mxu0 0
      %2177 = vmatpush1.bf16.msra.mxu0 %v2114
      %2178 = vmatprep.subr.bf16.mxu0 0
      %2179 = vmatpush1.bf16.msra.mxu0 %v2115
      %2180 = vmatprep.mubr.bf16.mxu0 %v1885
      %2181 = vmatmul.mubr.bf16.gmra.mrb[0].mxu0 %v1884
      %v2182 = vpop.f32.mrb[0].mxu0
      %v2183 = vadd.f32 0.0, %v2182
      %v2184 = vpop.f32.mrb[0].mxu0
      %v2185 = vpop.f32.mrb[0].mxu0
      %v2186 = vadd.f32 0.0, %v2185
      %v2187 = vpop.f32.mrb[0].mxu0
      %2188 = vmatprep.mubr.bf16.mxu0 %v1888
      %2189 = vmatmul.mubr.bf16.gmra.mrb[0].mxu0 %v1887
      %v2190 = vpop.f32.mrb[0].mxu0
      %v2191 = vadd.f32 0.0, %v2190
      %v2192 = vpop.f32.mrb[0].mxu0
      %v2193 = vpop.f32.mrb[0].mxu0
      %v2194 = vadd.f32 0.0, %v2193
      %v2195 = vpop.f32.mrb[0].mxu0
      %2196 = vmatprep.mubr.bf16.mxu0 %v1891
      %2197 = vmatmul.mubr.bf16.gmra.mrb[0].mxu0 %v1890
      %v2198 = vpop.f32.mrb[0].mxu0
      %v2199 = vadd.f32 0.0, %v2198
      %v2200 = vpop.f32.mrb[0].mxu0
      %v2201 = vpop.f32.mrb[0].mxu0
      %v2202 = vadd.f32 0.0, %v2201
      %v2203 = vpop.f32.mrb[0].mxu0
      %2204 = vmatprep.mubr.bf16.mxu0 %v1894
      %2205 = vmatmul.mubr.bf16.gmra.mrb[0].mxu0 %v1893
      %v2206 = vpop.f32.mrb[0].mxu0
      %v2207 = vadd.f32 0.0, %v2206
      %v2208 = vpop.f32.mrb[0].mxu0
      %v2209 = vpop.f32.mrb[0].mxu0
      %v2210 = vadd.f32 0.0, %v2209
      %v2211 = vpop.f32.mrb[0].mxu0
      %2212 = vmatprep.mubr.bf16.mxu0 %v1897
      %2213 = vmatmul.mubr.bf16.gmra.mrb[0].mxu0 %v1896
      %v2214 = vpop.f32.mrb[0].mxu0
      %v2215 = vadd.f32 0.0, %v2214
      %v2216 = vpop.f32.mrb[0].mxu0
      %v2217 = vpop.f32.mrb[0].mxu0
      %v2218 = vadd.f32 0.0, %v2217
      %v2219 = vpop.f32.mrb[0].mxu0
      %2220 = vmatprep.mubr.bf16.mxu0 %v1900
      %2221 = vmatmul.mubr.bf16.gmra.mrb[0].mxu0 %v1899
      %v2222 = vpop.f32.mrb[0].mxu0
      %v2223 = vadd.f32 0.0, %v2222
      %v2224 = vpop.f32.mrb[0].mxu0
      %v2225 = vpop.f32.mrb[0].mxu0
      %v2226 = vadd.f32 0.0, %v2225
      %v2227 = vpop.f32.mrb[0].mxu0
      %2228 = vmatprep.mubr.bf16.mxu0 %v1903
      %2229 = vmatmul.mubr.bf16.gmra.mrb[0].mxu0 %v1902
      %v2230 = vpop.f32.mrb[0].mxu0
      %v2231 = vadd.f32 0.0, %v2230
      %v2232 = vpop.f32.mrb[0].mxu0
      %v2233 = vpop.f32.mrb[0].mxu0
      %v2234 = vadd.f32 0.0, %v2233
      %v2235 = vpop.f32.mrb[0].mxu0
      %2236 = vmatprep.mubr.bf16.mxu0 %v1954
      %2237 = vmatmul.mubr.bf16.gmra.mrb[0].mxu0 %v1953
      %v2238 = vpop.f32.mrb[0].mxu0
      %v2239 = vadd.f32 0.0, %v2238
      %v2240 = vpop.f32.mrb[0].mxu0
      %v2241 = vpop.f32.mrb[0].mxu0
      %v2242 = vadd.f32 0.0, %v2241
      %v2243 = vpop.f32.mrb[0].mxu0
      %2244 = vdwg.mxu0
      %2245 = vmatprep.subr.bf16.mxu0 0
      %2246 = vmatpush1.bf16.msra.mxu0 %v2116
      %2247 = vmatprep.subr.bf16.mxu0 0
      %2248 = vmatpush1.bf16.msra.mxu0 %v2117
      %2249 = vmatprep.subr.bf16.mxu0 0
      %2250 = vmatpush1.bf16.msra.mxu0 %v2118
      %2251 = vmatprep.subr.bf16.mxu0 0
      %2252 = vmatpush1.bf16.msra.mxu0 %v2119
      %2253 = vmatprep.subr.bf16.mxu0 0
      %2254 = vmatpush1.bf16.msra.mxu0 %v2120
      %2255 = vmatprep.subr.bf16.mxu0 0
      %2256 = vmatpush1.bf16.msra.mxu0 %v2121
      %2257 = vmatprep.subr.bf16.mxu0 0
      %2258 = vmatpush1.bf16.msra.mxu0 %v2122
      %2259 = vmatprep.subr.bf16.mxu0 0
      %2260 = vmatpush1.bf16.msra.mxu0 %v2123
      %2261 = vmatprep.subr.bf16.mxu0 0
      %2262 = vmatpush1.bf16.msra.mxu0 0
      %2263 = vmatprep.subr.bf16.mxu0 0
      %2264 = vmatpush1.bf16.msra.mxu0 0
      %2265 = vmatprep.subr.bf16.mxu0 0
      %2266 = vmatpush1.bf16.msra.mxu0 0
      %2267 = vmatprep.subr.bf16.mxu0 0
      %2268 = vmatpush1.bf16.msra.mxu0 0
      %2269 = vmatprep.subr.bf16.mxu0 0
      %2270 = vmatpush1.bf16.msra.mxu0 0
      %2271 = vmatprep.subr.bf16.mxu0 0
      %2272 = vmatpush1.bf16.msra.mxu0 0
      %2273 = vmatprep.subr.bf16.mxu0 0
      %2274 = vmatpush1.bf16.msra.mxu0 0
      %2275 = vmatprep.subr.bf16.mxu0 0
      %2276 = vmatpush1.bf16.msra.mxu0 0
      %2277 = vmatprep.mubr.bf16.mxu0 0
      %2278 = vmatmul.mubr.bf16.gmra.mrb[0].mxu0 %v1886
      %v2279 = vpop.f32.mrb[0].mxu0
      %v2280 = vadd.f32 %v2183, %v2279
      %v2281 = vpop.f32.mrb[0].mxu0
      %v2282 = vpop.f32.mrb[0].mxu0
      %v2283 = vadd.f32 %v2186, %v2282
      %v2284 = vpop.f32.mrb[0].mxu0
      %2285 = vmatprep.mubr.bf16.mxu0 0
      %2286 = vmatmul.mubr.bf16.gmra.mrb[0].mxu0 %v1889
      %v2287 = vpop.f32.mrb[0].mxu0
      %v2288 = vadd.f32 %v2191, %v2287
      %v2289 = vpop.f32.mrb[0].mxu0
      %v2290 = vpop.f32.mrb[0].mxu0
      %v2291 = vadd.f32 %v2194, %v2290
      %v2292 = vpop.f32.mrb[0].mxu0
      %2293 = vmatprep.mubr.bf16.mxu0 0
      %2294 = vmatmul.mubr.bf16.gmra.mrb[0].mxu0 %v1892
      %v2295 = vpop.f32.mrb[0].mxu0
      %v2296 = vadd.f32 %v2199, %v2295
      %v2297 = vpop.f32.mrb[0].mxu0
      %v2298 = vpop.f32.mrb[0].mxu0
      %v2299 = vadd.f32 %v2202, %v2298
      %v2300 = vpop.f32.mrb[0].mxu0
      %2301 = vmatprep.mubr.bf16.mxu0 0
      %2302 = vmatmul.mubr.bf16.gmra.mrb[0].mxu0 %v1895
      %v2303 = vpop.f32.mrb[0].mxu0
      %v2304 = vadd.f32 %v2207, %v2303
      %v2305 = vpop.f32.mrb[0].mxu0
      %v2306 = vpop.f32.mrb[0].mxu0
      %v2307 = vadd.f32 %v2210, %v2306
      %v2308 = vpop.f32.mrb[0].mxu0
      %2309 = vmatprep.mubr.bf16.mxu0 0
      %2310 = vmatmul.mubr.bf16.gmra.mrb[0].mxu0 %v1898
      %v2311 = vpop.f32.mrb[0].mxu0
      %v2312 = vadd.f32 %v2215, %v2311
      %v2313 = vpop.f32.mrb[0].mxu0
      %v2314 = vpop.f32.mrb[0].mxu0
      %v2315 = vadd.f32 %v2218, %v2314
      %v2316 = vpop.f32.mrb[0].mxu0
      %2317 = vmatprep.mubr.bf16.mxu0 0
      %2318 = vmatmul.mubr.bf16.gmra.mrb[0].mxu0 %v1901
      %v2319 = vpop.f32.mrb[0].mxu0
      %v2320 = vadd.f32 %v2223, %v2319
      %v2321 = vpop.f32.mrb[0].mxu0
      %v2322 = vpop.f32.mrb[0].mxu0
      %v2323 = vadd.f32 %v2226, %v2322
      %v2324 = vpop.f32.mrb[0].mxu0
      %2325 = vmatprep.mubr.bf16.mxu0 0
      %2326 = vmatmul.mubr.bf16.gmra.mrb[0].mxu0 %v1904
      %v2327 = vpop.f32.mrb[0].mxu0
      %v2328 = vadd.f32 %v2231, %v2327
      %v2329 = vpop.f32.mrb[0].mxu0
      %v2330 = vpop.f32.mrb[0].mxu0
      %v2331 = vadd.f32 %v2234, %v2330
      %v2332 = vpop.f32.mrb[0].mxu0
      %2333 = vmatprep.mubr.bf16.mxu0 0
      %2334 = vmatmul.mubr.bf16.gmra.mrb[0].mxu0 %v1955
      %v2335 = vpop.f32.mrb[0].mxu0
      %v2336 = vadd.f32 %v2239, %v2335
      %v2337 = vpop.f32.mrb[0].mxu0
      %v2338 = vpop.f32.mrb[0].mxu0
      %v2339 = vadd.f32 %v2242, %v2338
      %v2340 = vpop.f32.mrb[0].mxu0
      %2341 = vdwg.mxu0
      %v2390 = vunpack.c.l.b16 %v1905
      %v2391 = vunpack.c.l.b16 %v1906
      %v2392 = vunpack.c.l.b16 %v1907
      %v2393 = vunpack.c.l.b16 %v1908
      %v2394 = vunpack.c.l.b16 %v1909
      %v2395 = vunpack.c.l.b16 %v1910
      %v2396 = vunpack.c.l.b16 %v1911
      %v2397 = vunpack.c.l.b16 %v1912
      %v2398 = vunpack.c.l.b16 %v1913
      %v2399 = vunpack.c.l.b16 %v1914
      %v2400 = vunpack.c.l.b16 %v1915
      %v2401 = vunpack.c.l.b16 %v1916
      %v2402 = vunpack.c.l.b16 %v1917
      %v2403 = vunpack.c.l.b16 %v1918
      %v2404 = vunpack.c.l.b16 %v1919
      %v2405 = vunpack.c.l.b16 %v1920
      %v2406 = vunpack.c.l.b16 %v1921
      %v2407 = vunpack.c.l.b16 %v1922
      %v2408 = vunpack.c.l.b16 %v1923
      %v2409 = vunpack.c.l.b16 %v1924
      %v2410 = vunpack.c.l.b16 %v1925
      %v2411 = vunpack.c.l.b16 %v1926
      %v2412 = vunpack.c.l.b16 %v1927
      %v2413 = vunpack.c.l.b16 %v1928
      %v2414 = vunpack.c.l.b16 %v1929
      %v2415 = vunpack.c.l.b16 %v1930
      %v2416 = vunpack.c.l.b16 %v1931
      %v2417 = vunpack.c.l.b16 %v1932
      %v2418 = vunpack.c.l.b16 %v1933
      %v2419 = vunpack.c.l.b16 %v1934
      %v2420 = vunpack.c.l.b16 %v1935
      %v2421 = vunpack.c.l.b16 %v1936
      %v2422 = vunpack.c.l.b16 %v1937
      %v2423 = vunpack.c.l.b16 %v1938
      %v2424 = vunpack.c.l.b16 %v1939
      %v2425 = vunpack.c.l.b16 %v1940
      %v2426 = vunpack.c.l.b16 %v1941
      %v2427 = vunpack.c.l.b16 %v1942
      %v2428 = vunpack.c.l.b16 %v1943
      %v2429 = vunpack.c.l.b16 %v1944
      %v2430 = vunpack.c.l.b16 %v1945
      %v2431 = vunpack.c.l.b16 %v1946
      %v2432 = vunpack.c.l.b16 %v1947
      %v2433 = vunpack.c.l.b16 %v1948
      %v2434 = vunpack.c.l.b16 %v1949
      %v2435 = vunpack.c.l.b16 %v1950
      %v2436 = vunpack.c.l.b16 %v1951
      %v2437 = vunpack.c.l.b16 %v1952
      %v2438 = vpack.c.b16 %v2391, %v2390
      %v2439 = vpack.c.b16 %v2393, %v2392
      %v2440 = vpack.c.b16 %v2395, %v2394
      %v2441 = vpack.c.b16 %v2397, %v2396
      %v2442 = vpack.c.b16 %v2399, %v2398
      %v2443 = vpack.c.b16 %v2401, %v2400
      %v2444 = vpack.c.b16 %v2403, %v2402
      %v2445 = vpack.c.b16 %v2405, %v2404
      %v2446 = vpack.c.b16 %v2407, %v2406
      %v2447 = vpack.c.b16 %v2409, %v2408
      %v2448 = vpack.c.b16 %v2411, %v2410
      %v2449 = vpack.c.b16 %v2413, %v2412
      %v2450 = vpack.c.b16 %v2415, %v2414
      %v2451 = vpack.c.b16 %v2417, %v2416
      %v2452 = vpack.c.b16 %v2419, %v2418
      %v2453 = vpack.c.b16 %v2421, %v2420
      %v2454 = vpack.c.b16 %v2423, %v2422
      %v2455 = vpack.c.b16 %v2425, %v2424
      %v2456 = vpack.c.b16 %v2427, %v2426
      %v2457 = vpack.c.b16 %v2429, %v2428
      %v2458 = vpack.c.b16 %v2431, %v2430
      %v2459 = vpack.c.b16 %v2433, %v2432
      %v2460 = vpack.c.b16 %v2435, %v2434
      %v2461 = vpack.c.b16 %v2437, %v2436
      %2486 = vmatprep.subr.bf16.mxu0 0
      %2487 = vmatpush1.bf16.msra.mxu0 %v2438
      %2488 = vmatprep.subr.bf16.mxu0 0
      %2489 = vmatpush1.bf16.msra.mxu0 %v2439
      %2490 = vmatprep.subr.bf16.mxu0 0
      %2491 = vmatpush1.bf16.msra.mxu0 %v2440
      %2492 = vmatprep.subr.bf16.mxu0 0
      %2493 = vmatpush1.bf16.msra.mxu0 %v2441
      %2494 = vmatprep.subr.bf16.mxu0 0
      %2495 = vmatpush1.bf16.msra.mxu0 %v2442
      %2496 = vmatprep.subr.bf16.mxu0 0
      %2497 = vmatpush1.bf16.msra.mxu0 %v2443
      %2498 = vmatprep.subr.bf16.mxu0 0
      %2499 = vmatpush1.bf16.msra.mxu0 %v2444
      %2500 = vmatprep.subr.bf16.mxu0 0
      %2501 = vmatpush1.bf16.msra.mxu0 %v2445
      %2502 = vmatprep.subr.bf16.mxu0 0
      %2503 = vmatpush1.bf16.msra.mxu0 %v2446
      %2504 = vmatprep.subr.bf16.mxu0 0
      %2505 = vmatpush1.bf16.msra.mxu0 %v2447
      %2506 = vmatprep.subr.bf16.mxu0 0
      %2507 = vmatpush1.bf16.msra.mxu0 %v2448
      %2508 = vmatprep.subr.bf16.mxu0 0
      %2509 = vmatpush1.bf16.msra.mxu0 %v2449
      %2510 = vmatprep.subr.bf16.mxu0 0
      %2511 = vmatpush1.bf16.msra.mxu0 %v2450
      %2512 = vmatprep.subr.bf16.mxu0 0
      %2513 = vmatpush1.bf16.msra.mxu0 %v2451
      %2514 = vmatprep.subr.bf16.mxu0 0
      %2515 = vmatpush1.bf16.msra.mxu0 %v2452
      %2516 = vmatprep.subr.bf16.mxu0 0
      %2517 = vmatpush1.bf16.msra.mxu0 %v2453
      %2518 = vmatprep.mubr.bf16.mxu0 %v1882
      %2519 = vmatmul.mubr.bf16.gmra.mrb[0].mxu0 %v1881
      %v2520 = vpop.f32.mrb[0].mxu0
      %v2521 = vadd.f32 %v2280, %v2520
      %v2522 = vpop.f32.mrb[0].mxu0
      %v2523 = vpop.f32.mrb[0].mxu0
      %v2524 = vadd.f32 %v2283, %v2523
      %v2525 = vpop.f32.mrb[0].mxu0
      %2526 = vmatprep.mubr.bf16.mxu0 %v1885
      %2527 = vmatmul.mubr.bf16.gmra.mrb[0].mxu0 %v1884
      %v2528 = vpop.f32.mrb[0].mxu0
      %v2529 = vadd.f32 %v2288, %v2528
      %v2530 = vpop.f32.mrb[0].mxu0
      %v2531 = vpop.f32.mrb[0].mxu0
      %v2532 = vadd.f32 %v2291, %v2531
      %v2533 = vpop.f32.mrb[0].mxu0
      %2534 = vmatprep.mubr.bf16.mxu0 %v1888
      %2535 = vmatmul.mubr.bf16.gmra.mrb[0].mxu0 %v1887
      %v2536 = vpop.f32.mrb[0].mxu0
      %v2537 = vadd.f32 %v2296, %v2536
      %v2538 = vpop.f32.mrb[0].mxu0
      %v2539 = vpop.f32.mrb[0].mxu0
      %v2540 = vadd.f32 %v2299, %v2539
      %v2541 = vpop.f32.mrb[0].mxu0
      %2542 = vmatprep.mubr.bf16.mxu0 %v1891
      %2543 = vmatmul.mubr.bf16.gmra.mrb[0].mxu0 %v1890
      %v2544 = vpop.f32.mrb[0].mxu0
      %v2545 = vadd.f32 %v2304, %v2544
      %v2546 = vpop.f32.mrb[0].mxu0
      %v2547 = vpop.f32.mrb[0].mxu0
      %v2548 = vadd.f32 %v2307, %v2547
      %v2549 = vpop.f32.mrb[0].mxu0
      %2550 = vmatprep.mubr.bf16.mxu0 %v1894
      %2551 = vmatmul.mubr.bf16.gmra.mrb[0].mxu0 %v1893
      %v2552 = vpop.f32.mrb[0].mxu0
      %v2553 = vadd.f32 %v2312, %v2552
      %v2554 = vpop.f32.mrb[0].mxu0
      %v2555 = vpop.f32.mrb[0].mxu0
      %v2556 = vadd.f32 %v2315, %v2555
      %v2557 = vpop.f32.mrb[0].mxu0
      %2558 = vmatprep.mubr.bf16.mxu0 %v1897
      %2559 = vmatmul.mubr.bf16.gmra.mrb[0].mxu0 %v1896
      %v2560 = vpop.f32.mrb[0].mxu0
      %v2561 = vadd.f32 %v2320, %v2560
      %v2562 = vpop.f32.mrb[0].mxu0
      %v2563 = vpop.f32.mrb[0].mxu0
      %v2564 = vadd.f32 %v2323, %v2563
      %v2565 = vpop.f32.mrb[0].mxu0
      %2566 = vmatprep.mubr.bf16.mxu0 %v1900
      %2567 = vmatmul.mubr.bf16.gmra.mrb[0].mxu0 %v1899
      %v2568 = vpop.f32.mrb[0].mxu0
      %v2569 = vadd.f32 %v2328, %v2568
      %v2570 = vpop.f32.mrb[0].mxu0
      %v2571 = vpop.f32.mrb[0].mxu0
      %v2572 = vadd.f32 %v2331, %v2571
      %v2573 = vpop.f32.mrb[0].mxu0
      %2574 = vmatprep.mubr.bf16.mxu0 %v1903
      %2575 = vmatmul.mubr.bf16.gmra.mrb[0].mxu0 %v1902
      %v2576 = vpop.f32.mrb[0].mxu0
      %v2577 = vadd.f32 %v2336, %v2576
      %v2578 = vpop.f32.mrb[0].mxu0
      %v2579 = vpop.f32.mrb[0].mxu0
      %v2580 = vadd.f32 %v2339, %v2579
      %v2581 = vpop.f32.mrb[0].mxu0
      %2582 = vdwg.mxu0
      %2583 = vmatprep.subr.bf16.mxu0 0
      %2584 = vmatpush1.bf16.msra.mxu0 %v2454
      %2585 = vmatprep.subr.bf16.mxu0 0
      %2586 = vmatpush1.bf16.msra.mxu0 %v2455
      %2587 = vmatprep.subr.bf16.mxu0 0
      %2588 = vmatpush1.bf16.msra.mxu0 %v2456
      %2589 = vmatprep.subr.bf16.mxu0 0
      %2590 = vmatpush1.bf16.msra.mxu0 %v2457
      %2591 = vmatprep.subr.bf16.mxu0 0
      %2592 = vmatpush1.bf16.msra.mxu0 %v2458
      %2593 = vmatprep.subr.bf16.mxu0 0
      %2594 = vmatpush1.bf16.msra.mxu0 %v2459
      %2595 = vmatprep.subr.bf16.mxu0 0
      %2596 = vmatpush1.bf16.msra.mxu0 %v2460
      %2597 = vmatprep.subr.bf16.mxu0 0
      %2598 = vmatpush1.bf16.msra.mxu0 %v2461
      %2599 = vmatprep.subr.bf16.mxu0 0
      %2600 = vmatpush1.bf16.msra.mxu0 0
      %2601 = vmatprep.subr.bf16.mxu0 0
      %2602 = vmatpush1.bf16.msra.mxu0 0
      %2603 = vmatprep.subr.bf16.mxu0 0
      %2604 = vmatpush1.bf16.msra.mxu0 0
      %2605 = vmatprep.subr.bf16.mxu0 0
      %2606 = vmatpush1.bf16.msra.mxu0 0
      %2607 = vmatprep.subr.bf16.mxu0 0
      %2608 = vmatpush1.bf16.msra.mxu0 0
      %2609 = vmatprep.subr.bf16.mxu0 0
      %2610 = vmatpush1.bf16.msra.mxu0 0
      %2611 = vmatprep.subr.bf16.mxu0 0
      %2612 = vmatpush1.bf16.msra.mxu0 0
      %2613 = vmatprep.subr.bf16.mxu0 0
      %2614 = vmatpush1.bf16.msra.mxu0 0
      %2615 = vmatprep.mubr.bf16.mxu0 0
      %2616 = vmatmul.mubr.bf16.gmra.mrb[0].mxu0 %v1883
      %v2617 = vpop.f32.mrb[0].mxu0
      %v2618 = vadd.f32 %v2521, %v2617
      %v2619 = vpop.f32.mrb[0].mxu0
      %v2620 = vpop.f32.mrb[0].mxu0
      %v2621 = vadd.f32 %v2524, %v2620
      %v2622 = vpop.f32.mrb[0].mxu0
      %2623 = vmatprep.mubr.bf16.mxu0 0
      %2624 = vmatmul.mubr.bf16.gmra.mrb[0].mxu0 %v1886
      %v2625 = vpop.f32.mrb[0].mxu0
      %v2626 = vadd.f32 %v2529, %v2625
      %v2627 = vpop.f32.mrb[0].mxu0
      %v2628 = vpop.f32.mrb[0].mxu0
      %v2629 = vadd.f32 %v2532, %v2628
      %v2630 = vpop.f32.mrb[0].mxu0
      %2631 = vmatprep.mubr.bf16.mxu0 0
      %2632 = vmatmul.mubr.bf16.gmra.mrb[0].mxu0 %v1889
      %v2633 = vpop.f32.mrb[0].mxu0
      %v2634 = vadd.f32 %v2537, %v2633
      %v2635 = vpop.f32.mrb[0].mxu0
      %v2636 = vpop.f32.mrb[0].mxu0
      %v2637 = vadd.f32 %v2540, %v2636
      %v2638 = vpop.f32.mrb[0].mxu0
      %2639 = vmatprep.mubr.bf16.mxu0 0
      %2640 = vmatmul.mubr.bf16.gmra.mrb[0].mxu0 %v1892
      %v2641 = vpop.f32.mrb[0].mxu0
      %v2642 = vadd.f32 %v2545, %v2641
      %v2643 = vpop.f32.mrb[0].mxu0
      %v2644 = vpop.f32.mrb[0].mxu0
      %v2645 = vadd.f32 %v2548, %v2644
      %v2646 = vpop.f32.mrb[0].mxu0
      %2647 = vmatprep.mubr.bf16.mxu0 0
      %2648 = vmatmul.mubr.bf16.gmra.mrb[0].mxu0 %v1895
      %v2649 = vpop.f32.mrb[0].mxu0
      %v2650 = vadd.f32 %v2553, %v2649
      %v2651 = vpop.f32.mrb[0].mxu0
      %v2652 = vpop.f32.mrb[0].mxu0
      %v2653 = vadd.f32 %v2556, %v2652
      %v2654 = vpop.f32.mrb[0].mxu0
      %2655 = vmatprep.mubr.bf16.mxu0 0
      %2656 = vmatmul.mubr.bf16.gmra.mrb[0].mxu0 %v1898
      %v2657 = vpop.f32.mrb[0].mxu0
      %v2658 = vadd.f32 %v2561, %v2657
      %v2659 = vpop.f32.mrb[0].mxu0
      %v2660 = vpop.f32.mrb[0].mxu0
      %v2661 = vadd.f32 %v2564, %v2660
      %v2662 = vpop.f32.mrb[0].mxu0
      %2663 = vmatprep.mubr.bf16.mxu0 0
      %2664 = vmatmul.mubr.bf16.gmra.mrb[0].mxu0 %v1901
      %v2665 = vpop.f32.mrb[0].mxu0
      %v2666 = vadd.f32 %v2569, %v2665
      %v2667 = vpop.f32.mrb[0].mxu0
      %v2668 = vpop.f32.mrb[0].mxu0
      %v2669 = vadd.f32 %v2572, %v2668
      %v2670 = vpop.f32.mrb[0].mxu0
      %2671 = vmatprep.mubr.bf16.mxu0 0
      %2672 = vmatmul.mubr.bf16.gmra.mrb[0].mxu0 %v1904
      %v2673 = vpop.f32.mrb[0].mxu0
      %v2674 = vadd.f32 %v2577, %v2673
      %v2675 = vpop.f32.mrb[0].mxu0
      %v2676 = vpop.f32.mrb[0].mxu0
      %v2677 = vadd.f32 %v2580, %v2676
      %v2678 = vpop.f32.mrb[0].mxu0
      %2679 = vdwg.mxu0
      %v2680 = vld [vmem:[#allocation2 + $0x30] sm:$0xff]
      %v2681 = vld [vmem:[#allocation2 + $0x38] sm:$0xff]
      %v2682 = vld [vmem:[#allocation2 + $0x40] sm:$0xff]
      %v2683 = vld [vmem:[#allocation2 + $0x48] sm:$0xff]
      %v2684 = vld [vmem:[#allocation2 + $0x50] sm:$0xff]
      %v2685 = vld [vmem:[#allocation2 + $0x58] sm:$0xff]
      %v2686 = vld [vmem:[#allocation2 + $0x60] sm:$0xff]
      %v2687 = vld [vmem:[#allocation2 + $0x68] sm:$0xff]
      %v2688 = vld [vmem:[#allocation2 + $0x70] sm:$0xff]
      %v2689 = vld [vmem:[#allocation2 + $0x78] sm:$0xff]
      %v2690 = vld [vmem:[#allocation2 + $0x80] sm:$0xff]
      %v2691 = vld [vmem:[#allocation2 + $0x88] sm:$0xff]
      %v2692 = vld [vmem:[#allocation2 + $0x90] sm:$0xff]
      %v2693 = vld [vmem:[#allocation2 + $0x98] sm:$0xff]
      %v2694 = vld [vmem:[#allocation2 + $0xa0] sm:$0xff]
      %v2695 = vld [vmem:[#allocation2 + $0xa8] sm:$0xff]
      %v2696 = vld [vmem:[#allocation2 + $0xb0] sm:$0xff]
      %v2697 = vld [vmem:[#allocation2 + $0xb8] sm:$0xff]
      %v2698 = vld [vmem:[#allocation2 + $0xc0] sm:$0xff]
      %v2699 = vld [vmem:[#allocation2 + $0xc8] sm:$0xff]
      %v2700 = vld [vmem:[#allocation2 + $0xd0] sm:$0xff]
      %v2701 = vld [vmem:[#allocation2 + $0xd8] sm:$0xff]
      %v2702 = vld [vmem:[#allocation2 + $0xe0] sm:$0xff]
      %v2703 = vld [vmem:[#allocation2 + $0xe8] sm:$0xff]
      %v2704 = vld [vmem:[%s4 + $0x180] sm:$0xf]
      %v2705 = vld [vmem:[%s4 + $0x184] sm:$0xf]
      %v2706 = vld [vmem:[%s4 + $0x188] sm:$0xf]
      %v2707 = vld [vmem:[%s4 + $0x18c] sm:$0xf]
      %v2708 = vld [vmem:[%s4 + $0x190] sm:$0xf]
      %v2709 = vld [vmem:[%s4 + $0x194] sm:$0xf]
      %v2710 = vld [vmem:[%s4 + $0x198] sm:$0xf]
      %v2711 = vld [vmem:[%s4 + $0x19c] sm:$0xf]
      %v2712 = vld [vmem:[%s4 + $0x1a0] sm:$0xf]
      %v2713 = vld [vmem:[%s4 + $0x1a4] sm:$0xf]
      %v2714 = vld [vmem:[%s4 + $0x1a8] sm:$0xf]
      %v2715 = vld [vmem:[%s4 + $0x1ac] sm:$0xf]
      %v2716 = vld [vmem:[%s4 + $0x1b0] sm:$0xf]
      %v2717 = vld [vmem:[%s4 + $0x1b4] sm:$0xf]
      %v2718 = vld [vmem:[%s4 + $0x1b8] sm:$0xf]
      %v2719 = vld [vmem:[%s4 + $0x1bc] sm:$0xf]
      %v2720 = vld [vmem:[%s4 + $0x1c0] sm:$0xf]
      %v2721 = vld [vmem:[%s4 + $0x1c4] sm:$0xf]
      %v2722 = vld [vmem:[%s4 + $0x1c8] sm:$0xf]
      %v2723 = vld [vmem:[%s4 + $0x1cc] sm:$0xf]
      %v2724 = vld [vmem:[%s4 + $0x1d0] sm:$0xf]
      %v2725 = vld [vmem:[%s4 + $0x1d4] sm:$0xf]
      %v2726 = vld [vmem:[%s4 + $0x1d8] sm:$0xf]
      %v2727 = vld [vmem:[%s4 + $0x1dc] sm:$0xf]
      %v2728 = vld [vmem:[%s4 + $0x1e0] sm:$0xf]
      %v2729 = vld [vmem:[%s4 + $0x1e4] sm:$0xf]
      %v2730 = vld [vmem:[%s4 + $0x1e8] sm:$0xf]
      %v2731 = vld [vmem:[%s4 + $0x1ec] sm:$0xf]
      %v2732 = vld [vmem:[%s4 + $0x1f0] sm:$0xf]
      %v2733 = vld [vmem:[%s4 + $0x1f4] sm:$0xf]
      %v2734 = vld [vmem:[%s4 + $0x1f8] sm:$0xf]
      %v2735 = vld [vmem:[%s4 + $0x1fc] sm:$0xf]
      %v2736 = vld [vmem:[%s4 + $0x200] sm:$0xf]
      %v2737 = vld [vmem:[%s4 + $0x204] sm:$0xf]
      %v2738 = vld [vmem:[%s4 + $0x208] sm:$0xf]
      %v2739 = vld [vmem:[%s4 + $0x20c] sm:$0xf]
      %v2740 = vld [vmem:[%s4 + $0x210] sm:$0xf]
      %v2741 = vld [vmem:[%s4 + $0x214] sm:$0xf]
      %v2742 = vld [vmem:[%s4 + $0x218] sm:$0xf]
      %v2743 = vld [vmem:[%s4 + $0x21c] sm:$0xf]
      %v2744 = vld [vmem:[%s4 + $0x220] sm:$0xf]
      %v2745 = vld [vmem:[%s4 + $0x224] sm:$0xf]
      %v2746 = vld [vmem:[%s4 + $0x228] sm:$0xf]
      %v2747 = vld [vmem:[%s4 + $0x22c] sm:$0xf]
      %v2748 = vld [vmem:[%s4 + $0x230] sm:$0xf]
      %v2749 = vld [vmem:[%s4 + $0x234] sm:$0xf]
      %v2750 = vld [vmem:[%s4 + $0x238] sm:$0xf]
      %v2751 = vld [vmem:[%s4 + $0x23c] sm:$0xf]
      %v2800 = vunpack.c.l.b16 %v2704
      %v2801 = vunpack.c.l.b16 %v2705
      %v2802 = vunpack.c.l.b16 %v2706
      %v2803 = vunpack.c.l.b16 %v2707
      %v2804 = vunpack.c.l.b16 %v2708
      %v2805 = vunpack.c.l.b16 %v2709
      %v2806 = vunpack.c.l.b16 %v2710
      %v2807 = vunpack.c.l.b16 %v2711
      %v2808 = vunpack.c.l.b16 %v2712
      %v2809 = vunpack.c.l.b16 %v2713
      %v2810 = vunpack.c.l.b16 %v2714
      %v2811 = vunpack.c.l.b16 %v2715
      %v2812 = vunpack.c.l.b16 %v2716
      %v2813 = vunpack.c.l.b16 %v2717
      %v2814 = vunpack.c.l.b16 %v2718
      %v2815 = vunpack.c.l.b16 %v2719
      %v2816 = vunpack.c.l.b16 %v2720
      %v2817 = vunpack.c.l.b16 %v2721
      %v2818 = vunpack.c.l.b16 %v2722
      %v2819 = vunpack.c.l.b16 %v2723
      %v2820 = vunpack.c.l.b16 %v2724
      %v2821 = vunpack.c.l.b16 %v2725
      %v2822 = vunpack.c.l.b16 %v2726
      %v2823 = vunpack.c.l.b16 %v2727
      %v2824 = vunpack.c.l.b16 %v2728
      %v2825 = vunpack.c.l.b16 %v2729
      %v2826 = vunpack.c.l.b16 %v2730
      %v2827 = vunpack.c.l.b16 %v2731
      %v2828 = vunpack.c.l.b16 %v2732
      %v2829 = vunpack.c.l.b16 %v2733
      %v2830 = vunpack.c.l.b16 %v2734
      %v2831 = vunpack.c.l.b16 %v2735
      %v2832 = vunpack.c.l.b16 %v2736
      %v2833 = vunpack.c.l.b16 %v2737
      %v2834 = vunpack.c.l.b16 %v2738
      %v2835 = vunpack.c.l.b16 %v2739
      %v2836 = vunpack.c.l.b16 %v2740
      %v2837 = vunpack.c.l.b16 %v2741
      %v2838 = vunpack.c.l.b16 %v2742
      %v2839 = vunpack.c.l.b16 %v2743
      %v2840 = vunpack.c.l.b16 %v2744
      %v2841 = vunpack.c.l.b16 %v2745
      %v2842 = vunpack.c.l.b16 %v2746
      %v2843 = vunpack.c.l.b16 %v2747
      %v2844 = vunpack.c.l.b16 %v2748
      %v2845 = vunpack.c.l.b16 %v2749
      %v2846 = vunpack.c.l.b16 %v2750
      %v2847 = vunpack.c.l.b16 %v2751
      %v2848 = vpack.c.b16 %v2801, %v2800
      %v2849 = vpack.c.b16 %v2803, %v2802
      %v2850 = vpack.c.b16 %v2805, %v2804
      %v2851 = vpack.c.b16 %v2807, %v2806
      %v2852 = vpack.c.b16 %v2809, %v2808
      %v2853 = vpack.c.b16 %v2811, %v2810
      %v2854 = vpack.c.b16 %v2813, %v2812
      %v2855 = vpack.c.b16 %v2815, %v2814
      %v2856 = vpack.c.b16 %v2817, %v2816
      %v2857 = vpack.c.b16 %v2819, %v2818
      %v2858 = vpack.c.b16 %v2821, %v2820
      %v2859 = vpack.c.b16 %v2823, %v2822
      %v2860 = vpack.c.b16 %v2825, %v2824
      %v2861 = vpack.c.b16 %v2827, %v2826
      %v2862 = vpack.c.b16 %v2829, %v2828
      %v2863 = vpack.c.b16 %v2831, %v2830
      %v2864 = vpack.c.b16 %v2833, %v2832
      %v2865 = vpack.c.b16 %v2835, %v2834
      %v2866 = vpack.c.b16 %v2837, %v2836
      %v2867 = vpack.c.b16 %v2839, %v2838
      %v2868 = vpack.c.b16 %v2841, %v2840
      %v2869 = vpack.c.b16 %v2843, %v2842
      %v2870 = vpack.c.b16 %v2845, %v2844
      %v2871 = vpack.c.b16 %v2847, %v2846
      %2896 = vmatprep.subr.bf16.mxu0 0
      %2897 = vmatpush1.bf16.msra.mxu0 %v2848
      %2898 = vmatprep.subr.bf16.mxu0 0
      %2899 = vmatpush1.bf16.msra.mxu0 %v2849
      %2900 = vmatprep.subr.bf16.mxu0 0
      %2901 = vmatpush1.bf16.msra.mxu0 %v2850
      %2902 = vmatprep.subr.bf16.mxu0 0
      %2903 = vmatpush1.bf16.msra.mxu0 %v2851
      %2904 = vmatprep.subr.bf16.mxu0 0
      %2905 = vmatpush1.bf16.msra.mxu0 %v2852
      %2906 = vmatprep.subr.bf16.mxu0 0
      %2907 = vmatpush1.bf16.msra.mxu0 %v2853
      %2908 = vmatprep.subr.bf16.mxu0 0
      %2909 = vmatpush1.bf16.msra.mxu0 %v2854
      %2910 = vmatprep.subr.bf16.mxu0 0
      %2911 = vmatpush1.bf16.msra.mxu0 %v2855
      %2912 = vmatprep.subr.bf16.mxu0 0
      %2913 = vmatpush1.bf16.msra.mxu0 %v2856
      %2914 = vmatprep.subr.bf16.mxu0 0
      %2915 = vmatpush1.bf16.msra.mxu0 %v2857
      %2916 = vmatprep.subr.bf16.mxu0 0
      %2917 = vmatpush1.bf16.msra.mxu0 %v2858
      %2918 = vmatprep.subr.bf16.mxu0 0
      %2919 = vmatpush1.bf16.msra.mxu0 %v2859
      %2920 = vmatprep.subr.bf16.mxu0 0
      %2921 = vmatpush1.bf16.msra.mxu0 %v2860
      %2922 = vmatprep.subr.bf16.mxu0 0
      %2923 = vmatpush1.bf16.msra.mxu0 %v2861
      %2924 = vmatprep.subr.bf16.mxu0 0
      %2925 = vmatpush1.bf16.msra.mxu0 %v2862
      %2926 = vmatprep.subr.bf16.mxu0 0
      %2927 = vmatpush1.bf16.msra.mxu0 %v2863
      %2928 = vmatprep.mubr.bf16.mxu0 %v2681
      %2929 = vmatmul.mubr.bf16.gmra.mrb[0].mxu0 %v2680
      %v2930 = vpop.f32.mrb[0].mxu0
      %v2931 = vadd.f32 0.0, %v2930
      %v2932 = vpop.f32.mrb[0].mxu0
      %v2933 = vpop.f32.mrb[0].mxu0
      %v2934 = vadd.f32 0.0, %v2933
      %v2935 = vpop.f32.mrb[0].mxu0
      %2936 = vmatprep.mubr.bf16.mxu0 %v2684
      %2937 = vmatmul.mubr.bf16.gmra.mrb[0].mxu0 %v2683
      %v2938 = vpop.f32.mrb[0].mxu0
      %v2939 = vadd.f32 0.0, %v2938
      %v2940 = vpop.f32.mrb[0].mxu0
      %v2941 = vpop.f32.mrb[0].mxu0
      %v2942 = vadd.f32 0.0, %v2941
      %v2943 = vpop.f32.mrb[0].mxu0
      %2944 = vmatprep.mubr.bf16.mxu0 %v2687
      %2945 = vmatmul.mubr.bf16.gmra.mrb[0].mxu0 %v2686
      %v2946 = vpop.f32.mrb[0].mxu0
      %v2947 = vadd.f32 0.0, %v2946
      %v2948 = vpop.f32.mrb[0].mxu0
      %v2949 = vpop.f32.mrb[0].mxu0
      %v2950 = vadd.f32 0.0, %v2949
      %v2951 = vpop.f32.mrb[0].mxu0
      %2952 = vmatprep.mubr.bf16.mxu0 %v2690
      %2953 = vmatmul.mubr.bf16.gmra.mrb[0].mxu0 %v2689
      %v2954 = vpop.f32.mrb[0].mxu0
      %v2955 = vadd.f32 0.0, %v2954
      %v2956 = vpop.f32.mrb[0].mxu0
      %v2957 = vpop.f32.mrb[0].mxu0
      %v2958 = vadd.f32 0.0, %v2957
      %v2959 = vpop.f32.mrb[0].mxu0
      %2960 = vmatprep.mubr.bf16.mxu0 %v2693
      %2961 = vmatmul.mubr.bf16.gmra.mrb[0].mxu0 %v2692
      %v2962 = vpop.f32.mrb[0].mxu0
      %v2963 = vadd.f32 0.0, %v2962
      %v2964 = vpop.f32.mrb[0].mxu0
      %v2965 = vpop.f32.mrb[0].mxu0
      %v2966 = vadd.f32 0.0, %v2965
      %v2967 = vpop.f32.mrb[0].mxu0
      %2968 = vmatprep.mubr.bf16.mxu0 %v2696
      %2969 = vmatmul.mubr.bf16.gmra.mrb[0].mxu0 %v2695
      %v2970 = vpop.f32.mrb[0].mxu0
      %v2971 = vadd.f32 0.0, %v2970
      %v2972 = vpop.f32.mrb[0].mxu0
      %v2973 = vpop.f32.mrb[0].mxu0
      %v2974 = vadd.f32 0.0, %v2973
      %v2975 = vpop.f32.mrb[0].mxu0
      %2976 = vmatprep.mubr.bf16.mxu0 %v2699
      %2977 = vmatmul.mubr.bf16.gmra.mrb[0].mxu0 %v2698
      %v2978 = vpop.f32.mrb[0].mxu0
      %v2979 = vadd.f32 0.0, %v2978
      %v2980 = vpop.f32.mrb[0].mxu0
      %v2981 = vpop.f32.mrb[0].mxu0
      %v2982 = vadd.f32 0.0, %v2981
      %v2983 = vpop.f32.mrb[0].mxu0
      %2984 = vmatprep.mubr.bf16.mxu0 %v2702
      %2985 = vmatmul.mubr.bf16.gmra.mrb[0].mxu0 %v2701
      %v2986 = vpop.f32.mrb[0].mxu0
      %v2987 = vadd.f32 0.0, %v2986
      %v2988 = vpop.f32.mrb[0].mxu0
      %v2989 = vpop.f32.mrb[0].mxu0
      %v2990 = vadd.f32 0.0, %v2989
      %v2991 = vpop.f32.mrb[0].mxu0
      %2992 = vdwg.mxu0
      %2993 = vmatprep.subr.bf16.mxu0 0
      %2994 = vmatpush1.bf16.msra.mxu0 %v2864
      %2995 = vmatprep.subr.bf16.mxu0 0
      %2996 = vmatpush1.bf16.msra.mxu0 %v2865
      %2997 = vmatprep.subr.bf16.mxu0 0
      %2998 = vmatpush1.bf16.msra.mxu0 %v2866
      %2999 = vmatprep.subr.bf16.mxu0 0
      %3000 = vmatpush1.bf16.msra.mxu0 %v2867
      %3001 = vmatprep.subr.bf16.mxu0 0
      %3002 = vmatpush1.bf16.msra.mxu0 %v2868
      %3003 = vmatprep.subr.bf16.mxu0 0
      %3004 = vmatpush1.bf16.msra.mxu0 %v2869
      %3005 = vmatprep.subr.bf16.mxu0 0
      %3006 = vmatpush1.bf16.msra.mxu0 %v2870
      %3007 = vmatprep.subr.bf16.mxu0 0
      %3008 = vmatpush1.bf16.msra.mxu0 %v2871
      %3009 = vmatprep.subr.bf16.mxu0 0
      %3010 = vmatpush1.bf16.msra.mxu0 0
      %3011 = vmatprep.subr.bf16.mxu0 0
      %3012 = vmatpush1.bf16.msra.mxu0 0
      %3013 = vmatprep.subr.bf16.mxu0 0
      %3014 = vmatpush1.bf16.msra.mxu0 0
      %3015 = vmatprep.subr.bf16.mxu0 0
      %3016 = vmatpush1.bf16.msra.mxu0 0
      %3017 = vmatprep.subr.bf16.mxu0 0
      %3018 = vmatpush1.bf16.msra.mxu0 0
      %3019 = vmatprep.subr.bf16.mxu0 0
      %3020 = vmatpush1.bf16.msra.mxu0 0
      %3021 = vmatprep.subr.bf16.mxu0 0
      %3022 = vmatpush1.bf16.msra.mxu0 0
      %3023 = vmatprep.subr.bf16.mxu0 0
      %3024 = vmatpush1.bf16.msra.mxu0 0
      %3025 = vmatprep.mubr.bf16.mxu0 0
      %3026 = vmatmul.mubr.bf16.gmra.mrb[0].mxu0 %v2682
      %v3027 = vpop.f32.mrb[0].mxu0
      %v3028 = vadd.f32 %v2931, %v3027
      %v3029 = vpop.f32.mrb[0].mxu0
      %v3030 = vpop.f32.mrb[0].mxu0
      %v3031 = vadd.f32 %v2934, %v3030
      %v3032 = vpop.f32.mrb[0].mxu0
      %3033 = vmatprep.mubr.bf16.mxu0 0
      %3034 = vmatmul.mubr.bf16.gmra.mrb[0].mxu0 %v2685
      %v3035 = vpop.f32.mrb[0].mxu0
      %v3036 = vadd.f32 %v2939, %v3035
      %v3037 = vpop.f32.mrb[0].mxu0
      %v3038 = vpop.f32.mrb[0].mxu0
      %v3039 = vadd.f32 %v2942, %v3038
      %v3040 = vpop.f32.mrb[0].mxu0
      %3041 = vmatprep.mubr.bf16.mxu0 0
      %3042 = vmatmul.mubr.bf16.gmra.mrb[0].mxu0 %v2688
      %v3043 = vpop.f32.mrb[0].mxu0
      %v3044 = vadd.f32 %v2947, %v3043
      %v3045 = vpop.f32.mrb[0].mxu0
      %v3046 = vpop.f32.mrb[0].mxu0
      %v3047 = vadd.f32 %v2950, %v3046
      %v3048 = vpop.f32.mrb[0].mxu0
      %3049 = vmatprep.mubr.bf16.mxu0 0
      %3050 = vmatmul.mubr.bf16.gmra.mrb[0].mxu0 %v2691
      %v3051 = vpop.f32.mrb[0].mxu0
      %v3052 = vadd.f32 %v2955, %v3051
      %v3053 = vpop.f32.mrb[0].mxu0
      %v3054 = vpop.f32.mrb[0].mxu0
      %v3055 = vadd.f32 %v2958, %v3054
      %v3056 = vpop.f32.mrb[0].mxu0
      %3057 = vmatprep.mubr.bf16.mxu0 0
      %3058 = vmatmul.mubr.bf16.gmra.mrb[0].mxu0 %v2694
      %v3059 = vpop.f32.mrb[0].mxu0
      %v3060 = vadd.f32 %v2963, %v3059
      %v3061 = vpop.f32.mrb[0].mxu0
      %v3062 = vpop.f32.mrb[0].mxu0
      %v3063 = vadd.f32 %v2966, %v3062
      %v3064 = vpop.f32.mrb[0].mxu0
      %3065 = vmatprep.mubr.bf16.mxu0 0
      %3066 = vmatmul.mubr.bf16.gmra.mrb[0].mxu0 %v2697
      %v3067 = vpop.f32.mrb[0].mxu0
      %v3068 = vadd.f32 %v2971, %v3067
      %v3069 = vpop.f32.mrb[0].mxu0
      %v3070 = vpop.f32.mrb[0].mxu0
      %v3071 = vadd.f32 %v2974, %v3070
      %v3072 = vpop.f32.mrb[0].mxu0
      %3073 = vmatprep.mubr.bf16.mxu0 0
      %3074 = vmatmul.mubr.bf16.gmra.mrb[0].mxu0 %v2700
      %v3075 = vpop.f32.mrb[0].mxu0
      %v3076 = vadd.f32 %v2979, %v3075
      %v3077 = vpop.f32.mrb[0].mxu0
      %v3078 = vpop.f32.mrb[0].mxu0
      %v3079 = vadd.f32 %v2982, %v3078
      %v3080 = vpop.f32.mrb[0].mxu0
      %3081 = vmatprep.mubr.bf16.mxu0 0
      %3082 = vmatmul.mubr.bf16.gmra.mrb[0].mxu0 %v2703
      %v3083 = vpop.f32.mrb[0].mxu0
      %v3084 = vadd.f32 %v2987, %v3083
      %v3085 = vpop.f32.mrb[0].mxu0
      %v3086 = vpop.f32.mrb[0].mxu0
      %v3087 = vadd.f32 %v2990, %v3086
      %v3088 = vpop.f32.mrb[0].mxu0
      %3089 = vdwg.mxu0
      %v3090 = vadd.f32 %v2618, %v3028
      %v3091 = vadd.f32 %v2621, %v3031
      %v3092 = vadd.f32 %v2626, %v3036
      %v3093 = vadd.f32 %v2629, %v3039
      %v3094 = vadd.f32 %v2634, %v3044
      %v3095 = vadd.f32 %v2637, %v3047
      %v3096 = vadd.f32 %v2642, %v3052
      %v3097 = vadd.f32 %v2645, %v3055
      %v3098 = vadd.f32 %v2650, %v3060
      %v3099 = vadd.f32 %v2653, %v3063
      %v3100 = vadd.f32 %v2658, %v3068
      %v3101 = vadd.f32 %v2661, %v3071
      %v3102 = vadd.f32 %v2666, %v3076
      %v3103 = vadd.f32 %v2669, %v3079
      %v3104 = vadd.f32 %v2674, %v3084
      %v3105 = vadd.f32 %v2677, %v3087
      %v3106 = vld [vmem:[%s5] sm:$0x1]
      %v3108 = vlaneseq
      %v3109 = vshrl.u32 %v3108, 7
      %v3110 = vsub.s32 0, %v3109
      %v3111 = vrot.slane %v3106, %v3110
      %v3113 = vadd.f32 %v3090, %v3111
      %v3114 = vadd.f32 %v3091, %v3111
      %v3115 = vadd.f32 %v3092, %v3111
      %v3116 = vadd.f32 %v3093, %v3111
      %v3117 = vadd.f32 %v3094, %v3111
      %v3118 = vadd.f32 %v3095, %v3111
      %v3119 = vadd.f32 %v3096, %v3111
      %v3120 = vadd.f32 %v3097, %v3111
      %v3121 = vadd.f32 %v3098, %v3111
      %v3122 = vadd.f32 %v3099, %v3111
      %v3123 = vadd.f32 %v3100, %v3111
      %v3124 = vadd.f32 %v3101, %v3111
      %v3125 = vadd.f32 %v3102, %v3111
      %v3126 = vadd.f32 %v3103, %v3111
      %v3127 = vadd.f32 %v3104, %v3111
      %v3128 = vadd.f32 %v3105, %v3111
      %v3129 = vmul.f32 %v3113, %v548
      %v3130 = vmul.f32 %v3114, %v549
      %v3131 = vmul.f32 %v3115, %v550
      %v3132 = vmul.f32 %v3116, %v551
      %v3133 = vmul.f32 %v3117, %v552
      %v3134 = vmul.f32 %v3118, %v553
      %v3135 = vmul.f32 %v3119, %v554
      %v3136 = vmul.f32 %v3120, %v555
      %v3137 = vmul.f32 %v3121, %v556
      %v3138 = vmul.f32 %v3122, %v557
      %v3139 = vmul.f32 %v3123, %v558
      %v3140 = vmul.f32 %v3124, %v559
      %v3141 = vmul.f32 %v3125, %v560
      %v3142 = vmul.f32 %v3126, %v561
      %v3143 = vmul.f32 %v3127, %v562
      %v3144 = vmul.f32 %v3128, %v563
      %v3145 = vadd.f32 %v3129, %v3130
      %v3146 = vadd.f32 %v3145, %v3131
      %v3147 = vadd.f32 %v3146, %v3132
      %v3148 = vadd.f32 %v3147, %v3133
      %v3149 = vadd.f32 %v3148, %v3134
      %v3150 = vadd.f32 %v3149, %v3135
      %v3151 = vadd.f32 %v3150, %v3136
      %v3152 = vadd.f32 %v3151, %v3137
      %v3153 = vadd.f32 %v3152, %v3138
      %v3154 = vadd.f32 %v3153, %v3139
      %v3155 = vadd.f32 %v3154, %v3140
      %v3156 = vadd.f32 %v3155, %v3141
      %v3157 = vadd.f32 %v3156, %v3142
      %v3158 = vadd.f32 %v3157, %v3143
      %v3159 = vadd.f32 %v3158, %v3144
      %v3160 = vrot.slane %v3159, 4
      %v3161 = vadd.f32 %v3159, %v3160
      %v3162 = vrot.slane %v3161, 2
      %v3163 = vadd.f32 %v3161, %v3162
      %v3164 = vrot.slane %v3163, 1
      %v3165 = vadd.f32 %v3163, %v3164
      %v3166 = vmul.f32 %v3165, 0.015625
      %v3167 = vld [vmem:[%s6] sm:$0xff]
      %v3168 = vld [vmem:[%s6 + $0x8] sm:$0xff]
      %v3169 = vld [vmem:[%s6 + $0x10] sm:$0xff]
      %v3170 = vld [vmem:[%s6 + $0x18] sm:$0xff]
      %v3171 = vld [vmem:[%s6 + $0x20] sm:$0xff]
      %v3172 = vld [vmem:[%s6 + $0x28] sm:$0xff]
      %v3173 = vld [vmem:[%s6 + $0x30] sm:$0xff]
      %v3174 = vld [vmem:[%s6 + $0x38] sm:$0xff]
      %v3175 = vld [vmem:[%s6 + $0x40] sm:$0xff]
      %v3176 = vld [vmem:[%s6 + $0x48] sm:$0xff]
      %v3177 = vld [vmem:[%s6 + $0x50] sm:$0xff]
      %v3178 = vld [vmem:[%s6 + $0x58] sm:$0xff]
      %v3179 = vld [vmem:[%s6 + $0x60] sm:$0xff]
      %v3180 = vld [vmem:[%s6 + $0x68] sm:$0xff]
      %v3181 = vld [vmem:[%s6 + $0x70] sm:$0xff]
      %v3182 = vld [vmem:[%s6 + $0x78] sm:$0xff]
      %3183 = vmatprep.subr.mxu0 0.0
      %3184 = vmatpush1.msra.mxu0 %v3167
      %3185 = vmatprep.subr.mxu0 0.0
      %3186 = vmatpush1.msra.mxu0 %v3168
      %3187 = vmatprep.subr.mxu0 0.0
      %3188 = vmatpush1.msra.mxu0 %v3169
      %3189 = vmatprep.subr.mxu0 0.0
      %3190 = vmatpush1.msra.mxu0 %v3170
      %3191 = vmatprep.subr.mxu0 0.0
      %3192 = vmatpush1.msra.mxu0 %v3171
      %3193 = vmatprep.subr.mxu0 0.0
      %3194 = vmatpush1.msra.mxu0 %v3172
      %3195 = vmatprep.subr.mxu0 0.0
      %3196 = vmatpush1.msra.mxu0 %v3173
      %3197 = vmatprep.subr.mxu0 0.0
      %3198 = vmatpush1.msra.mxu0 %v3174
      %3199 = vmatprep.subr.mxu0 0.0
      %3200 = vmatpush1.msra.mxu0 %v3175
      %3201 = vmatprep.subr.mxu0 0.0
      %3202 = vmatpush1.msra.mxu0 %v3176
      %3203 = vmatprep.subr.mxu0 0.0
      %3204 = vmatpush1.msra.mxu0 %v3177
      %3205 = vmatprep.subr.mxu0 0.0
      %3206 = vmatpush1.msra.mxu0 %v3178
      %3207 = vmatprep.subr.mxu0 0.0
      %3208 = vmatpush1.msra.mxu0 %v3179
      %3209 = vmatprep.subr.mxu0 0.0
      %3210 = vmatpush1.msra.mxu0 %v3180
      %3211 = vmatprep.subr.mxu0 0.0
      %3212 = vmatpush1.msra.mxu0 %v3181
      %3213 = vmatprep.subr.mxu0 0.0
      %3214 = vmatpush1.msra.mxu0 %v3182
      %3215 = vmatprep.subr.mxu0 0.0
      %3216 = vmatpush1.msra.mxu0 0.0
      %3217 = vmatprep.subr.mxu0 0.0
      %3218 = vmatpush1.msra.mxu0 0.0
      %3219 = vmatprep.subr.mxu0 0.0
      %3220 = vmatpush1.msra.mxu0 0.0
      %3221 = vmatprep.subr.mxu0 0.0
      %3222 = vmatpush1.msra.mxu0 0.0
      %3223 = vmatprep.subr.mxu0 0.0
      %3224 = vmatpush1.msra.mxu0 0.0
      %3225 = vmatprep.subr.mxu0 0.0
      %3226 = vmatpush1.msra.mxu0 0.0
      %3227 = vmatprep.subr.mxu0 0.0
      %3228 = vmatpush1.msra.mxu0 0.0
      %3229 = vmatprep.subr.mxu0 0.0
      %3230 = vmatpush1.msra.mxu0 0.0
      %3231 = vmatprep.subr.mxu0 0.0
      %3232 = vmatpush1.msra.mxu0 0.0
      %3233 = vmatprep.subr.mxu0 0.0
      %3234 = vmatpush1.msra.mxu0 0.0
      %3235 = vmatprep.subr.mxu0 0.0
      %3236 = vmatpush1.msra.mxu0 0.0
      %3237 = vmatprep.subr.mxu0 0.0
      %3238 = vmatpush1.msra.mxu0 0.0
      %3239 = vmatprep.subr.mxu0 0.0
      %3240 = vmatpush1.msra.mxu0 0.0
      %3241 = vmatprep.subr.mxu0 0.0
      %3242 = vmatpush1.msra.mxu0 0.0
      %3243 = vmatprep.subr.mxu0 0.0
      %3244 = vmatpush1.msra.mxu0 0.0
      %3245 = vmatprep.subr.mxu0 0.0
      %3246 = vmatpush1.msra.mxu0 0.0
      %3247 = vmatprep.mubr.f32.mxu0 0.0
      %3248 = vmatmul.mubr.f32.gmra.mrb[0].mxu0 %v3166
      %v3249 = vpop.f32.mrb[0].mxu0
      %v3250 = vadd.f32 0.0, %v3249
      %v3251 = vpop.f32.mrb[0].mxu0
      %3252 = vdwg.mxu0
      %v3253 = vmax.f32 %v3250, 0.0
      %v3254 = vld [vmem:[%s7] sm:$0xff]
      %vm3255 = vcmask 64512
      %v3257 = vsel %vm3255, %v3253, 0
      %3259 = vmatprep.subr.mxu0 0.0
      %3260 = vmatpush1.msra.mxu0 %v3254
      %3261 = vmatprep.subr.mxu0 0.0
      %3262 = vmatpush1.msra.mxu0 0.0
      %3263 = vmatprep.subr.mxu0 0.0
      %3264 = vmatpush1.msra.mxu0 0.0
      %3265 = vmatprep.subr.mxu0 0.0
      %3266 = vmatpush1.msra.mxu0 0.0
      %3267 = vmatprep.subr.mxu0 0.0
      %3268 = vmatpush1.msra.mxu0 0.0
      %3269 = vmatprep.subr.mxu0 0.0
      %3270 = vmatpush1.msra.mxu0 0.0
      %3271 = vmatprep.subr.mxu0 0.0
      %3272 = vmatpush1.msra.mxu0 0.0
      %3273 = vmatprep.subr.mxu0 0.0
      %3274 = vmatpush1.msra.mxu0 0.0
      %3275 = vmatprep.subr.mxu0 0.0
      %3276 = vmatpush1.msra.mxu0 0.0
      %3277 = vmatprep.subr.mxu0 0.0
      %3278 = vmatpush1.msra.mxu0 0.0
      %3279 = vmatprep.subr.mxu0 0.0
      %3280 = vmatpush1.msra.mxu0 0.0
      %3281 = vmatprep.subr.mxu0 0.0
      %3282 = vmatpush1.msra.mxu0 0.0
      %3283 = vmatprep.subr.mxu0 0.0
      %3284 = vmatpush1.msra.mxu0 0.0
      %3285 = vmatprep.subr.mxu0 0.0
      %3286 = vmatpush1.msra.mxu0 0.0
      %3287 = vmatprep.subr.mxu0 0.0
      %3288 = vmatpush1.msra.mxu0 0.0
      %3289 = vmatprep.subr.mxu0 0.0
      %3290 = vmatpush1.msra.mxu0 0.0
      %3291 = vmatprep.subr.mxu0 0.0
      %3292 = vmatpush1.msra.mxu0 0.0
      %3293 = vmatprep.subr.mxu0 0.0
      %3294 = vmatpush1.msra.mxu0 0.0
      %3295 = vmatprep.subr.mxu0 0.0
      %3296 = vmatpush1.msra.mxu0 0.0
      %3297 = vmatprep.subr.mxu0 0.0
      %3298 = vmatpush1.msra.mxu0 0.0
      %3299 = vmatprep.subr.mxu0 0.0
      %3300 = vmatpush1.msra.mxu0 0.0
      %3301 = vmatprep.subr.mxu0 0.0
      %3302 = vmatpush1.msra.mxu0 0.0
      %3303 = vmatprep.subr.mxu0 0.0
      %3304 = vmatpush1.msra.mxu0 0.0
      %3305 = vmatprep.subr.mxu0 0.0
      %3306 = vmatpush1.msra.mxu0 0.0
      %3307 = vmatprep.subr.mxu0 0.0
      %3308 = vmatpush1.msra.mxu0 0.0
      %3309 = vmatprep.subr.mxu0 0.0
      %3310 = vmatpush1.msra.mxu0 0.0
      %3311 = vmatprep.subr.mxu0 0.0
      %3312 = vmatpush1.msra.mxu0 0.0
      %3313 = vmatprep.subr.mxu0 0.0
      %3314 = vmatpush1.msra.mxu0 0.0
      %3315 = vmatprep.subr.mxu0 0.0
      %3316 = vmatpush1.msra.mxu0 0.0
      %3317 = vmatprep.subr.mxu0 0.0
      %3318 = vmatpush1.msra.mxu0 0.0
      %3319 = vmatprep.subr.mxu0 0.0
      %3320 = vmatpush1.msra.mxu0 0.0
      %3321 = vmatprep.subr.mxu0 0.0
      %3322 = vmatpush1.msra.mxu0 0.0
      %3323 = vmatprep.mubr.f32.mxu0 0.0
      %3324 = vmatmul.mubr.f32.gmra.mrb[0].mxu0 %v3257
      %v3325 = vpop.f32.mrb[0].mxu0
      %v3326 = vadd.f32 0.0, %v3325
      %v3327 = vpop.f32.mrb[0].mxu0
      %3328 = vdwg.mxu0
      %v3329 = vxor.u32 %v3326, 2147483648
      %v3330 = vmul.f32 %v3329, 1.442695
      %v3331 = vpow.pop %v3330
      %v3332 = vadd.f32 %v3331, 1.0
      %v3333 = vrcp.pop %v3332
      %v3334 = vmul.f32 1.0, %v3333
      %v3335 = vlaneseq
      %v3336 = vshrl.u32 %v3335, 7
      %v3337 = vsub.s32 0, %v3336
      %v3338 = vrot.slane %v3334, %v3337
      %v3339 = vmul.f32 %v3113, %v3338
      %v3340 = vmul.f32 %v3114, %v3338
      %v3341 = vmul.f32 %v3115, %v3338
      %v3342 = vmul.f32 %v3116, %v3338
      %v3343 = vmul.f32 %v3117, %v3338
      %v3344 = vmul.f32 %v3118, %v3338
      %v3345 = vmul.f32 %v3119, %v3338
      %v3346 = vmul.f32 %v3120, %v3338
      %v3347 = vmul.f32 %v3121, %v3338
      %v3348 = vmul.f32 %v3122, %v3338
      %v3349 = vmul.f32 %v3123, %v3338
      %v3350 = vmul.f32 %v3124, %v3338
      %v3351 = vmul.f32 %v3125, %v3338
      %v3352 = vmul.f32 %v3126, %v3338
      %v3353 = vmul.f32 %v3127, %v3338
      %v3354 = vmul.f32 %v3128, %v3338
      %v3355 = vadd.f32 %v3339, %v1652
      %v3356 = vadd.f32 %v3340, %v1653
      %v3357 = vadd.f32 %v3341, %v1654
      %v3358 = vadd.f32 %v3342, %v1655
      %v3359 = vadd.f32 %v3343, %v1656
      %v3360 = vadd.f32 %v3344, %v1657
      %v3361 = vadd.f32 %v3345, %v1658
      %v3362 = vadd.f32 %v3346, %v1659
      %v3363 = vadd.f32 %v3347, %v1660
      %v3364 = vadd.f32 %v3348, %v1661
      %v3365 = vadd.f32 %v3349, %v1662
      %v3366 = vadd.f32 %v3350, %v1663
      %v3367 = vadd.f32 %v3351, %v1664
      %v3368 = vadd.f32 %v3352, %v1665
      %v3369 = vadd.f32 %v3353, %v1666
      %v3370 = vadd.f32 %v3354, %v1667
      %v3371 = vmax.f32 %v3355, 0.0
      %v3372 = vmax.f32 %v3356, 0.0
      %v3373 = vmax.f32 %v3357, 0.0
      %v3374 = vmax.f32 %v3358, 0.0
      %v3375 = vmax.f32 %v3359, 0.0
      %v3376 = vmax.f32 %v3360, 0.0
      %v3377 = vmax.f32 %v3361, 0.0
      %v3378 = vmax.f32 %v3362, 0.0
      %v3379 = vmax.f32 %v3363, 0.0
      %v3380 = vmax.f32 %v3364, 0.0
      %v3381 = vmax.f32 %v3365, 0.0
      %v3382 = vmax.f32 %v3366, 0.0
      %v3383 = vmax.f32 %v3367, 0.0
      %v3384 = vmax.f32 %v3368, 0.0
      %v3385 = vmax.f32 %v3369, 0.0
      %v3386 = vmax.f32 %v3370, 0.0
      %v3387 = vpack.c.bf16 %v3372, %v3371
      %v3388 = vpack.c.bf16 %v3374, %v3373
      %v3389 = vpack.c.bf16 %v3376, %v3375
      %v3390 = vpack.c.bf16 %v3378, %v3377
      %v3391 = vpack.c.bf16 %v3380, %v3379
      %v3392 = vpack.c.bf16 %v3382, %v3381
      %v3393 = vpack.c.bf16 %v3384, %v3383
      %v3394 = vpack.c.bf16 %v3386, %v3385
      %v3403 = vunpack.c.l.b16 %v3387
      %v3404 = vunpack.c.h.b16 %v3387
      %v3405 = vunpack.c.l.b16 %v3388
      %v3406 = vunpack.c.h.b16 %v3388
      %v3407 = vunpack.c.l.b16 %v3389
      %v3408 = vunpack.c.h.b16 %v3389
      %v3409 = vunpack.c.l.b16 %v3390
      %v3410 = vunpack.c.h.b16 %v3390
      %v3411 = vunpack.c.l.b16 %v3391
      %v3412 = vunpack.c.h.b16 %v3391
      %v3413 = vunpack.c.l.b16 %v3392
      %v3414 = vunpack.c.h.b16 %v3392
      %v3415 = vunpack.c.l.b16 %v3393
      %v3416 = vunpack.c.h.b16 %v3393
      %v3417 = vunpack.c.l.b16 %v3394
      %v3418 = vunpack.c.h.b16 %v3394
      %v3419 = vpack.c.b16 %v3403, %v3403
      %v3420 = vpack.c.b16 %v3404, %v3404
      %v3421 = vpack.c.b16 %v3405, %v3405
      %v3422 = vpack.c.b16 %v3406, %v3406
      %v3423 = vpack.c.b16 %v3407, %v3407
      %v3424 = vpack.c.b16 %v3408, %v3408
      %v3425 = vpack.c.b16 %v3409, %v3409
      %v3426 = vpack.c.b16 %v3410, %v3410
      %v3427 = vpack.c.b16 %v3411, %v3411
      %v3428 = vpack.c.b16 %v3412, %v3412
      %v3429 = vpack.c.b16 %v3413, %v3413
      %v3430 = vpack.c.b16 %v3414, %v3414
      %v3431 = vpack.c.b16 %v3415, %v3415
      %v3432 = vpack.c.b16 %v3416, %v3416
      %v3433 = vpack.c.b16 %v3417, %v3417
      %v3434 = vpack.c.b16 %v3418, %v3418
      %3451 = vst [vmem:[%s305] sm:$0xf] %v3419
      %3452 = vst [vmem:[%s305 + $0x4] sm:$0xf] %v3420
      %3453 = vst [vmem:[%s305 + $0x8] sm:$0xf] %v3421
      %3454 = vst [vmem:[%s305 + $0xc] sm:$0xf] %v3422
      %3455 = vst [vmem:[%s305 + $0x10] sm:$0xf] %v3423
      %3456 = vst [vmem:[%s305 + $0x14] sm:$0xf] %v3424
      %3457 = vst [vmem:[%s305 + $0x18] sm:$0xf] %v3425
      %3458 = vst [vmem:[%s305 + $0x1c] sm:$0xf] %v3426
      %3459 = vst [vmem:[%s305 + $0x20] sm:$0xf] %v3427
      %3460 = vst [vmem:[%s305 + $0x24] sm:$0xf] %v3428
      %3461 = vst [vmem:[%s305 + $0x28] sm:$0xf] %v3429
      %3462 = vst [vmem:[%s305 + $0x2c] sm:$0xf] %v3430
      %3463 = vst [vmem:[%s305 + $0x30] sm:$0xf] %v3431
      %3464 = vst [vmem:[%s305 + $0x34] sm:$0xf] %v3432
      %3465 = vst [vmem:[%s305 + $0x38] sm:$0xf] %v3433
      %3466 = vst [vmem:[%s305 + $0x3c] sm:$0xf] %v3434
      %p3467 = scmp.lt.s32.totalorder %s19, 1
      %s3468 = scalar_select %p3467, %s19, 1
      %s3469 = smul.addr %s3468, 16
      %s3470 = smul.addr %s3469, 4
      %s3471 = scalar_lea.vmem %s8, %s3470
      // Predicated region
      $region53: #{residual_se_block.1} parent=51 // pred_check
        %p3472 = pneg %p210
      $region54: #{residual_se_block.1} parent=51 // pred_check_branch
        %3474 = sbr.rel (%p3472) target = $region56
      $region55: #{residual_se_block.1} parent=51 // pred_region
        _
      $region56: #{residual_se_block.1} parent=51 // pred_fallthru
        _
    $region52: #{residual_se_block.1} parent=5 // pred_fallthru
      _
    %p3475 = scmp.le.s32.totalorder 2, %s14
    // Predicated region
    $region57: #{residual_se_block.1} parent=5 // pred_check
      %p3476 = pneg %p3475
    $region58: #{residual_se_block.1} parent=5 // pred_check_branch
      %3478 = sbr.rel (%p3476) target = $region60
    $region59: #{residual_se_block.1} parent=5 // pred_region
      %s3479 = ssub.s32 %s14, 2
      // Predicated region
      $region61: #{residual_se_block.1} parent=59 // pred_check
        %p3480 = pneg %p216
      $region62: #{residual_se_block.1} parent=59 // pred_check_branch
        %3482 = sbr.rel (%p3480) target = $region64
      $region63: #{residual_se_block.1} parent=59 // pred_region
        %p3483 = scmp.lt.s32.totalorder %s20, 1
        %s3484 = scalar_select %p3483, %s20, 1
        %s3485 = smul.addr %s3484, 16
        %s3486 = smul.addr %s3485, 4
        %s3487 = scalar_lea.vmem %s8, %s3486
      $region64: #{residual_se_block.1} parent=59 // pred_fallthru
        _
    $region60: #{residual_se_block.1} parent=5 // pred_fallthru
      _
  $region6: #{residual_se_block.1} parent=0 // loop_footer
    %s18 = sadd.s32 1, %s14
  $region7: #{residual_se_block.1} parent=0 // loop_footer_branch
    %13 = sbr.rel target = $region3
  $region8: #{residual_se_block.1} parent=0 // loop_exit
    _

</llo_original>
